<compile_context>
chip_gen: v7x
topology: tpu7x:2x2x1
jax: 0.10.0
libtpu: 0.0.40
codegen_flags: <defaults>
</compile_context>

<pallas_src>
import jax
import jax.numpy as jnp
from jax import lax
from jax.experimental import pallas as pl
from jax.experimental.pallas import tpu as pltpu

_LANE = 128
_BF16 = jnp.bfloat16


def _round_up(x, m):
    return ((x + m - 1) // m) * m


def _pick_row_chunk(H, W, target_m=256):
    """Largest divisor of H such that chunk*W <= target_m (at least 1)."""
    hb = max(1, min(H, target_m // max(W, 1)))
    while H % hb:
        hb -= 1
    return hb


def double_conv(x_nchw, w1, b1, w2, b2):
    """(Conv2d 3x3 pad=1 -> ReLU) * 2, matching the PyTorch module.

    x_nchw: (N, Cin, H, W) f32;  w1: (Cout, Cin, 3, 3);  b1: (Cout,)
    w2: (Cout, Cout, 3, 3);      b2: (Cout,)
    returns (N, Cout, H, W) f32
    """
    N, Cin, H, W = x_nchw.shape
    Cout = w1.shape[0]
    Cin_p = _round_up(Cin, _LANE)
    Cout_p = _round_up(Cout, _LANE)
    HB = _pick_row_chunk(H, W)        # output rows per accumulator chunk

    # ---- wrapper-side layout prep (no spatial pad; single pass each) -------
    x = jnp.transpose(x_nchw, (0, 2, 3, 1)).astype(jnp.float32)
    x = jnp.pad(x, ((0, 0), (0, 0), (0, 0), (0, Cin_p - Cin))).astype(_BF16)

    def prep_w(w, ci, ci_p):
        # OIHW -> (kh, kw, I, O), zero-pad channels, fuse the 3 kw taps of each
        # kernel row along K: (3, 3*ci_p, Cout_p), bf16.
        wt = jnp.transpose(w, (2, 3, 1, 0)).astype(jnp.float32)
        wt = jnp.pad(wt, ((0, 0), (0, 0), (0, ci_p - ci), (0, Cout_p - Cout)))
        return wt.reshape(3, 3 * ci_p, Cout_p).astype(_BF16)

    w1_k = prep_w(w1, Cin, Cin_p)
    w2_k = prep_w(w2, Cout, Cout_p)
    b1_k = jnp.pad(b1.astype(jnp.float32), (0, Cout_p - Cout)).reshape(1, Cout_p)
    b2_k = jnp.pad(b2.astype(jnp.float32), (0, Cout_p - Cout)).reshape(1, Cout_p)

    # ---- kernel -------------------------------------------------------------
    def kernel(x_ref, w1_ref, b1_ref, w2_ref, b2_ref, y_ref,
               s1_ref, mid_ref, s2_ref):
        # x_ref  : (H, W, Cin_p)      bf16  (unpadded spatially)
        # w*_ref : (3, 3*C, Cout_p)   bf16  (kernel-row-fused weights)
        # b*_ref : (1, Cout_p)        f32
        # y_ref  : (H*W, Cout_p)      bf16
        # s*_ref : ((H+2)*W, 3*C)     bf16  (dj-concatenated, row-padded slab)
        # mid_ref: (H*W, Cout_p)      bf16  (conv1 activation)

        def build_slab(s_ref, act, c):
            # S[h', w, dj*c:(dj+1)*c] = act_pad[h', w+dj]  (act_pad: 1-px zero pad)
            zc = jnp.zeros((H, 1, c), _BF16)
            left = jnp.concatenate([zc, act[:, : W - 1, :]], axis=1)   # dj = 0
            right = jnp.concatenate([act[:, 1:, :], zc], axis=1)       # dj = 2
            body = jnp.concatenate([left, act, right], axis=-1)        # (H, W, 3c)
            zrow = jnp.zeros((W, 3 * c), _BF16)
            s_ref[0:W, :] = zrow                                 # padded row h'=0
            s_ref[(H + 1) * W:(H + 2) * W, :] = zrow             # padded row h'=H+1
            s_ref[W:(H + 1) * W, :] = body.reshape(H * W, 3 * c)

        def conv_pass(s_ref, w_ref, bias, dst_ref):
            m = HB * W
            n_chunks = H // HB

            def one_chunk(r0):   # r0 = first output row of this chunk
                acc = jnp.zeros((m, Cout_p), jnp.float32)
                for di in range(3):                      # 3 matmuls, K = 3*C
                    acc = acc + jnp.dot(
                        s_ref[pl.ds((r0 + di) * W, m), :], w_ref[di],
                        preferred_element_type=jnp.float32)
                out = jnp.maximum(acc + bias, 0.0)       # bias + ReLU in f32
                dst_ref[pl.ds(r0 * W, m), :] = out.astype(dst_ref.dtype)

            if n_chunks == 1:
                one_chunk(0)
            else:
                def body(c, carry):
                    one_chunk(pl.multiple_of(c * HB, HB))
                    return carry
                lax.fori_loop(0, n_chunks, body, 0, unroll=n_chunks <= 8)

        # conv1 -> ReLU
        build_slab(s1_ref, x_ref[...], Cin_p)
        conv_pass(s1_ref, w1_ref, b1_ref[...], mid_ref)
        # conv2 -> ReLU
        build_slab(s2_ref, mid_ref[...].reshape(H, W, Cout_p), Cout_p)
        conv_pass(s2_ref, w2_ref, b2_ref[...], y_ref)

    # ---- VMEM budget: derive the limit from actual block + scratch sizes ----
    blk_bytes = (H * W * Cin_p * 2                 # x block (bf16)
                 + H * W * Cout_p * 2              # y block (bf16)
                 + 3 * 3 * Cin_p * Cout_p * 2      # w1
                 + 3 * 3 * Cout_p * Cout_p * 2     # w2
                 + 2 * Cout_p * 4)                 # biases
    scratch_bytes = ((H + 2) * W * 3 * Cin_p * 2
                     + (H + 2) * W * 3 * Cout_p * 2
                     + H * W * Cout_p * 2)
    need = 2 * blk_bytes + scratch_bytes           # blocks are double-buffered
    try:
        cap = int(pltpu.get_tpu_info().vmem_capacity_bytes)
    except Exception:
        cap = 64 * 1024 * 1024
    if cap <= 0:
        cap = 64 * 1024 * 1024
    vmem_limit = int(min(max(2 * need, 32 * 1024 * 1024), (cap * 3) // 4))

    y = pl.pallas_call(
        kernel,
        out_shape=jax.ShapeDtypeStruct((N, H * W, Cout_p), _BF16),
        grid=(N,),
        in_specs=[
            # per-image activation block (pipelined across the batch grid)
            pl.BlockSpec((None, H, W, Cin_p), lambda n: (n, 0, 0, 0)),
            # weights / biases: constant index_map -> DMA'd once, stay resident
            pl.BlockSpec((3, 3 * Cin_p, Cout_p), lambda n: (0, 0, 0)),
            pl.BlockSpec((1, Cout_p), lambda n: (0, 0)),
            pl.BlockSpec((3, 3 * Cout_p, Cout_p), lambda n: (0, 0, 0)),
            pl.BlockSpec((1, Cout_p), lambda n: (0, 0)),
        ],
        out_specs=pl.BlockSpec((None, H * W, Cout_p), lambda n: (n, 0, 0)),
        scratch_shapes=[
            pltpu.VMEM(((H + 2) * W, 3 * Cin_p), _BF16),    # conv1 slab
            pltpu.VMEM((H * W, Cout_p), _BF16),             # conv1 activation
            pltpu.VMEM(((H + 2) * W, 3 * Cout_p), _BF16),   # conv2 slab
        ],
        compiler_params=pltpu.CompilerParams(
            dimension_semantics=("parallel",),   # megacore sharding on v7x
            vmem_limit_bytes=vmem_limit,
        ),
    )(x, w1_k, b1_k, w2_k, b2_k)

    # Drop channel padding, back to NCHW f32 (module semantics).
    y = y.reshape(N, H, W, Cout_p)[..., :Cout]
    return jnp.transpose(y, (0, 3, 1, 2)).astype(jnp.float32)


def _reference(x, w1, b1, w2, b2):
    """Pure-JAX reference (lax conv, NCHW, f32) mirroring the PyTorch module."""
    def conv_relu(x, w, b):
        y = lax.conv_general_dilated(
            x, w, window_strides=(1, 1), padding=((1, 1), (1, 1)),
            dimension_numbers=("NCHW", "OIHW", "NCHW"))
        return jax.nn.relu(y + b[None, :, None, None])
    return conv_relu(conv_relu(x, w1, b1), w2, b2)


if __name__ == "__main__":
    N, in_ch, out_ch, H, W = 2, 4, 8, 16, 16

    key = jax.random.PRNGKey(0)
    kx, kw1, kb1, kw2, kb2 = jax.random.split(key, 5)
    x = jax.random.normal(kx, (N, in_ch, H, W), jnp.float32)
    w1 = jax.random.normal(kw1, (out_ch, in_ch, 3, 3), jnp.float32) * 0.1
    b1 = jax.random.normal(kb1, (out_ch,), jnp.float32) * 0.1
    w2 = jax.random.normal(kw2, (out_ch, out_ch, 3, 3), jnp.float32) * 0.1
    b2 = jax.random.normal(kb2, (out_ch,), jnp.float32) * 0.1

    y = jax.block_until_ready(double_conv(x, w1, b1, w2, b2))
    y_ref = jax.block_until_ready(_reference(x, w1, b1, w2, b2))

    assert y.shape == (N, out_ch, H, W)
    max_diff = float(jnp.max(jnp.abs(y - y_ref)))
    # bf16 MXU operands / bf16 intermediate+output (f32 accumulation) -> bf16 tol.
    assert jnp.allclose(y, y_ref, atol=5e-2, rtol=5e-2), f"max abs diff = {max_diff}"
    print("KERNEL_OK")
</pallas_src>

<mosaic_0001>
module attributes {stable_mosaic.version = 11 : i64} {
  func.func @kernel(%arg0: i32, %arg1: memref<1x16x16x128xbf16, #tpu.memory_space<vmem>>, %arg2: memref<3x384x128xbf16, #tpu.memory_space<vmem>>, %arg3: memref<1x128xf32, #tpu.memory_space<vmem>>, %arg4: memref<3x384x128xbf16, #tpu.memory_space<vmem>>, %arg5: memref<1x128xf32, #tpu.memory_space<vmem>>, %arg6: memref<1x256x128xbf16, #tpu.memory_space<vmem>>, %arg7: memref<288x384xbf16, #tpu.memory_space<vmem>>, %arg8: memref<256x128xbf16, #tpu.memory_space<vmem>>, %arg9: memref<288x384xbf16, #tpu.memory_space<vmem>>) attributes {dimension_semantics = [#tpu.dimension_semantics<parallel>], iteration_bounds = array<i64: 2>, scalar_prefetch = 0 : i64, scratch_operands = 3 : i64, tpu.core_type = #tpu.core_type<tc>, window_params = [{transform_indices = @transform_0, window_bounds = array<i64: 1, 16, 16, 128>}, {pipeline_mode = #tpu.pipeline_mode<synchronous>, transform_indices = @transform_1, window_bounds = array<i64: 3, 384, 128>}, {pipeline_mode = #tpu.pipeline_mode<synchronous>, transform_indices = @transform_2, window_bounds = array<i64: 1, 128>}, {pipeline_mode = #tpu.pipeline_mode<synchronous>, transform_indices = @transform_3, window_bounds = array<i64: 3, 384, 128>}, {pipeline_mode = #tpu.pipeline_mode<synchronous>, transform_indices = @transform_4, window_bounds = array<i64: 1, 128>}, {transform_indices = @transform_5, window_bounds = array<i64: 1, 256, 128>}]} {
    %c0 = arith.constant 0 : index
    %c0_0 = arith.constant 0 : index
    %c0_1 = arith.constant 0 : index
    %c0_2 = arith.constant 0 : index
    %0 = vector.load %arg1[%c0, %c0_0, %c0_1, %c0_2] : memref<1x16x16x128xbf16, #tpu.memory_space<vmem>>, vector<1x16x16x128xbf16>
    %1 = vector.shape_cast %0 : vector<1x16x16x128xbf16> to vector<16x16x128xbf16>
    %cst = arith.constant 0.000000e+00 : bf16
    %2 = vector.broadcast %cst : bf16 to vector<16x1x128xbf16>
    %3 = vector.extract_strided_slice %1 {offsets = [0, 0, 0], sizes = [16, 15, 128], strides = [1, 1, 1]} : vector<16x16x128xbf16> to vector<16x15x128xbf16>
    %4 = tpu.concatenate %2, %3 in 1 : vector<16x1x128xbf16>, vector<16x15x128xbf16> -> vector<16x16x128xbf16>
    %5 = vector.extract_strided_slice %1 {offsets = [0, 1, 0], sizes = [16, 15, 128], strides = [1, 1, 1]} : vector<16x16x128xbf16> to vector<16x15x128xbf16>
    %6 = tpu.concatenate %5, %2 in 1 : vector<16x15x128xbf16>, vector<16x1x128xbf16> -> vector<16x16x128xbf16>
    %7 = tpu.concatenate %4, %1, %6 in 2 : vector<16x16x128xbf16>, vector<16x16x128xbf16>, vector<16x16x128xbf16> -> vector<16x16x384xbf16>
    %cst_3 = arith.constant 0.000000e+00 : bf16
    %8 = vector.broadcast %cst_3 : bf16 to vector<16x384xbf16>
    %c0_4 = arith.constant 0 : index
    %c0_5 = arith.constant 0 : index
    %9 = vector.load %arg7[%c0_4, %c0_5] : memref<288x384xbf16, #tpu.memory_space<vmem>>, vector<16x384xbf16>
    tpu.vector_store %arg7[%c0_4, %c0_5], %8 {strides = array<i32>} : memref<288x384xbf16, #tpu.memory_space<vmem>>, vector<16x384xbf16>,
    %c272 = arith.constant 272 : index
    %c0_6 = arith.constant 0 : index
    %10 = vector.load %arg7[%c272, %c0_6] : memref<288x384xbf16, #tpu.memory_space<vmem>>, vector<16x384xbf16>
    tpu.vector_store %arg7[%c272, %c0_6], %8 {strides = array<i32>} : memref<288x384xbf16, #tpu.memory_space<vmem>>, vector<16x384xbf16>,
    %11 = vector.shape_cast %7 : vector<16x16x384xbf16> to vector<256x384xbf16>
    %c16 = arith.constant 16 : index
    %c0_7 = arith.constant 0 : index
    %12 = vector.load %arg7[%c16, %c0_7] : memref<288x384xbf16, #tpu.memory_space<vmem>>, vector<256x384xbf16>
    tpu.vector_store %arg7[%c16, %c0_7], %11 {strides = array<i32>} : memref<288x384xbf16, #tpu.memory_space<vmem>>, vector<256x384xbf16>,
    %c0_8 = arith.constant 0 : index
    %c0_9 = arith.constant 0 : index
    %13 = vector.load %arg3[%c0_8, %c0_9] : memref<1x128xf32, #tpu.memory_space<vmem>>, vector<1x128xf32>
    %cst_10 = arith.constant 0.000000e+00 : f32
    %14 = vector.broadcast %cst_10 : f32 to vector<256x128xf32>
    %c0_11 = arith.constant 0 : index
    %c0_12 = arith.constant 0 : index
    %15 = vector.load %arg7[%c0_11, %c0_12] : memref<288x384xbf16, #tpu.memory_space<vmem>>, vector<256x384xbf16>
    %c0_13 = arith.constant 0 : index
    %c0_14 = arith.constant 0 : index
    %c0_15 = arith.constant 0 : index
    %16 = vector.load %arg2[%c0_13, %c0_14, %c0_15] : memref<3x384x128xbf16, #tpu.memory_space<vmem>>, vector<1x384x128xbf16>
    %17 = vector.shape_cast %16 : vector<1x384x128xbf16> to vector<384x128xbf16>
    %cst_16 = arith.constant dense<0.000000e+00> : vector<256x128xf32>
    %18 = tpu.matmul %15, %17, %cst_16 {dimension_numbers = #tpu.dot_dimension_numbers<[1], [0], [0], [1], [0, 0, 1, 1], [], []>} : vector<256x384xbf16>, vector<384x128xbf16>, vector<256x128xf32> -> vector<256x128xf32>
    %19 = arith.addf %14, %18 : vector<256x128xf32>
    %c16_17 = arith.constant 16 : index
    %c0_18 = arith.constant 0 : index
    %20 = vector.load %arg7[%c16_17, %c0_18] : memref<288x384xbf16, #tpu.memory_space<vmem>>, vector<256x384xbf16>
    %c1 = arith.constant 1 : index
    %c0_19 = arith.constant 0 : index
    %c0_20 = arith.constant 0 : index
    %21 = vector.load %arg2[%c1, %c0_19, %c0_20] : memref<3x384x128xbf16, #tpu.memory_space<vmem>>, vector<1x384x128xbf16>
    %22 = vector.shape_cast %21 : vector<1x384x128xbf16> to vector<384x128xbf16>
    %cst_21 = arith.constant dense<0.000000e+00> : vector<256x128xf32>
    %23 = tpu.matmul %20, %22, %cst_21 {dimension_numbers = #tpu.dot_dimension_numbers<[1], [0], [0], [1], [0, 0, 1, 1], [], []>} : vector<256x384xbf16>, vector<384x128xbf16>, vector<256x128xf32> -> vector<256x128xf32>
    %24 = arith.addf %19, %23 : vector<256x128xf32>
    %c32 = arith.constant 32 : index
    %c0_22 = arith.constant 0 : index
    %25 = vector.load %arg7[%c32, %c0_22] : memref<288x384xbf16, #tpu.memory_space<vmem>>, vector<256x384xbf16>
    %c2 = arith.constant 2 : index
    %c0_23 = arith.constant 0 : index
    %c0_24 = arith.constant 0 : index
    %26 = vector.load %arg2[%c2, %c0_23, %c0_24] : memref<3x384x128xbf16, #tpu.memory_space<vmem>>, vector<1x384x128xbf16>
    %27 = vector.shape_cast %26 : vector<1x384x128xbf16> to vector<384x128xbf16>
    %cst_25 = arith.constant dense<0.000000e+00> : vector<256x128xf32>
    %28 = tpu.matmul %25, %27, %cst_25 {dimension_numbers = #tpu.dot_dimension_numbers<[1], [0], [0], [1], [0, 0, 1, 1], [], []>} : vector<256x384xbf16>, vector<384x128xbf16>, vector<256x128xf32> -> vector<256x128xf32>
    %29 = arith.addf %24, %28 : vector<256x128xf32>
    %30 = vector.broadcast %13 : vector<1x128xf32> to vector<256x128xf32>
    %31 = arith.addf %29, %30 : vector<256x128xf32>
    %cst_26 = arith.constant 0.000000e+00 : f32
    %32 = vector.broadcast %cst_26 : f32 to vector<256x128xf32>
    %33 = arith.maximumf %31, %32 : vector<256x128xf32>
    %34 = arith.truncf %33 : vector<256x128xf32> to vector<256x128xbf16>
    %c0_27 = arith.constant 0 : index
    %c0_28 = arith.constant 0 : index
    %35 = vector.load %arg8[%c0_27, %c0_28] : memref<256x128xbf16, #tpu.memory_space<vmem>>, vector<256x128xbf16>
    tpu.vector_store %arg8[%c0_27, %c0_28], %34 {strides = array<i32>} : memref<256x128xbf16, #tpu.memory_space<vmem>>, vector<256x128xbf16>,
    %c0_29 = arith.constant 0 : index
    %c0_30 = arith.constant 0 : index
    %36 = vector.load %arg8[%c0_29, %c0_30] : memref<256x128xbf16, #tpu.memory_space<vmem>>, vector<256x128xbf16>
    %37 = vector.shape_cast %36 : vector<256x128xbf16> to vector<16x16x128xbf16>
    %cst_31 = arith.constant 0.000000e+00 : bf16
    %38 = vector.broadcast %cst_31 : bf16 to vector<16x1x128xbf16>
    %39 = vector.extract_strided_slice %37 {offsets = [0, 0, 0], sizes = [16, 15, 128], strides = [1, 1, 1]} : vector<16x16x128xbf16> to vector<16x15x128xbf16>
    %40 = tpu.concatenate %38, %39 in 1 : vector<16x1x128xbf16>, vector<16x15x128xbf16> -> vector<16x16x128xbf16>
    %41 = vector.extract_strided_slice %37 {offsets = [0, 1, 0], sizes = [16, 15, 128], strides = [1, 1, 1]} : vector<16x16x128xbf16> to vector<16x15x128xbf16>
    %42 = tpu.concatenate %41, %38 in 1 : vector<16x15x128xbf16>, vector<16x1x128xbf16> -> vector<16x16x128xbf16>
    %43 = tpu.concatenate %40, %37, %42 in 2 : vector<16x16x128xbf16>, vector<16x16x128xbf16>, vector<16x16x128xbf16> -> vector<16x16x384xbf16>
    %cst_32 = arith.constant 0.000000e+00 : bf16
    %44 = vector.broadcast %cst_32 : bf16 to vector<16x384xbf16>
    %c0_33 = arith.constant 0 : index
    %c0_34 = arith.constant 0 : index
    %45 = vector.load %arg9[%c0_33, %c0_34] : memref<288x384xbf16, #tpu.memory_space<vmem>>, vector<16x384xbf16>
    tpu.vector_store %arg9[%c0_33, %c0_34], %44 {strides = array<i32>} : memref<288x384xbf16, #tpu.memory_space<vmem>>, vector<16x384xbf16>,
    %c272_35 = arith.constant 272 : index
    %c0_36 = arith.constant 0 : index
    %46 = vector.load %arg9[%c272_35, %c0_36] : memref<288x384xbf16, #tpu.memory_space<vmem>>, vector<16x384xbf16>
    tpu.vector_store %arg9[%c272_35, %c0_36], %44 {strides = array<i32>} : memref<288x384xbf16, #tpu.memory_space<vmem>>, vector<16x384xbf16>,
    %47 = vector.shape_cast %43 : vector<16x16x384xbf16> to vector<256x384xbf16>
    %c16_37 = arith.constant 16 : index
    %c0_38 = arith.constant 0 : index
    %48 = vector.load %arg9[%c16_37, %c0_38] : memref<288x384xbf16, #tpu.memory_space<vmem>>, vector<256x384xbf16>
    tpu.vector_store %arg9[%c16_37, %c0_38], %47 {strides = array<i32>} : memref<288x384xbf16, #tpu.memory_space<vmem>>, vector<256x384xbf16>,
    %c0_39 = arith.constant 0 : index
    %c0_40 = arith.constant 0 : index
    %49 = vector.load %arg5[%c0_39, %c0_40] : memref<1x128xf32, #tpu.memory_space<vmem>>, vector<1x128xf32>
    %cst_41 = arith.constant 0.000000e+00 : f32
    %50 = vector.broadcast %cst_41 : f32 to vector<256x128xf32>
    %c0_42 = arith.constant 0 : index
    %c0_43 = arith.constant 0 : index
    %51 = vector.load %arg9[%c0_42, %c0_43] : memref<288x384xbf16, #tpu.memory_space<vmem>>, vector<256x384xbf16>
    %c0_44 = arith.constant 0 : index
    %c0_45 = arith.constant 0 : index
    %c0_46 = arith.constant 0 : index
    %52 = vector.load %arg4[%c0_44, %c0_45, %c0_46] : memref<3x384x128xbf16, #tpu.memory_space<vmem>>, vector<1x384x128xbf16>
    %53 = vector.shape_cast %52 : vector<1x384x128xbf16> to vector<384x128xbf16>
    %cst_47 = arith.constant dense<0.000000e+00> : vector<256x128xf32>
    %54 = tpu.matmul %51, %53, %cst_47 {dimension_numbers = #tpu.dot_dimension_numbers<[1], [0], [0], [1], [0, 0, 1, 1], [], []>} : vector<256x384xbf16>, vector<384x128xbf16>, vector<256x128xf32> -> vector<256x128xf32>
    %55 = arith.addf %50, %54 : vector<256x128xf32>
    %c16_48 = arith.constant 16 : index
    %c0_49 = arith.constant 0 : index
    %56 = vector.load %arg9[%c16_48, %c0_49] : memref<288x384xbf16, #tpu.memory_space<vmem>>, vector<256x384xbf16>
    %c1_50 = arith.constant 1 : index
    %c0_51 = arith.constant 0 : index
    %c0_52 = arith.constant 0 : index
    %57 = vector.load %arg4[%c1_50, %c0_51, %c0_52] : memref<3x384x128xbf16, #tpu.memory_space<vmem>>, vector<1x384x128xbf16>
    %58 = vector.shape_cast %57 : vector<1x384x128xbf16> to vector<384x128xbf16>
    %cst_53 = arith.constant dense<0.000000e+00> : vector<256x128xf32>
    %59 = tpu.matmul %56, %58, %cst_53 {dimension_numbers = #tpu.dot_dimension_numbers<[1], [0], [0], [1], [0, 0, 1, 1], [], []>} : vector<256x384xbf16>, vector<384x128xbf16>, vector<256x128xf32> -> vector<256x128xf32>
    %60 = arith.addf %55, %59 : vector<256x128xf32>
    %c32_54 = arith.constant 32 : index
    %c0_55 = arith.constant 0 : index
    %61 = vector.load %arg9[%c32_54, %c0_55] : memref<288x384xbf16, #tpu.memory_space<vmem>>, vector<256x384xbf16>
    %c2_56 = arith.constant 2 : index
    %c0_57 = arith.constant 0 : index
    %c0_58 = arith.constant 0 : index
    %62 = vector.load %arg4[%c2_56, %c0_57, %c0_58] : memref<3x384x128xbf16, #tpu.memory_space<vmem>>, vector<1x384x128xbf16>
    %63 = vector.shape_cast %62 : vector<1x384x128xbf16> to vector<384x128xbf16>
    %cst_59 = arith.constant dense<0.000000e+00> : vector<256x128xf32>
    %64 = tpu.matmul %61, %63, %cst_59 {dimension_numbers = #tpu.dot_dimension_numbers<[1], [0], [0], [1], [0, 0, 1, 1], [], []>} : vector<256x384xbf16>, vector<384x128xbf16>, vector<256x128xf32> -> vector<256x128xf32>
    %65 = arith.addf %60, %64 : vector<256x128xf32>
    %66 = vector.broadcast %49 : vector<1x128xf32> to vector<256x128xf32>
    %67 = arith.addf %65, %66 : vector<256x128xf32>
    %cst_60 = arith.constant 0.000000e+00 : f32
    %68 = vector.broadcast %cst_60 : f32 to vector<256x128xf32>
    %69 = arith.maximumf %67, %68 : vector<256x128xf32>
    %70 = arith.truncf %69 : vector<256x128xf32> to vector<256x128xbf16>
    %c0_61 = arith.constant 0 : index
    %c0_62 = arith.constant 0 : index
    %c0_63 = arith.constant 0 : index
    %71 = vector.load %arg6[%c0_61, %c0_62, %c0_63] : memref<1x256x128xbf16, #tpu.memory_space<vmem>>, vector<1x256x128xbf16>
    %72 = vector.shape_cast %71 : vector<1x256x128xbf16> to vector<256x128xbf16>
    %73 = vector.shape_cast %70 : vector<256x128xbf16> to vector<1x256x128xbf16>
    tpu.vector_store %arg6[%c0_61, %c0_62, %c0_63], %73 {strides = array<i32>} : memref<1x256x128xbf16, #tpu.memory_space<vmem>>, vector<1x256x128xbf16>,
    return
  }
  func.func @transform_0(%arg0: i32) -> (i32, i32, i32, i32) {
    %c0_i32 = arith.constant 0 : i32
    %c0_i32_0 = arith.constant 0 : i32
    %c0_i32_1 = arith.constant 0 : i32
    %c0_i32_2 = arith.constant 0 : i32
    return %arg0, %c0_i32, %c0_i32_0, %c0_i32_1 : i32, i32, i32, i32
  }
  func.func @transform_1(%arg0: i32) -> (i32, i32, i32) {
    %c0_i32 = arith.constant 0 : i32
    %c0_i32_0 = arith.constant 0 : i32
    %c0_i32_1 = arith.constant 0 : i32
    %c0_i32_2 = arith.constant 0 : i32
    return %c0_i32, %c0_i32_0, %c0_i32_1 : i32, i32, i32
  }
  func.func @transform_2(%arg0: i32) -> (i32, i32) {
    %c0_i32 = arith.constant 0 : i32
    %c0_i32_0 = arith.constant 0 : i32
    %c0_i32_1 = arith.constant 0 : i32
    return %c0_i32, %c0_i32_0 : i32, i32
  }
  func.func @transform_3(%arg0: i32) -> (i32, i32, i32) {
    %c0_i32 = arith.constant 0 : i32
    %c0_i32_0 = arith.constant 0 : i32
    %c0_i32_1 = arith.constant 0 : i32
    %c0_i32_2 = arith.constant 0 : i32
    return %c0_i32, %c0_i32_0, %c0_i32_1 : i32, i32, i32
  }
  func.func @transform_4(%arg0: i32) -> (i32, i32) {
    %c0_i32 = arith.constant 0 : i32
    %c0_i32_0 = arith.constant 0 : i32
    %c0_i32_1 = arith.constant 0 : i32
    return %c0_i32, %c0_i32_0 : i32, i32
  }
  func.func @transform_5(%arg0: i32) -> (i32, i32, i32) {
    %c0_i32 = arith.constant 0 : i32
    %c0_i32_0 = arith.constant 0 : i32
    %c0_i32_1 = arith.constant 0 : i32
    return %arg0, %c0_i32, %c0_i32_0 : i32, i32, i32
  }
}

</mosaic_0001>

<llo_original>
// kernel: tpu_custom_call.1
$region0: #{tpu_custom_call.1}
  #allocation0 [shape = 'u32[]', space=smem, size = 0x4, offset = 0x4, fixed_abs, tag = 'smem constant byte address 0x4 - core index']
  #allocation1 [shape = 'u32[144,128]{1,0:T(1,128)}', space=vmem, size = 0x12000, scoped, tag = 'internal scratch']
  #allocation2 [shape = 'bf16[288,384]{1,0:T(16,128)(2,1)}', space=vmem, size = 0x36000, scoped, tag = 'scratch operand']
  #allocation3 [shape = 'bf16[256,128]{1,0:T(16,128)(2,1)}', space=vmem, size = 0x10000, scoped, tag = 'scratch operand']
  #allocation4 [shape = 'bf16[288,384]{1,0:T(16,128)(2,1)}', space=vmem, size = 0x36000, scoped, tag = 'scratch operand']
  %s0 = inlined_call_operand.hbm [shape: bf16[2,16,16,128], index: 0, kind: input, shape index: {}]
  %s1 = inlined_call_operand.hbm [shape: bf16[3,384,128], index: 1, kind: input, shape index: {}]
  %s2 = inlined_call_operand.vmem [shape: f32[1,128], index: 2, kind: input, shape index: {}]
  %s3 = inlined_call_operand.hbm [shape: bf16[3,384,128], index: 3, kind: input, shape index: {}]
  %s4 = inlined_call_operand.vmem [shape: f32[1,128], index: 4, kind: input, shape index: {}]
  %s5 = inlined_call_operand.hbm [shape: bf16[2,256,128], index: 5, kind: output, shape index: {}]
  %s6 = sld [smem:[#allocation0]]
  $region65: #{tpu_custom_call.1} parent=0
    _
  %s8 = ssub.s32 1, %s6
  %s9 = scalar_select 0, %s8, %s6
  $region1: #{tpu_custom_call.1} parent=0
    #allocation5 [shape = 'u8[131072]{0}', space=vmem, size = 0x20000, scoped, tag = 'input window, operand 0']
    #allocation6 [shape = 's32[2]{0}', space=sflag, size = 0x8, scoped, tag = 'scoped memory for tpu_custom_call.1']
    #allocation7 [shape = 's32[2]{0}', space=sflag, size = 0x8, scoped, tag = 'scoped memory for tpu_custom_call.1']
    #allocation8 [shape = 'u8[294912]{0}', space=vmem, size = 0x48000, scoped, tag = 'input window, operand 1, single buffered']
    #allocation9 [shape = 's32[1]{0}', space=sflag, size = 0x4, scoped, tag = 'scoped memory for tpu_custom_call.1']
    #allocation10 [shape = 'u8[294912]{0}', space=vmem, size = 0x48000, scoped, tag = 'input window, operand 3, single buffered']
    #allocation11 [shape = 'u8[131072]{0}', space=vmem, size = 0x20000, scoped, tag = 'output window, operand 0']
    %10 = vsyncpa [#allocation6], 0
    %s11 = scalar_lea.sflag [#allocation6], 1
    %12 = vsyncpa %s11, 0
    %13 = vsyncpa [#allocation9], 0
    %14 = vsyncpa [#allocation7], 0
    %s15 = scalar_lea.sflag [#allocation7], 1
    %16 = vsyncpa %s15, 0
    loop: start=0, step=1, limit=4
    $region2: #{tpu_custom_call.1} parent=1 // loop_pre_header
      _
    $region3: #{tpu_custom_call.1} parent=1 // loop_header
      %s18 = sphi 0, %s22
      %p19 = scmp.ge.s32.totalorder %s18, 4
      %s28 = sphi 0, %s30
      %s31 = sphi 0, %s28
      %s32 = sphi 0, %s31
      %s48 = sphi 0, %s32
      %s52 = sphi 0, %s52
      %s54 = sphi 0, %s52
      %s55 = sphi 0, %s54
      %s69 = sphi 0, %s55
      %s73 = sphi 0, %s73
      %s75 = sphi 0, %s73
      %s76 = sphi 0, %s75
      %s90 = sphi 0, %s76
      %s94 = sphi 0, %s94
      %s96 = sphi 0, %s94
      %s97 = sphi 0, %s96
      %s111 = sphi 0, %s97
      %s115 = sphi 0, %s115
      %s117 = sphi 0, %s115
      %s118 = sphi 0, %s117
      %s132 = sphi 0, %s118
      %s138 = sphi 0, %s140
      %s141 = sphi 0, %s138
      %s142 = sphi 0, %s141
      %s158 = sphi 0, %s142
    $region4: #{tpu_custom_call.1} parent=1 // loop_header_branch
      %21 = sbr.rel (%p19) target = $region8
    $region5: #{tpu_custom_call.1} parent=1 // loop_body
      %s23 = ssub.s32 %s18, 1
      %s24 = ssub.s32 %s18, 2
      %s25 = sadd.s32 %s18, 1
      %s26 = ssub.s32 %s18, %s25
      %p27 = scmp.eq.s32.totalorder %s26, 0
      %s29 = sadd.s32 %s28, 1
      %s30 = scalar_select %p27, %s28, %s29
      %p33 = pneg %p27
      %p34 = scmp.eq.s32.totalorder %s18, 1
      %p35 = por %p33, %p34
      %p36 = scmp.ne.s32.totalorder %s28, %s31
      %p37 = scmp.eq.s32.totalorder %s18, 0
      %p38 = por %p36, %p37
      %p39 = scmp.ne.s32.totalorder %s28, %s31
      %p40 = scmp.eq.s32.totalorder %s23, 1
      %p41 = por %p39, %p40
      %p42 = scmp.ne.s32.totalorder %s31, %s32
      %p43 = scmp.eq.s32.totalorder %s23, 0
      %p44 = por %p42, %p43
      %p45 = scmp.ne.s32.totalorder %s31, %s32
      %p46 = scmp.eq.s32.totalorder %s24, 1
      %p47 = por %p45, %p46
      %p49 = scmp.ne.s32.totalorder %s32, %s48
      %p50 = scmp.eq.s32.totalorder %s24, 0
      %p51 = por %p49, %p50
      %s53 = sadd.s32 %s52, 1
      %p56 = scmp.eq.s32.totalorder %s18, 1
      %p57 = scmp.ne.s32.totalorder %s52, %s54
      %p58 = scmp.eq.s32.totalorder %s18, 0
      %p59 = por %p57, %p58
      %p60 = scmp.ne.s32.totalorder %s52, %s54
      %p61 = scmp.eq.s32.totalorder %s23, 1
      %p62 = por %p60, %p61
      %p63 = scmp.ne.s32.totalorder %s54, %s55
      %p64 = scmp.eq.s32.totalorder %s23, 0
      %p65 = por %p63, %p64
      %p66 = scmp.ne.s32.totalorder %s54, %s55
      %p67 = scmp.eq.s32.totalorder %s24, 1
      %p68 = por %p66, %p67
      %p70 = scmp.ne.s32.totalorder %s55, %s69
      %p71 = scmp.eq.s32.totalorder %s24, 0
      %p72 = por %p70, %p71
      %s74 = sadd.s32 %s73, 1
      %p77 = scmp.eq.s32.totalorder %s18, 1
      %p78 = scmp.ne.s32.totalorder %s73, %s75
      %p79 = scmp.eq.s32.totalorder %s18, 0
      %p80 = por %p78, %p79
      %p81 = scmp.ne.s32.totalorder %s73, %s75
      %p82 = scmp.eq.s32.totalorder %s23, 1
      %p83 = por %p81, %p82
      %p84 = scmp.ne.s32.totalorder %s75, %s76
      %p85 = scmp.eq.s32.totalorder %s23, 0
      %p86 = por %p84, %p85
      %p87 = scmp.ne.s32.totalorder %s75, %s76
      %p88 = scmp.eq.s32.totalorder %s24, 1
      %p89 = por %p87, %p88
      %p91 = scmp.ne.s32.totalorder %s76, %s90
      %p92 = scmp.eq.s32.totalorder %s24, 0
      %p93 = por %p91, %p92
      %s95 = sadd.s32 %s94, 1
      %p98 = scmp.eq.s32.totalorder %s18, 1
      %p99 = scmp.ne.s32.totalorder %s94, %s96
      %p100 = scmp.eq.s32.totalorder %s18, 0
      %p101 = por %p99, %p100
      %p102 = scmp.ne.s32.totalorder %s94, %s96
      %p103 = scmp.eq.s32.totalorder %s23, 1
      %p104 = por %p102, %p103
      %p105 = scmp.ne.s32.totalorder %s96, %s97
      %p106 = scmp.eq.s32.totalorder %s23, 0
      %p107 = por %p105, %p106
      %p108 = scmp.ne.s32.totalorder %s96, %s97
      %p109 = scmp.eq.s32.totalorder %s24, 1
      %p110 = por %p108, %p109
      %p112 = scmp.ne.s32.totalorder %s97, %s111
      %p113 = scmp.eq.s32.totalorder %s24, 0
      %p114 = por %p112, %p113
      %s116 = sadd.s32 %s115, 1
      %p119 = scmp.eq.s32.totalorder %s18, 1
      %p120 = scmp.ne.s32.totalorder %s115, %s117
      %p121 = scmp.eq.s32.totalorder %s18, 0
      %p122 = por %p120, %p121
      %p123 = scmp.ne.s32.totalorder %s115, %s117
      %p124 = scmp.eq.s32.totalorder %s23, 1
      %p125 = por %p123, %p124
      %p126 = scmp.ne.s32.totalorder %s117, %s118
      %p127 = scmp.eq.s32.totalorder %s23, 0
      %p128 = por %p126, %p127
      %p129 = scmp.ne.s32.totalorder %s117, %s118
      %p130 = scmp.eq.s32.totalorder %s24, 1
      %p131 = por %p129, %p130
      %p133 = scmp.ne.s32.totalorder %s118, %s132
      %p134 = scmp.eq.s32.totalorder %s24, 0
      %p135 = por %p133, %p134
      %s136 = ssub.s32 %s18, %s25
      %p137 = scmp.eq.s32.totalorder %s136, 0
      %s139 = sadd.s32 %s138, 1
      %s140 = scalar_select %p137, %s138, %s139
      %p143 = pneg %p137
      %p144 = scmp.eq.s32.totalorder %s18, 1
      %p145 = por %p143, %p144
      %p146 = scmp.ne.s32.totalorder %s138, %s141
      %p147 = scmp.eq.s32.totalorder %s18, 0
      %p148 = por %p146, %p147
      %p149 = scmp.ne.s32.totalorder %s138, %s141
      %p150 = scmp.eq.s32.totalorder %s23, 1
      %p151 = por %p149, %p150
      %p152 = scmp.ne.s32.totalorder %s141, %s142
      %p153 = scmp.eq.s32.totalorder %s23, 0
      %p154 = por %p152, %p153
      %p155 = scmp.ne.s32.totalorder %s141, %s142
      %p156 = scmp.eq.s32.totalorder %s24, 1
      %p157 = por %p155, %p156
      %p159 = scmp.ne.s32.totalorder %s142, %s158
      %p160 = scmp.eq.s32.totalorder %s24, 0
      %p161 = por %p159, %p160
      %p162 = scmp.le.s32.totalorder 1, %s18
      %p163 = scmp.lt.s32.totalorder %s18, 3
      %p164 = pnand %p162, %p163
      %p165 = pneg %p164
      // Predicated region
      $region9: #{tpu_custom_call.1} parent=5 // pred_check
        _
      $region10: #{tpu_custom_call.1} parent=5 // pred_check_branch
        %167 = sbr.rel (%p164) target = $region12
      $region11: #{tpu_custom_call.1} parent=5 // pred_region
        %s168 = ssub.s32 %s18, 1
        // Predicated region
        $region13: #{tpu_custom_call.1} parent=11 // pred_check
          %p169 = pneg %p65
        $region14: #{tpu_custom_call.1} parent=11 // pred_check_branch
          %171 = sbr.rel (%p169) target = $region16
        $region15: #{tpu_custom_call.1} parent=11 // pred_region
          %s173 = ssub.s32 9216, 9216
          %174 = vsyncadd [#allocation9], %s173
          %s175 = sshll.u32 [#allocation8], 4
          %s176 = int_to_ptr.vmem [resolvable:$true] %s175
          %181 = dma.hbm_to_vmem [thread:$0]  %s1, 9216, %s176, [#allocation9], 64, 64, 4
        $region16: #{tpu_custom_call.1} parent=11 // pred_fallthru
          _
        // Predicated region
        $region17: #{tpu_custom_call.1} parent=11 // pred_check
          %p182 = pneg %p86
        $region18: #{tpu_custom_call.1} parent=11 // pred_check_branch
          %184 = sbr.rel (%p182) target = $region20
        $region19: #{tpu_custom_call.1} parent=11 // pred_region
          _
        $region20: #{tpu_custom_call.1} parent=11 // pred_fallthru
          _
        // Predicated region
        $region21: #{tpu_custom_call.1} parent=11 // pred_check
          %p185 = pneg %p107
        $region22: #{tpu_custom_call.1} parent=11 // pred_check_branch
          %187 = sbr.rel (%p185) target = $region24
        $region23: #{tpu_custom_call.1} parent=11 // pred_region
          %s189 = ssub.s32 9216, 9216
          %190 = vsyncadd [#allocation9], %s189
          %s191 = sshll.u32 [#allocation10], 4
          %s192 = int_to_ptr.vmem [resolvable:$true] %s191
          %197 = dma.hbm_to_vmem [thread:$0]  %s3, 9216, %s192, [#allocation9], 64, 64, 4
        $region24: #{tpu_custom_call.1} parent=11 // pred_fallthru
          _
        // Predicated region
        $region25: #{tpu_custom_call.1} parent=11 // pred_check
          %p198 = pneg %p128
        $region26: #{tpu_custom_call.1} parent=11 // pred_check_branch
          %200 = sbr.rel (%p198) target = $region28
        $region27: #{tpu_custom_call.1} parent=11 // pred_region
          _
        $region28: #{tpu_custom_call.1} parent=11 // pred_fallthru
          _
      $region12: #{tpu_custom_call.1} parent=5 // pred_fallthru
        _
      %p201 = scmp.lt.s32.totalorder %s18, 2
      // Predicated region
      $region29: #{tpu_custom_call.1} parent=5 // pred_check
        %p202 = pneg %p201
      $region30: #{tpu_custom_call.1} parent=5 // pred_check_branch
        %204 = sbr.rel (%p202) target = $region32
      $region31: #{tpu_custom_call.1} parent=5 // pred_region
        // Predicated region
        $region33: #{tpu_custom_call.1} parent=31 // pred_check
          %p205 = pneg %p38
        $region34: #{tpu_custom_call.1} parent=31 // pred_check_branch
          %207 = sbr.rel (%p205) target = $region36
        $region35: #{tpu_custom_call.1} parent=31 // pred_region
          %s208 = sand.u32 %s28, 1
          %s209 = scalar_lea.sflag [#allocation6], %s208
          %s210 = sand.u32 %s28, 1
          %s211 = smul.addr %s210, 128
          %s212 = scalar_lea.vmem [#allocation5], %s211
          %s214 = ssub.s32 2048, 2048
          %215 = vsyncadd %s209, %s214
          %s216 = smul.addr %s18, 32
          %s217 = smul.addr %s216, 64
          %s218 = scalar_lea.hbm %s0, %s217
          %s219 = sshll.u32 %s212, 4
          %s220 = int_to_ptr.vmem [resolvable:$true] %s219
          %225 = dma.hbm_to_vmem [thread:$0]  %s218, 2048, %s220, %s209, 64, 64, 4
        $region36: #{tpu_custom_call.1} parent=31 // pred_fallthru
          _
      $region32: #{tpu_custom_call.1} parent=5 // pred_fallthru
        _
      %p226 = scmp.le.s32.totalorder 1, %s18
      %p227 = scmp.lt.s32.totalorder %s18, 3
      %p228 = pnand %p226, %p227
      %p229 = pneg %p228
      // Predicated region
      $region37: #{tpu_custom_call.1} parent=5 // pred_check
        _
      $region38: #{tpu_custom_call.1} parent=5 // pred_check_branch
        %231 = sbr.rel (%p228) target = $region40
      $region39: #{tpu_custom_call.1} parent=5 // pred_region
        %s232 = ssub.s32 %s18, 1
        %s233 = sand.u32 %s31, 1
        %s234 = scalar_lea.sflag [#allocation6], %s233
        %s235 = sand.u32 %s31, 1
        %s236 = smul.addr %s235, 128
        %s237 = scalar_lea.vmem [#allocation5], %s236
        // Predicated region
        $region41: #{tpu_custom_call.1} parent=39 // pred_check
          %p238 = pneg %p44
        $region42: #{tpu_custom_call.1} parent=39 // pred_check_branch
          %240 = sbr.rel (%p238) target = $region44
        $region43: #{tpu_custom_call.1} parent=39 // pred_region
          %241 = dma.done %s234, 2048
        $region44: #{tpu_custom_call.1} parent=39 // pred_fallthru
          _
        // Predicated region
        $region45: #{tpu_custom_call.1} parent=39 // pred_check
          %p242 = pneg %p65
        $region46: #{tpu_custom_call.1} parent=39 // pred_check_branch
          %244 = sbr.rel (%p242) target = $region48
        $region47: #{tpu_custom_call.1} parent=39 // pred_region
          %245 = dma.done [#allocation9], 9216
        $region48: #{tpu_custom_call.1} parent=39 // pred_fallthru
          _
        // Predicated region
        $region49: #{tpu_custom_call.1} parent=39 // pred_check
          %p246 = pneg %p107
        $region50: #{tpu_custom_call.1} parent=39 // pred_check_branch
          %248 = sbr.rel (%p246) target = $region52
        $region51: #{tpu_custom_call.1} parent=39 // pred_region
          %249 = dma.done [#allocation9], 9216
        $region52: #{tpu_custom_call.1} parent=39 // pred_fallthru
          _
        %s250 = sand.u32 %s31, 1
        %s251 = scalar_lea.sflag [#allocation6], %s250
        %s252 = sand.u32 %s31, 1
        %s253 = smul.addr %s252, 128
        %s254 = scalar_lea.vmem [#allocation5], %s253
        %p255 = pneg %p44
        %p256 = pneg %p41
        %p257 = pneg %p65
        %p258 = pneg %p62
        %p259 = pneg %p86
        %p260 = pneg %p83
        %p261 = pneg %p107
        %p262 = pneg %p104
        %p263 = pneg %p128
        %p264 = pneg %p125
        %p265 = pneg %p154
        %p266 = pneg %p151
        %s267 = sand.u32 %s141, 1
        %s268 = scalar_lea.sflag [#allocation7], %s267
        %s269 = sand.u32 %s141, 1
        %s270 = smul.addr %s269, 128
        %s271 = scalar_lea.vmem [#allocation11], %s270
        %v273 = vld [vmem:[%s237] sm:$0xf]
        %v274 = vld [vmem:[%s237 + $0x4] sm:$0xf]
        %v275 = vld [vmem:[%s237 + $0x8] sm:$0xf]
        %v276 = vld [vmem:[%s237 + $0xc] sm:$0xf]
        %v277 = vld [vmem:[%s237 + $0x10] sm:$0xf]
        %v278 = vld [vmem:[%s237 + $0x14] sm:$0xf]
        %v279 = vld [vmem:[%s237 + $0x18] sm:$0xf]
        %v280 = vld [vmem:[%s237 + $0x1c] sm:$0xf]
        %v281 = vld [vmem:[%s237 + $0x20] sm:$0xf]
        %v282 = vld [vmem:[%s237 + $0x24] sm:$0xf]
        %v283 = vld [vmem:[%s237 + $0x28] sm:$0xf]
        %v284 = vld [vmem:[%s237 + $0x2c] sm:$0xf]
        %v285 = vld [vmem:[%s237 + $0x30] sm:$0xf]
        %v286 = vld [vmem:[%s237 + $0x34] sm:$0xf]
        %v287 = vld [vmem:[%s237 + $0x38] sm:$0xf]
        %v288 = vld [vmem:[%s237 + $0x3c] sm:$0xf]
        %v289 = vld [vmem:[%s237 + $0x40] sm:$0xf]
        %v290 = vld [vmem:[%s237 + $0x44] sm:$0xf]
        %v291 = vld [vmem:[%s237 + $0x48] sm:$0xf]
        %v292 = vld [vmem:[%s237 + $0x4c] sm:$0xf]
        %v293 = vld [vmem:[%s237 + $0x50] sm:$0xf]
        %v294 = vld [vmem:[%s237 + $0x54] sm:$0xf]
        %v295 = vld [vmem:[%s237 + $0x58] sm:$0xf]
        %v296 = vld [vmem:[%s237 + $0x5c] sm:$0xf]
        %v297 = vld [vmem:[%s237 + $0x60] sm:$0xf]
        %v298 = vld [vmem:[%s237 + $0x64] sm:$0xf]
        %v299 = vld [vmem:[%s237 + $0x68] sm:$0xf]
        %v300 = vld [vmem:[%s237 + $0x6c] sm:$0xf]
        %v301 = vld [vmem:[%s237 + $0x70] sm:$0xf]
        %v302 = vld [vmem:[%s237 + $0x74] sm:$0xf]
        %v303 = vld [vmem:[%s237 + $0x78] sm:$0xf]
        %v304 = vld [vmem:[%s237 + $0x7c] sm:$0xf]
        %v337 = vunpack.c.l.b16 %v273
        %v338 = vunpack.c.l.b16 %v274
        %v339 = vunpack.c.l.b16 %v275
        %v340 = vunpack.c.l.b16 %v276
        %v341 = vunpack.c.l.b16 %v277
        %v342 = vunpack.c.l.b16 %v278
        %v343 = vunpack.c.l.b16 %v279
        %v344 = vunpack.c.l.b16 %v280
        %v345 = vunpack.c.l.b16 %v281
        %v346 = vunpack.c.l.b16 %v282
        %v347 = vunpack.c.l.b16 %v283
        %v348 = vunpack.c.l.b16 %v284
        %v349 = vunpack.c.l.b16 %v285
        %v350 = vunpack.c.l.b16 %v286
        %v351 = vunpack.c.l.b16 %v287
        %v352 = vunpack.c.l.b16 %v288
        %v353 = vunpack.c.l.b16 %v289
        %v354 = vunpack.c.l.b16 %v290
        %v355 = vunpack.c.l.b16 %v291
        %v356 = vunpack.c.l.b16 %v292
        %v357 = vunpack.c.l.b16 %v293
        %v358 = vunpack.c.l.b16 %v294
        %v359 = vunpack.c.l.b16 %v295
        %v360 = vunpack.c.l.b16 %v296
        %v361 = vunpack.c.l.b16 %v297
        %v362 = vunpack.c.l.b16 %v298
        %v363 = vunpack.c.l.b16 %v299
        %v364 = vunpack.c.l.b16 %v300
        %v365 = vunpack.c.l.b16 %v301
        %v366 = vunpack.c.l.b16 %v302
        %v367 = vunpack.c.l.b16 %v303
        %v368 = vunpack.c.l.b16 %v304
        %v369 = vpack.c.b16 %v338, %v337
        %v370 = vpack.c.b16 %v340, %v339
        %v371 = vpack.c.b16 %v342, %v341
        %v372 = vpack.c.b16 %v344, %v343
        %v373 = vpack.c.b16 %v346, %v345
        %v374 = vpack.c.b16 %v348, %v347
        %v375 = vpack.c.b16 %v350, %v349
        %v376 = vpack.c.b16 %v352, %v351
        %v377 = vpack.c.b16 %v354, %v353
        %v378 = vpack.c.b16 %v356, %v355
        %v379 = vpack.c.b16 %v358, %v357
        %v380 = vpack.c.b16 %v360, %v359
        %v381 = vpack.c.b16 %v362, %v361
        %v382 = vpack.c.b16 %v364, %v363
        %v383 = vpack.c.b16 %v366, %v365
        %v384 = vpack.c.b16 %v368, %v367
        %v386 = vshrl.u32 %v369, 16
        %v388 = vrot.slane %v386, 7
        %v389 = vshll.u32 %v369, 16
        %v391 = vor.u32 %v388, %v389
        %v393 = vshrl.u32 %v370, 16
        %v395 = vrot.slane %v393, 7
        %v396 = vshll.u32 %v370, 16
        %v398 = vor.u32 %v395, %v396
        %v400 = vshrl.u32 %v371, 16
        %v402 = vrot.slane %v400, 7
        %v403 = vshll.u32 %v371, 16
        %v405 = vor.u32 %v402, %v403
        %v407 = vshrl.u32 %v372, 16
        %v409 = vrot.slane %v407, 7
        %v410 = vshll.u32 %v372, 16
        %v412 = vor.u32 %v409, %v410
        %v414 = vshrl.u32 %v373, 16
        %v416 = vrot.slane %v414, 7
        %v417 = vshll.u32 %v373, 16
        %v419 = vor.u32 %v416, %v417
        %v421 = vshrl.u32 %v374, 16
        %v423 = vrot.slane %v421, 7
        %v424 = vshll.u32 %v374, 16
        %v426 = vor.u32 %v423, %v424
        %v428 = vshrl.u32 %v375, 16
        %v430 = vrot.slane %v428, 7
        %v431 = vshll.u32 %v375, 16
        %v433 = vor.u32 %v430, %v431
        %v435 = vshrl.u32 %v376, 16
        %v437 = vrot.slane %v435, 7
        %v438 = vshll.u32 %v376, 16
        %v440 = vor.u32 %v437, %v438
        %v442 = vshrl.u32 %v377, 16
        %v444 = vrot.slane %v442, 7
        %v445 = vshll.u32 %v377, 16
        %v447 = vor.u32 %v444, %v445
        %v449 = vshrl.u32 %v378, 16
        %v451 = vrot.slane %v449, 7
        %v452 = vshll.u32 %v378, 16
        %v454 = vor.u32 %v451, %v452
        %v456 = vshrl.u32 %v379, 16
        %v458 = vrot.slane %v456, 7
        %v459 = vshll.u32 %v379, 16
        %v461 = vor.u32 %v458, %v459
        %v463 = vshrl.u32 %v380, 16
        %v465 = vrot.slane %v463, 7
        %v466 = vshll.u32 %v380, 16
        %v468 = vor.u32 %v465, %v466
        %v470 = vshrl.u32 %v381, 16
        %v472 = vrot.slane %v470, 7
        %v473 = vshll.u32 %v381, 16
        %v475 = vor.u32 %v472, %v473
        %v477 = vshrl.u32 %v382, 16
        %v479 = vrot.slane %v477, 7
        %v480 = vshll.u32 %v382, 16
        %v482 = vor.u32 %v479, %v480
        %v484 = vshrl.u32 %v383, 16
        %v486 = vrot.slane %v484, 7
        %v487 = vshll.u32 %v383, 16
        %v489 = vor.u32 %v486, %v487
        %v491 = vshrl.u32 %v384, 16
        %v493 = vrot.slane %v491, 7
        %v494 = vshll.u32 %v384, 16
        %v496 = vor.u32 %v493, %v494
        %vm513 = vcmask 1040384
        %vm514 = vsmask.f32 256
        %vm515 = vmand %vm513, %vm514
        %v516 = vsel %vm515, 0, %v391
        %v517 = vsel %vm515, 0, %v398
        %v518 = vsel %vm515, 0, %v405
        %v519 = vsel %vm515, 0, %v412
        %v520 = vsel %vm515, 0, %v419
        %v521 = vsel %vm515, 0, %v426
        %v522 = vsel %vm515, 0, %v433
        %v523 = vsel %vm515, 0, %v440
        %v524 = vsel %vm515, 0, %v447
        %v525 = vsel %vm515, 0, %v454
        %v526 = vsel %vm515, 0, %v461
        %v527 = vsel %vm515, 0, %v468
        %v528 = vsel %vm515, 0, %v475
        %v529 = vsel %vm515, 0, %v482
        %v530 = vsel %vm515, 0, %v489
        %v531 = vsel %vm515, 0, %v496
        %v532 = vrot.slane %v389, 1
        %v533 = vor.u32 %v386, %v532
        %v534 = vrot.slane %v396, 1
        %v535 = vor.u32 %v393, %v534
        %v536 = vrot.slane %v403, 1
        %v537 = vor.u32 %v400, %v536
        %v538 = vrot.slane %v410, 1
        %v539 = vor.u32 %v407, %v538
        %v540 = vrot.slane %v417, 1
        %v541 = vor.u32 %v414, %v540
        %v542 = vrot.slane %v424, 1
        %v543 = vor.u32 %v421, %v542
        %v544 = vrot.slane %v431, 1
        %v545 = vor.u32 %v428, %v544
        %v546 = vrot.slane %v438, 1
        %v547 = vor.u32 %v435, %v546
        %v548 = vrot.slane %v445, 1
        %v549 = vor.u32 %v442, %v548
        %v550 = vrot.slane %v452, 1
        %v551 = vor.u32 %v449, %v550
        %v552 = vrot.slane %v459, 1
        %v553 = vor.u32 %v456, %v552
        %v554 = vrot.slane %v466, 1
        %v555 = vor.u32 %v463, %v554
        %v556 = vrot.slane %v473, 1
        %v557 = vor.u32 %v470, %v556
        %v558 = vrot.slane %v480, 1
        %v559 = vor.u32 %v477, %v558
        %v560 = vrot.slane %v487, 1
        %v561 = vor.u32 %v484, %v560
        %v562 = vrot.slane %v494, 1
        %v563 = vor.u32 %v491, %v562
        %vm580 = vcmask 1047552
        %vm581 = vsmask.f32 7424
        %vm582 = vmand %vm580, %vm581
        %v583 = vsel %vm582, %v533, 0
        %v584 = vsel %vm582, %v535, 0
        %v585 = vsel %vm582, %v537, 0
        %v586 = vsel %vm582, %v539, 0
        %v587 = vsel %vm582, %v541, 0
        %v588 = vsel %vm582, %v543, 0
        %v589 = vsel %vm582, %v545, 0
        %v590 = vsel %vm582, %v547, 0
        %v591 = vsel %vm582, %v549, 0
        %v592 = vsel %vm582, %v551, 0
        %v593 = vsel %vm582, %v553, 0
        %v594 = vsel %vm582, %v555, 0
        %v595 = vsel %vm582, %v557, 0
        %v596 = vsel %vm582, %v559, 0
        %v597 = vsel %vm582, %v561, 0
        %v598 = vsel %vm582, %v563, 0
        %615 = vst [vmem:[#allocation2] sm:$0xff] 0
        %616 = vst [vmem:[#allocation2 + $0x8] sm:$0xff] 0
        %617 = vst [vmem:[#allocation2 + $0x10] sm:$0xff] 0
        %618 = vst [vmem:[#allocation2 + $0x198] sm:$0xff] 0
        %619 = vst [vmem:[#allocation2 + $0x1a0] sm:$0xff] 0
        %620 = vst [vmem:[#allocation2 + $0x1a8] sm:$0xff] 0
        %621 = vst [vmem:[#allocation2 + $0x18] sm:$0xff] %v516
        %622 = vst [vmem:[#allocation2 + $0x20] sm:$0xff] %v369
        %623 = vst [vmem:[#allocation2 + $0x28] sm:$0xff] %v583
        %624 = vst [vmem:[#allocation2 + $0x30] sm:$0xff] %v517
        %625 = vst [vmem:[#allocation2 + $0x38] sm:$0xff] %v370
        %626 = vst [vmem:[#allocation2 + $0x40] sm:$0xff] %v584
        %627 = vst [vmem:[#allocation2 + $0x48] sm:$0xff] %v518
        %628 = vst [vmem:[#allocation2 + $0x50] sm:$0xff] %v371
        %629 = vst [vmem:[#allocation2 + $0x58] sm:$0xff] %v585
        %630 = vst [vmem:[#allocation2 + $0x60] sm:$0xff] %v519
        %631 = vst [vmem:[#allocation2 + $0x68] sm:$0xff] %v372
        %632 = vst [vmem:[#allocation2 + $0x70] sm:$0xff] %v586
        %633 = vst [vmem:[#allocation2 + $0x78] sm:$0xff] %v520
        %634 = vst [vmem:[#allocation2 + $0x80] sm:$0xff] %v373
        %635 = vst [vmem:[#allocation2 + $0x88] sm:$0xff] %v587
        %636 = vst [vmem:[#allocation2 + $0x90] sm:$0xff] %v521
        %637 = vst [vmem:[#allocation2 + $0x98] sm:$0xff] %v374
        %638 = vst [vmem:[#allocation2 + $0xa0] sm:$0xff] %v588
        %639 = vst [vmem:[#allocation2 + $0xa8] sm:$0xff] %v522
        %640 = vst [vmem:[#allocation2 + $0xb0] sm:$0xff] %v375
        %641 = vst [vmem:[#allocation2 + $0xb8] sm:$0xff] %v589
        %642 = vst [vmem:[#allocation2 + $0xc0] sm:$0xff] %v523
        %643 = vst [vmem:[#allocation2 + $0xc8] sm:$0xff] %v376
        %644 = vst [vmem:[#allocation2 + $0xd0] sm:$0xff] %v590
        %645 = vst [vmem:[#allocation2 + $0xd8] sm:$0xff] %v524
        %646 = vst [vmem:[#allocation2 + $0xe0] sm:$0xff] %v377
        %647 = vst [vmem:[#allocation2 + $0xe8] sm:$0xff] %v591
        %648 = vst [vmem:[#allocation2 + $0xf0] sm:$0xff] %v525
        %649 = vst [vmem:[#allocation2 + $0xf8] sm:$0xff] %v378
        %650 = vst [vmem:[#allocation2 + $0x100] sm:$0xff] %v592
        %651 = vst [vmem:[#allocation2 + $0x108] sm:$0xff] %v526
        %652 = vst [vmem:[#allocation2 + $0x110] sm:$0xff] %v379
        %653 = vst [vmem:[#allocation2 + $0x118] sm:$0xff] %v593
        %654 = vst [vmem:[#allocation2 + $0x120] sm:$0xff] %v527
        %655 = vst [vmem:[#allocation2 + $0x128] sm:$0xff] %v380
        %656 = vst [vmem:[#allocation2 + $0x130] sm:$0xff] %v594
        %657 = vst [vmem:[#allocation2 + $0x138] sm:$0xff] %v528
        %658 = vst [vmem:[#allocation2 + $0x140] sm:$0xff] %v381
        %659 = vst [vmem:[#allocation2 + $0x148] sm:$0xff] %v595
        %660 = vst [vmem:[#allocation2 + $0x150] sm:$0xff] %v529
        %661 = vst [vmem:[#allocation2 + $0x158] sm:$0xff] %v382
        %662 = vst [vmem:[#allocation2 + $0x160] sm:$0xff] %v596
        %663 = vst [vmem:[#allocation2 + $0x168] sm:$0xff] %v530
        %664 = vst [vmem:[#allocation2 + $0x170] sm:$0xff] %v383
        %665 = vst [vmem:[#allocation2 + $0x178] sm:$0xff] %v597
        %666 = vst [vmem:[#allocation2 + $0x180] sm:$0xff] %v531
        %667 = vst [vmem:[#allocation2 + $0x188] sm:$0xff] %v384
        %668 = vst [vmem:[#allocation2 + $0x190] sm:$0xff] %v598
        %v669 = vld [vmem:[%s2] sm:$0x1]
        %v670 = vld [vmem:[#allocation2] sm:$0xff]
        %v671 = vld [vmem:[#allocation2 + $0x8] sm:$0xff]
        %v672 = vld [vmem:[#allocation2 + $0x10] sm:$0xff]
        %v673 = vld [vmem:[#allocation2 + $0x18] sm:$0xff]
        %v674 = vld [vmem:[#allocation2 + $0x20] sm:$0xff]
        %v675 = vld [vmem:[#allocation2 + $0x28] sm:$0xff]
        %v676 = vld [vmem:[#allocation2 + $0x30] sm:$0xff]
        %v677 = vld [vmem:[#allocation2 + $0x38] sm:$0xff]
        %v678 = vld [vmem:[#allocation2 + $0x40] sm:$0xff]
        %v679 = vld [vmem:[#allocation2 + $0x48] sm:$0xff]
        %v680 = vld [vmem:[#allocation2 + $0x50] sm:$0xff]
        %v681 = vld [vmem:[#allocation2 + $0x58] sm:$0xff]
        %v682 = vld [vmem:[#allocation2 + $0x60] sm:$0xff]
        %v683 = vld [vmem:[#allocation2 + $0x68] sm:$0xff]
        %v684 = vld [vmem:[#allocation2 + $0x70] sm:$0xff]
        %v685 = vld [vmem:[#allocation2 + $0x78] sm:$0xff]
        %v686 = vld [vmem:[#allocation2 + $0x80] sm:$0xff]
        %v687 = vld [vmem:[#allocation2 + $0x88] sm:$0xff]
        %v688 = vld [vmem:[#allocation2 + $0x90] sm:$0xff]
        %v689 = vld [vmem:[#allocation2 + $0x98] sm:$0xff]
        %v690 = vld [vmem:[#allocation2 + $0xa0] sm:$0xff]
        %v691 = vld [vmem:[#allocation2 + $0xa8] sm:$0xff]
        %v692 = vld [vmem:[#allocation2 + $0xb0] sm:$0xff]
        %v693 = vld [vmem:[#allocation2 + $0xb8] sm:$0xff]
        %v694 = vld [vmem:[#allocation2 + $0xc0] sm:$0xff]
        %v695 = vld [vmem:[#allocation2 + $0xc8] sm:$0xff]
        %v696 = vld [vmem:[#allocation2 + $0xd0] sm:$0xff]
        %v697 = vld [vmem:[#allocation2 + $0xd8] sm:$0xff]
        %v698 = vld [vmem:[#allocation2 + $0xe0] sm:$0xff]
        %v699 = vld [vmem:[#allocation2 + $0xe8] sm:$0xff]
        %v700 = vld [vmem:[#allocation2 + $0xf0] sm:$0xff]
        %v701 = vld [vmem:[#allocation2 + $0xf8] sm:$0xff]
        %v702 = vld [vmem:[#allocation2 + $0x100] sm:$0xff]
        %v703 = vld [vmem:[#allocation2 + $0x108] sm:$0xff]
        %v704 = vld [vmem:[#allocation2 + $0x110] sm:$0xff]
        %v705 = vld [vmem:[#allocation2 + $0x118] sm:$0xff]
        %v706 = vld [vmem:[#allocation2 + $0x120] sm:$0xff]
        %v707 = vld [vmem:[#allocation2 + $0x128] sm:$0xff]
        %v708 = vld [vmem:[#allocation2 + $0x130] sm:$0xff]
        %v709 = vld [vmem:[#allocation2 + $0x138] sm:$0xff]
        %v710 = vld [vmem:[#allocation2 + $0x140] sm:$0xff]
        %v711 = vld [vmem:[#allocation2 + $0x148] sm:$0xff]
        %v712 = vld [vmem:[#allocation2 + $0x150] sm:$0xff]
        %v713 = vld [vmem:[#allocation2 + $0x158] sm:$0xff]
        %v714 = vld [vmem:[#allocation2 + $0x160] sm:$0xff]
        %v715 = vld [vmem:[#allocation2 + $0x168] sm:$0xff]
        %v716 = vld [vmem:[#allocation2 + $0x170] sm:$0xff]
        %v717 = vld [vmem:[#allocation2 + $0x178] sm:$0xff]
        %v718 = vld [vmem:[#allocation8] sm:$0xf]
        %v719 = vld [vmem:[#allocation8 + $0x4] sm:$0xf]
        %v720 = vld [vmem:[#allocation8 + $0x8] sm:$0xf]
        %v721 = vld [vmem:[#allocation8 + $0xc] sm:$0xf]
        %v722 = vld [vmem:[#allocation8 + $0x10] sm:$0xf]
        %v723 = vld [vmem:[#allocation8 + $0x14] sm:$0xf]
        %v724 = vld [vmem:[#allocation8 + $0x18] sm:$0xf]
        %v725 = vld [vmem:[#allocation8 + $0x1c] sm:$0xf]
        %v726 = vld [vmem:[#allocation8 + $0x20] sm:$0xf]
        %v727 = vld [vmem:[#allocation8 + $0x24] sm:$0xf]
        %v728 = vld [vmem:[#allocation8 + $0x28] sm:$0xf]
        %v729 = vld [vmem:[#allocation8 + $0x2c] sm:$0xf]
        %v730 = vld [vmem:[#allocation8 + $0x30] sm:$0xf]
        %v731 = vld [vmem:[#allocation8 + $0x34] sm:$0xf]
        %v732 = vld [vmem:[#allocation8 + $0x38] sm:$0xf]
        %v733 = vld [vmem:[#allocation8 + $0x3c] sm:$0xf]
        %v734 = vld [vmem:[#allocation8 + $0x40] sm:$0xf]
        %v735 = vld [vmem:[#allocation8 + $0x44] sm:$0xf]
        %v736 = vld [vmem:[#allocation8 + $0x48] sm:$0xf]
        %v737 = vld [vmem:[#allocation8 + $0x4c] sm:$0xf]
        %v738 = vld [vmem:[#allocation8 + $0x50] sm:$0xf]
        %v739 = vld [vmem:[#allocation8 + $0x54] sm:$0xf]
        %v740 = vld [vmem:[#allocation8 + $0x58] sm:$0xf]
        %v741 = vld [vmem:[#allocation8 + $0x5c] sm:$0xf]
        %v742 = vld [vmem:[#allocation8 + $0x60] sm:$0xf]
        %v743 = vld [vmem:[#allocation8 + $0x64] sm:$0xf]
        %v744 = vld [vmem:[#allocation8 + $0x68] sm:$0xf]
        %v745 = vld [vmem:[#allocation8 + $0x6c] sm:$0xf]
        %v746 = vld [vmem:[#allocation8 + $0x70] sm:$0xf]
        %v747 = vld [vmem:[#allocation8 + $0x74] sm:$0xf]
        %v748 = vld [vmem:[#allocation8 + $0x78] sm:$0xf]
        %v749 = vld [vmem:[#allocation8 + $0x7c] sm:$0xf]
        %v750 = vld [vmem:[#allocation8 + $0x80] sm:$0xf]
        %v751 = vld [vmem:[#allocation8 + $0x84] sm:$0xf]
        %v752 = vld [vmem:[#allocation8 + $0x88] sm:$0xf]
        %v753 = vld [vmem:[#allocation8 + $0x8c] sm:$0xf]
        %v754 = vld [vmem:[#allocation8 + $0x90] sm:$0xf]
        %v755 = vld [vmem:[#allocation8 + $0x94] sm:$0xf]
        %v756 = vld [vmem:[#allocation8 + $0x98] sm:$0xf]
        %v757 = vld [vmem:[#allocation8 + $0x9c] sm:$0xf]
        %v758 = vld [vmem:[#allocation8 + $0xa0] sm:$0xf]
        %v759 = vld [vmem:[#allocation8 + $0xa4] sm:$0xf]
        %v760 = vld [vmem:[#allocation8 + $0xa8] sm:$0xf]
        %v761 = vld [vmem:[#allocation8 + $0xac] sm:$0xf]
        %v762 = vld [vmem:[#allocation8 + $0xb0] sm:$0xf]
        %v763 = vld [vmem:[#allocation8 + $0xb4] sm:$0xf]
        %v764 = vld [vmem:[#allocation8 + $0xb8] sm:$0xf]
        %v765 = vld [vmem:[#allocation8 + $0xbc] sm:$0xf]
        %v766 = vld [vmem:[#allocation2 + $0x180] sm:$0xff]
        %v767 = vld [vmem:[#allocation2 + $0x188] sm:$0xff]
        %v768 = vld [vmem:[#allocation2 + $0x190] sm:$0xff]
        %s769 = scalar_lea.vmem [#allocation8], 192
        %v770 = vld [vmem:[%s769] sm:$0xf]
        %v771 = vld [vmem:[%s769 + $0x4] sm:$0xf]
        %v772 = vld [vmem:[%s769 + $0x8] sm:$0xf]
        %v773 = vld [vmem:[%s769 + $0xc] sm:$0xf]
        %v774 = vld [vmem:[%s769 + $0x10] sm:$0xf]
        %v775 = vld [vmem:[%s769 + $0x14] sm:$0xf]
        %v776 = vld [vmem:[%s769 + $0x18] sm:$0xf]
        %v777 = vld [vmem:[%s769 + $0x1c] sm:$0xf]
        %v778 = vld [vmem:[%s769 + $0x20] sm:$0xf]
        %v779 = vld [vmem:[%s769 + $0x24] sm:$0xf]
        %v780 = vld [vmem:[%s769 + $0x28] sm:$0xf]
        %v781 = vld [vmem:[%s769 + $0x2c] sm:$0xf]
        %v782 = vld [vmem:[%s769 + $0x30] sm:$0xf]
        %v783 = vld [vmem:[%s769 + $0x34] sm:$0xf]
        %v784 = vld [vmem:[%s769 + $0x38] sm:$0xf]
        %v785 = vld [vmem:[%s769 + $0x3c] sm:$0xf]
        %v786 = vld [vmem:[%s769 + $0x40] sm:$0xf]
        %v787 = vld [vmem:[%s769 + $0x44] sm:$0xf]
        %v788 = vld [vmem:[%s769 + $0x48] sm:$0xf]
        %v789 = vld [vmem:[%s769 + $0x4c] sm:$0xf]
        %v790 = vld [vmem:[%s769 + $0x50] sm:$0xf]
        %v791 = vld [vmem:[%s769 + $0x54] sm:$0xf]
        %v792 = vld [vmem:[%s769 + $0x58] sm:$0xf]
        %v793 = vld [vmem:[%s769 + $0x5c] sm:$0xf]
        %v794 = vld [vmem:[%s769 + $0x60] sm:$0xf]
        %v795 = vld [vmem:[%s769 + $0x64] sm:$0xf]
        %v796 = vld [vmem:[%s769 + $0x68] sm:$0xf]
        %v797 = vld [vmem:[%s769 + $0x6c] sm:$0xf]
        %v798 = vld [vmem:[%s769 + $0x70] sm:$0xf]
        %v799 = vld [vmem:[%s769 + $0x74] sm:$0xf]
        %v800 = vld [vmem:[%s769 + $0x78] sm:$0xf]
        %v801 = vld [vmem:[%s769 + $0x7c] sm:$0xf]
        %v802 = vld [vmem:[%s769 + $0x80] sm:$0xf]
        %v803 = vld [vmem:[%s769 + $0x84] sm:$0xf]
        %v804 = vld [vmem:[%s769 + $0x88] sm:$0xf]
        %v805 = vld [vmem:[%s769 + $0x8c] sm:$0xf]
        %v806 = vld [vmem:[%s769 + $0x90] sm:$0xf]
        %v807 = vld [vmem:[%s769 + $0x94] sm:$0xf]
        %v808 = vld [vmem:[%s769 + $0x98] sm:$0xf]
        %v809 = vld [vmem:[%s769 + $0x9c] sm:$0xf]
        %v810 = vld [vmem:[%s769 + $0xa0] sm:$0xf]
        %v811 = vld [vmem:[%s769 + $0xa4] sm:$0xf]
        %v812 = vld [vmem:[%s769 + $0xa8] sm:$0xf]
        %v813 = vld [vmem:[%s769 + $0xac] sm:$0xf]
        %v814 = vld [vmem:[%s769 + $0xb0] sm:$0xf]
        %v815 = vld [vmem:[%s769 + $0xb4] sm:$0xf]
        %v816 = vld [vmem:[%s769 + $0xb8] sm:$0xf]
        %v817 = vld [vmem:[%s769 + $0xbc] sm:$0xf]
        %v866 = vunpack.c.l.b16 %v770
        %v867 = vunpack.c.l.b16 %v771
        %v868 = vunpack.c.l.b16 %v772
        %v869 = vunpack.c.l.b16 %v773
        %v870 = vunpack.c.l.b16 %v774
        %v871 = vunpack.c.l.b16 %v775
        %v872 = vunpack.c.l.b16 %v776
        %v873 = vunpack.c.l.b16 %v777
        %v874 = vunpack.c.l.b16 %v778
        %v875 = vunpack.c.l.b16 %v779
        %v876 = vunpack.c.l.b16 %v780
        %v877 = vunpack.c.l.b16 %v781
        %v878 = vunpack.c.l.b16 %v782
        %v879 = vunpack.c.l.b16 %v783
        %v880 = vunpack.c.l.b16 %v784
        %v881 = vunpack.c.l.b16 %v785
        %v882 = vunpack.c.l.b16 %v786
        %v883 = vunpack.c.l.b16 %v787
        %v884 = vunpack.c.l.b16 %v788
        %v885 = vunpack.c.l.b16 %v789
        %v886 = vunpack.c.l.b16 %v790
        %v887 = vunpack.c.l.b16 %v791
        %v888 = vunpack.c.l.b16 %v792
        %v889 = vunpack.c.l.b16 %v793
        %v890 = vunpack.c.l.b16 %v794
        %v891 = vunpack.c.l.b16 %v795
        %v892 = vunpack.c.l.b16 %v796
        %v893 = vunpack.c.l.b16 %v797
        %v894 = vunpack.c.l.b16 %v798
        %v895 = vunpack.c.l.b16 %v799
        %v896 = vunpack.c.l.b16 %v800
        %v897 = vunpack.c.l.b16 %v801
        %v898 = vunpack.c.l.b16 %v802
        %v899 = vunpack.c.l.b16 %v803
        %v900 = vunpack.c.l.b16 %v804
        %v901 = vunpack.c.l.b16 %v805
        %v902 = vunpack.c.l.b16 %v806
        %v903 = vunpack.c.l.b16 %v807
        %v904 = vunpack.c.l.b16 %v808
        %v905 = vunpack.c.l.b16 %v809
        %v906 = vunpack.c.l.b16 %v810
        %v907 = vunpack.c.l.b16 %v811
        %v908 = vunpack.c.l.b16 %v812
        %v909 = vunpack.c.l.b16 %v813
        %v910 = vunpack.c.l.b16 %v814
        %v911 = vunpack.c.l.b16 %v815
        %v912 = vunpack.c.l.b16 %v816
        %v913 = vunpack.c.l.b16 %v817
        %v914 = vpack.c.b16 %v867, %v866
        %v915 = vpack.c.b16 %v869, %v868
        %v916 = vpack.c.b16 %v871, %v870
        %v917 = vpack.c.b16 %v873, %v872
        %v918 = vpack.c.b16 %v875, %v874
        %v919 = vpack.c.b16 %v877, %v876
        %v920 = vpack.c.b16 %v879, %v878
        %v921 = vpack.c.b16 %v881, %v880
        %v922 = vpack.c.b16 %v883, %v882
        %v923 = vpack.c.b16 %v885, %v884
        %v924 = vpack.c.b16 %v887, %v886
        %v925 = vpack.c.b16 %v889, %v888
        %v926 = vpack.c.b16 %v891, %v890
        %v927 = vpack.c.b16 %v893, %v892
        %v928 = vpack.c.b16 %v895, %v894
        %v929 = vpack.c.b16 %v897, %v896
        %v930 = vpack.c.b16 %v899, %v898
        %v931 = vpack.c.b16 %v901, %v900
        %v932 = vpack.c.b16 %v903, %v902
        %v933 = vpack.c.b16 %v905, %v904
        %v934 = vpack.c.b16 %v907, %v906
        %v935 = vpack.c.b16 %v909, %v908
        %v936 = vpack.c.b16 %v911, %v910
        %v937 = vpack.c.b16 %v913, %v912
        %962 = vmatprep.subr.bf16.mxu0 0
        %963 = vmatpush1.bf16.msra.mxu0 %v914
        %964 = vmatprep.subr.bf16.mxu0 0
        %965 = vmatpush1.bf16.msra.mxu0 %v915
        %966 = vmatprep.subr.bf16.mxu0 0
        %967 = vmatpush1.bf16.msra.mxu0 %v916
        %968 = vmatprep.subr.bf16.mxu0 0
        %969 = vmatpush1.bf16.msra.mxu0 %v917
        %970 = vmatprep.subr.bf16.mxu0 0
        %971 = vmatpush1.bf16.msra.mxu0 %v918
        %972 = vmatprep.subr.bf16.mxu0 0
        %973 = vmatpush1.bf16.msra.mxu0 %v919
        %974 = vmatprep.subr.bf16.mxu0 0
        %975 = vmatpush1.bf16.msra.mxu0 %v920
        %976 = vmatprep.subr.bf16.mxu0 0
        %977 = vmatpush1.bf16.msra.mxu0 %v921
        %978 = vmatprep.subr.bf16.mxu0 0
        %979 = vmatpush1.bf16.msra.mxu0 %v922
        %980 = vmatprep.subr.bf16.mxu0 0
        %981 = vmatpush1.bf16.msra.mxu0 %v923
        %982 = vmatprep.subr.bf16.mxu0 0
        %983 = vmatpush1.bf16.msra.mxu0 %v924
        %984 = vmatprep.subr.bf16.mxu0 0
        %985 = vmatpush1.bf16.msra.mxu0 %v925
        %986 = vmatprep.subr.bf16.mxu0 0
        %987 = vmatpush1.bf16.msra.mxu0 %v926
        %988 = vmatprep.subr.bf16.mxu0 0
        %989 = vmatpush1.bf16.msra.mxu0 %v927
        %990 = vmatprep.subr.bf16.mxu0 0
        %991 = vmatpush1.bf16.msra.mxu0 %v928
        %992 = vmatprep.subr.bf16.mxu0 0
        %993 = vmatpush1.bf16.msra.mxu0 %v929
        %994 = vmatprep.mubr.bf16.mxu0 %v674
        %995 = vmatmul.mubr.bf16.gmra.mrb[0].mxu0 %v673
        %v996 = vpop.f32.mrb[0].mxu0
        %v997 = vadd.f32 0.0, %v996
        %v998 = vpop.f32.mrb[0].mxu0
        %v999 = vpop.f32.mrb[0].mxu0
        %v1000 = vadd.f32 0.0, %v999
        %v1001 = vpop.f32.mrb[0].mxu0
        %1002 = vmatprep.mubr.bf16.mxu0 %v677
        %1003 = vmatmul.mubr.bf16.gmra.mrb[0].mxu0 %v676
        %v1004 = vpop.f32.mrb[0].mxu0
        %v1005 = vadd.f32 0.0, %v1004
        %v1006 = vpop.f32.mrb[0].mxu0
        %v1007 = vpop.f32.mrb[0].mxu0
        %v1008 = vadd.f32 0.0, %v1007
        %v1009 = vpop.f32.mrb[0].mxu0
        %1010 = vmatprep.mubr.bf16.mxu0 %v680
        %1011 = vmatmul.mubr.bf16.gmra.mrb[0].mxu0 %v679
        %v1012 = vpop.f32.mrb[0].mxu0
        %v1013 = vadd.f32 0.0, %v1012
        %v1014 = vpop.f32.mrb[0].mxu0
        %v1015 = vpop.f32.mrb[0].mxu0
        %v1016 = vadd.f32 0.0, %v1015
        %v1017 = vpop.f32.mrb[0].mxu0
        %1018 = vmatprep.mubr.bf16.mxu0 %v683
        %1019 = vmatmul.mubr.bf16.gmra.mrb[0].mxu0 %v682
        %v1020 = vpop.f32.mrb[0].mxu0
        %v1021 = vadd.f32 0.0, %v1020
        %v1022 = vpop.f32.mrb[0].mxu0
        %v1023 = vpop.f32.mrb[0].mxu0
        %v1024 = vadd.f32 0.0, %v1023
        %v1025 = vpop.f32.mrb[0].mxu0
        %1026 = vmatprep.mubr.bf16.mxu0 %v686
        %1027 = vmatmul.mubr.bf16.gmra.mrb[0].mxu0 %v685
        %v1028 = vpop.f32.mrb[0].mxu0
        %v1029 = vadd.f32 0.0, %v1028
        %v1030 = vpop.f32.mrb[0].mxu0
        %v1031 = vpop.f32.mrb[0].mxu0
        %v1032 = vadd.f32 0.0, %v1031
        %v1033 = vpop.f32.mrb[0].mxu0
        %1034 = vmatprep.mubr.bf16.mxu0 %v689
        %1035 = vmatmul.mubr.bf16.gmra.mrb[0].mxu0 %v688
        %v1036 = vpop.f32.mrb[0].mxu0
        %v1037 = vadd.f32 0.0, %v1036
        %v1038 = vpop.f32.mrb[0].mxu0
        %v1039 = vpop.f32.mrb[0].mxu0
        %v1040 = vadd.f32 0.0, %v1039
        %v1041 = vpop.f32.mrb[0].mxu0
        %1042 = vmatprep.mubr.bf16.mxu0 %v692
        %1043 = vmatmul.mubr.bf16.gmra.mrb[0].mxu0 %v691
        %v1044 = vpop.f32.mrb[0].mxu0
        %v1045 = vadd.f32 0.0, %v1044
        %v1046 = vpop.f32.mrb[0].mxu0
        %v1047 = vpop.f32.mrb[0].mxu0
        %v1048 = vadd.f32 0.0, %v1047
        %v1049 = vpop.f32.mrb[0].mxu0
        %1050 = vmatprep.mubr.bf16.mxu0 %v695
        %1051 = vmatmul.mubr.bf16.gmra.mrb[0].mxu0 %v694
        %v1052 = vpop.f32.mrb[0].mxu0
        %v1053 = vadd.f32 0.0, %v1052
        %v1054 = vpop.f32.mrb[0].mxu0
        %v1055 = vpop.f32.mrb[0].mxu0
        %v1056 = vadd.f32 0.0, %v1055
        %v1057 = vpop.f32.mrb[0].mxu0
        %1058 = vmatprep.mubr.bf16.mxu0 %v698
        %1059 = vmatmul.mubr.bf16.gmra.mrb[0].mxu0 %v697
        %v1060 = vpop.f32.mrb[0].mxu0
        %v1061 = vadd.f32 0.0, %v1060
        %v1062 = vpop.f32.mrb[0].mxu0
        %v1063 = vpop.f32.mrb[0].mxu0
        %v1064 = vadd.f32 0.0, %v1063
        %v1065 = vpop.f32.mrb[0].mxu0
        %1066 = vmatprep.mubr.bf16.mxu0 %v701
        %1067 = vmatmul.mubr.bf16.gmra.mrb[0].mxu0 %v700
        %v1068 = vpop.f32.mrb[0].mxu0
        %v1069 = vadd.f32 0.0, %v1068
        %v1070 = vpop.f32.mrb[0].mxu0
        %v1071 = vpop.f32.mrb[0].mxu0
        %v1072 = vadd.f32 0.0, %v1071
        %v1073 = vpop.f32.mrb[0].mxu0
        %1074 = vmatprep.mubr.bf16.mxu0 %v704
        %1075 = vmatmul.mubr.bf16.gmra.mrb[0].mxu0 %v703
        %v1076 = vpop.f32.mrb[0].mxu0
        %v1077 = vadd.f32 0.0, %v1076
        %v1078 = vpop.f32.mrb[0].mxu0
        %v1079 = vpop.f32.mrb[0].mxu0
        %v1080 = vadd.f32 0.0, %v1079
        %v1081 = vpop.f32.mrb[0].mxu0
        %1082 = vmatprep.mubr.bf16.mxu0 %v707
        %1083 = vmatmul.mubr.bf16.gmra.mrb[0].mxu0 %v706
        %v1084 = vpop.f32.mrb[0].mxu0
        %v1085 = vadd.f32 0.0, %v1084
        %v1086 = vpop.f32.mrb[0].mxu0
        %v1087 = vpop.f32.mrb[0].mxu0
        %v1088 = vadd.f32 0.0, %v1087
        %v1089 = vpop.f32.mrb[0].mxu0
        %1090 = vmatprep.mubr.bf16.mxu0 %v710
        %1091 = vmatmul.mubr.bf16.gmra.mrb[0].mxu0 %v709
        %v1092 = vpop.f32.mrb[0].mxu0
        %v1093 = vadd.f32 0.0, %v1092
        %v1094 = vpop.f32.mrb[0].mxu0
        %v1095 = vpop.f32.mrb[0].mxu0
        %v1096 = vadd.f32 0.0, %v1095
        %v1097 = vpop.f32.mrb[0].mxu0
        %1098 = vmatprep.mubr.bf16.mxu0 %v713
        %1099 = vmatmul.mubr.bf16.gmra.mrb[0].mxu0 %v712
        %v1100 = vpop.f32.mrb[0].mxu0
        %v1101 = vadd.f32 0.0, %v1100
        %v1102 = vpop.f32.mrb[0].mxu0
        %v1103 = vpop.f32.mrb[0].mxu0
        %v1104 = vadd.f32 0.0, %v1103
        %v1105 = vpop.f32.mrb[0].mxu0
        %1106 = vmatprep.mubr.bf16.mxu0 %v716
        %1107 = vmatmul.mubr.bf16.gmra.mrb[0].mxu0 %v715
        %v1108 = vpop.f32.mrb[0].mxu0
        %v1109 = vadd.f32 0.0, %v1108
        %v1110 = vpop.f32.mrb[0].mxu0
        %v1111 = vpop.f32.mrb[0].mxu0
        %v1112 = vadd.f32 0.0, %v1111
        %v1113 = vpop.f32.mrb[0].mxu0
        %1114 = vmatprep.mubr.bf16.mxu0 %v767
        %1115 = vmatmul.mubr.bf16.gmra.mrb[0].mxu0 %v766
        %v1116 = vpop.f32.mrb[0].mxu0
        %v1117 = vadd.f32 0.0, %v1116
        %v1118 = vpop.f32.mrb[0].mxu0
        %v1119 = vpop.f32.mrb[0].mxu0
        %v1120 = vadd.f32 0.0, %v1119
        %v1121 = vpop.f32.mrb[0].mxu0
        %1122 = vdwg.mxu0
        %1123 = vmatprep.subr.bf16.mxu0 0
        %1124 = vmatpush1.bf16.msra.mxu0 %v930
        %1125 = vmatprep.subr.bf16.mxu0 0
        %1126 = vmatpush1.bf16.msra.mxu0 %v931
        %1127 = vmatprep.subr.bf16.mxu0 0
        %1128 = vmatpush1.bf16.msra.mxu0 %v932
        %1129 = vmatprep.subr.bf16.mxu0 0
        %1130 = vmatpush1.bf16.msra.mxu0 %v933
        %1131 = vmatprep.subr.bf16.mxu0 0
        %1132 = vmatpush1.bf16.msra.mxu0 %v934
        %1133 = vmatprep.subr.bf16.mxu0 0
        %1134 = vmatpush1.bf16.msra.mxu0 %v935
        %1135 = vmatprep.subr.bf16.mxu0 0
        %1136 = vmatpush1.bf16.msra.mxu0 %v936
        %1137 = vmatprep.subr.bf16.mxu0 0
        %1138 = vmatpush1.bf16.msra.mxu0 %v937
        %1139 = vmatprep.subr.bf16.mxu0 0
        %1140 = vmatpush1.bf16.msra.mxu0 0
        %1141 = vmatprep.subr.bf16.mxu0 0
        %1142 = vmatpush1.bf16.msra.mxu0 0
        %1143 = vmatprep.subr.bf16.mxu0 0
        %1144 = vmatpush1.bf16.msra.mxu0 0
        %1145 = vmatprep.subr.bf16.mxu0 0
        %1146 = vmatpush1.bf16.msra.mxu0 0
        %1147 = vmatprep.subr.bf16.mxu0 0
        %1148 = vmatpush1.bf16.msra.mxu0 0
        %1149 = vmatprep.subr.bf16.mxu0 0
        %1150 = vmatpush1.bf16.msra.mxu0 0
        %1151 = vmatprep.subr.bf16.mxu0 0
        %1152 = vmatpush1.bf16.msra.mxu0 0
        %1153 = vmatprep.subr.bf16.mxu0 0
        %1154 = vmatpush1.bf16.msra.mxu0 0
        %1155 = vmatprep.mubr.bf16.mxu0 0
        %1156 = vmatmul.mubr.bf16.gmra.mrb[0].mxu0 %v675
        %v1157 = vpop.f32.mrb[0].mxu0
        %v1158 = vadd.f32 %v997, %v1157
        %v1159 = vpop.f32.mrb[0].mxu0
        %v1160 = vpop.f32.mrb[0].mxu0
        %v1161 = vadd.f32 %v1000, %v1160
        %v1162 = vpop.f32.mrb[0].mxu0
        %1163 = vmatprep.mubr.bf16.mxu0 0
        %1164 = vmatmul.mubr.bf16.gmra.mrb[0].mxu0 %v678
        %v1165 = vpop.f32.mrb[0].mxu0
        %v1166 = vadd.f32 %v1005, %v1165
        %v1167 = vpop.f32.mrb[0].mxu0
        %v1168 = vpop.f32.mrb[0].mxu0
        %v1169 = vadd.f32 %v1008, %v1168
        %v1170 = vpop.f32.mrb[0].mxu0
        %1171 = vmatprep.mubr.bf16.mxu0 0
        %1172 = vmatmul.mubr.bf16.gmra.mrb[0].mxu0 %v681
        %v1173 = vpop.f32.mrb[0].mxu0
        %v1174 = vadd.f32 %v1013, %v1173
        %v1175 = vpop.f32.mrb[0].mxu0
        %v1176 = vpop.f32.mrb[0].mxu0
        %v1177 = vadd.f32 %v1016, %v1176
        %v1178 = vpop.f32.mrb[0].mxu0
        %1179 = vmatprep.mubr.bf16.mxu0 0
        %1180 = vmatmul.mubr.bf16.gmra.mrb[0].mxu0 %v684
        %v1181 = vpop.f32.mrb[0].mxu0
        %v1182 = vadd.f32 %v1021, %v1181
        %v1183 = vpop.f32.mrb[0].mxu0
        %v1184 = vpop.f32.mrb[0].mxu0
        %v1185 = vadd.f32 %v1024, %v1184
        %v1186 = vpop.f32.mrb[0].mxu0
        %1187 = vmatprep.mubr.bf16.mxu0 0
        %1188 = vmatmul.mubr.bf16.gmra.mrb[0].mxu0 %v687
        %v1189 = vpop.f32.mrb[0].mxu0
        %v1190 = vadd.f32 %v1029, %v1189
        %v1191 = vpop.f32.mrb[0].mxu0
        %v1192 = vpop.f32.mrb[0].mxu0
        %v1193 = vadd.f32 %v1032, %v1192
        %v1194 = vpop.f32.mrb[0].mxu0
        %1195 = vmatprep.mubr.bf16.mxu0 0
        %1196 = vmatmul.mubr.bf16.gmra.mrb[0].mxu0 %v690
        %v1197 = vpop.f32.mrb[0].mxu0
        %v1198 = vadd.f32 %v1037, %v1197
        %v1199 = vpop.f32.mrb[0].mxu0
        %v1200 = vpop.f32.mrb[0].mxu0
        %v1201 = vadd.f32 %v1040, %v1200
        %v1202 = vpop.f32.mrb[0].mxu0
        %1203 = vmatprep.mubr.bf16.mxu0 0
        %1204 = vmatmul.mubr.bf16.gmra.mrb[0].mxu0 %v693
        %v1205 = vpop.f32.mrb[0].mxu0
        %v1206 = vadd.f32 %v1045, %v1205
        %v1207 = vpop.f32.mrb[0].mxu0
        %v1208 = vpop.f32.mrb[0].mxu0
        %v1209 = vadd.f32 %v1048, %v1208
        %v1210 = vpop.f32.mrb[0].mxu0
        %1211 = vmatprep.mubr.bf16.mxu0 0
        %1212 = vmatmul.mubr.bf16.gmra.mrb[0].mxu0 %v696
        %v1213 = vpop.f32.mrb[0].mxu0
        %v1214 = vadd.f32 %v1053, %v1213
        %v1215 = vpop.f32.mrb[0].mxu0
        %v1216 = vpop.f32.mrb[0].mxu0
        %v1217 = vadd.f32 %v1056, %v1216
        %v1218 = vpop.f32.mrb[0].mxu0
        %1219 = vmatprep.mubr.bf16.mxu0 0
        %1220 = vmatmul.mubr.bf16.gmra.mrb[0].mxu0 %v699
        %v1221 = vpop.f32.mrb[0].mxu0
        %v1222 = vadd.f32 %v1061, %v1221
        %v1223 = vpop.f32.mrb[0].mxu0
        %v1224 = vpop.f32.mrb[0].mxu0
        %v1225 = vadd.f32 %v1064, %v1224
        %v1226 = vpop.f32.mrb[0].mxu0
        %1227 = vmatprep.mubr.bf16.mxu0 0
        %1228 = vmatmul.mubr.bf16.gmra.mrb[0].mxu0 %v702
        %v1229 = vpop.f32.mrb[0].mxu0
        %v1230 = vadd.f32 %v1069, %v1229
        %v1231 = vpop.f32.mrb[0].mxu0
        %v1232 = vpop.f32.mrb[0].mxu0
        %v1233 = vadd.f32 %v1072, %v1232
        %v1234 = vpop.f32.mrb[0].mxu0
        %1235 = vmatprep.mubr.bf16.mxu0 0
        %1236 = vmatmul.mubr.bf16.gmra.mrb[0].mxu0 %v705
        %v1237 = vpop.f32.mrb[0].mxu0
        %v1238 = vadd.f32 %v1077, %v1237
        %v1239 = vpop.f32.mrb[0].mxu0
        %v1240 = vpop.f32.mrb[0].mxu0
        %v1241 = vadd.f32 %v1080, %v1240
        %v1242 = vpop.f32.mrb[0].mxu0
        %1243 = vmatprep.mubr.bf16.mxu0 0
        %1244 = vmatmul.mubr.bf16.gmra.mrb[0].mxu0 %v708
        %v1245 = vpop.f32.mrb[0].mxu0
        %v1246 = vadd.f32 %v1085, %v1245
        %v1247 = vpop.f32.mrb[0].mxu0
        %v1248 = vpop.f32.mrb[0].mxu0
        %v1249 = vadd.f32 %v1088, %v1248
        %v1250 = vpop.f32.mrb[0].mxu0
        %1251 = vmatprep.mubr.bf16.mxu0 0
        %1252 = vmatmul.mubr.bf16.gmra.mrb[0].mxu0 %v711
        %v1253 = vpop.f32.mrb[0].mxu0
        %v1254 = vadd.f32 %v1093, %v1253
        %v1255 = vpop.f32.mrb[0].mxu0
        %v1256 = vpop.f32.mrb[0].mxu0
        %v1257 = vadd.f32 %v1096, %v1256
        %v1258 = vpop.f32.mrb[0].mxu0
        %1259 = vmatprep.mubr.bf16.mxu0 0
        %1260 = vmatmul.mubr.bf16.gmra.mrb[0].mxu0 %v714
        %v1261 = vpop.f32.mrb[0].mxu0
        %v1262 = vadd.f32 %v1101, %v1261
        %v1263 = vpop.f32.mrb[0].mxu0
        %v1264 = vpop.f32.mrb[0].mxu0
        %v1265 = vadd.f32 %v1104, %v1264
        %v1266 = vpop.f32.mrb[0].mxu0
        %1267 = vmatprep.mubr.bf16.mxu0 0
        %1268 = vmatmul.mubr.bf16.gmra.mrb[0].mxu0 %v717
        %v1269 = vpop.f32.mrb[0].mxu0
        %v1270 = vadd.f32 %v1109, %v1269
        %v1271 = vpop.f32.mrb[0].mxu0
        %v1272 = vpop.f32.mrb[0].mxu0
        %v1273 = vadd.f32 %v1112, %v1272
        %v1274 = vpop.f32.mrb[0].mxu0
        %1275 = vmatprep.mubr.bf16.mxu0 0
        %1276 = vmatmul.mubr.bf16.gmra.mrb[0].mxu0 %v768
        %v1277 = vpop.f32.mrb[0].mxu0
        %v1278 = vadd.f32 %v1117, %v1277
        %v1279 = vpop.f32.mrb[0].mxu0
        %v1280 = vpop.f32.mrb[0].mxu0
        %v1281 = vadd.f32 %v1120, %v1280
        %v1282 = vpop.f32.mrb[0].mxu0
        %1283 = vdwg.mxu0
        %v1332 = vunpack.c.l.b16 %v718
        %v1333 = vunpack.c.l.b16 %v719
        %v1334 = vunpack.c.l.b16 %v720
        %v1335 = vunpack.c.l.b16 %v721
        %v1336 = vunpack.c.l.b16 %v722
        %v1337 = vunpack.c.l.b16 %v723
        %v1338 = vunpack.c.l.b16 %v724
        %v1339 = vunpack.c.l.b16 %v725
        %v1340 = vunpack.c.l.b16 %v726
        %v1341 = vunpack.c.l.b16 %v727
        %v1342 = vunpack.c.l.b16 %v728
        %v1343 = vunpack.c.l.b16 %v729
        %v1344 = vunpack.c.l.b16 %v730
        %v1345 = vunpack.c.l.b16 %v731
        %v1346 = vunpack.c.l.b16 %v732
        %v1347 = vunpack.c.l.b16 %v733
        %v1348 = vunpack.c.l.b16 %v734
        %v1349 = vunpack.c.l.b16 %v735
        %v1350 = vunpack.c.l.b16 %v736
        %v1351 = vunpack.c.l.b16 %v737
        %v1352 = vunpack.c.l.b16 %v738
        %v1353 = vunpack.c.l.b16 %v739
        %v1354 = vunpack.c.l.b16 %v740
        %v1355 = vunpack.c.l.b16 %v741
        %v1356 = vunpack.c.l.b16 %v742
        %v1357 = vunpack.c.l.b16 %v743
        %v1358 = vunpack.c.l.b16 %v744
        %v1359 = vunpack.c.l.b16 %v745
        %v1360 = vunpack.c.l.b16 %v746
        %v1361 = vunpack.c.l.b16 %v747
        %v1362 = vunpack.c.l.b16 %v748
        %v1363 = vunpack.c.l.b16 %v749
        %v1364 = vunpack.c.l.b16 %v750
        %v1365 = vunpack.c.l.b16 %v751
        %v1366 = vunpack.c.l.b16 %v752
        %v1367 = vunpack.c.l.b16 %v753
        %v1368 = vunpack.c.l.b16 %v754
        %v1369 = vunpack.c.l.b16 %v755
        %v1370 = vunpack.c.l.b16 %v756
        %v1371 = vunpack.c.l.b16 %v757
        %v1372 = vunpack.c.l.b16 %v758
        %v1373 = vunpack.c.l.b16 %v759
        %v1374 = vunpack.c.l.b16 %v760
        %v1375 = vunpack.c.l.b16 %v761
        %v1376 = vunpack.c.l.b16 %v762
        %v1377 = vunpack.c.l.b16 %v763
        %v1378 = vunpack.c.l.b16 %v764
        %v1379 = vunpack.c.l.b16 %v765
        %v1380 = vpack.c.b16 %v1333, %v1332
        %v1381 = vpack.c.b16 %v1335, %v1334
        %v1382 = vpack.c.b16 %v1337, %v1336
        %v1383 = vpack.c.b16 %v1339, %v1338
        %v1384 = vpack.c.b16 %v1341, %v1340
        %v1385 = vpack.c.b16 %v1343, %v1342
        %v1386 = vpack.c.b16 %v1345, %v1344
        %v1387 = vpack.c.b16 %v1347, %v1346
        %v1388 = vpack.c.b16 %v1349, %v1348
        %v1389 = vpack.c.b16 %v1351, %v1350
        %v1390 = vpack.c.b16 %v1353, %v1352
        %v1391 = vpack.c.b16 %v1355, %v1354
        %v1392 = vpack.c.b16 %v1357, %v1356
        %v1393 = vpack.c.b16 %v1359, %v1358
        %v1394 = vpack.c.b16 %v1361, %v1360
        %v1395 = vpack.c.b16 %v1363, %v1362
        %v1396 = vpack.c.b16 %v1365, %v1364
        %v1397 = vpack.c.b16 %v1367, %v1366
        %v1398 = vpack.c.b16 %v1369, %v1368
        %v1399 = vpack.c.b16 %v1371, %v1370
        %v1400 = vpack.c.b16 %v1373, %v1372
        %v1401 = vpack.c.b16 %v1375, %v1374
        %v1402 = vpack.c.b16 %v1377, %v1376
        %v1403 = vpack.c.b16 %v1379, %v1378
        %1428 = vmatprep.subr.bf16.mxu0 0
        %1429 = vmatpush1.bf16.msra.mxu0 %v1380
        %1430 = vmatprep.subr.bf16.mxu0 0
        %1431 = vmatpush1.bf16.msra.mxu0 %v1381
        %1432 = vmatprep.subr.bf16.mxu0 0
        %1433 = vmatpush1.bf16.msra.mxu0 %v1382
        %1434 = vmatprep.subr.bf16.mxu0 0
        %1435 = vmatpush1.bf16.msra.mxu0 %v1383
        %1436 = vmatprep.subr.bf16.mxu0 0
        %1437 = vmatpush1.bf16.msra.mxu0 %v1384
        %1438 = vmatprep.subr.bf16.mxu0 0
        %1439 = vmatpush1.bf16.msra.mxu0 %v1385
        %1440 = vmatprep.subr.bf16.mxu0 0
        %1441 = vmatpush1.bf16.msra.mxu0 %v1386
        %1442 = vmatprep.subr.bf16.mxu0 0
        %1443 = vmatpush1.bf16.msra.mxu0 %v1387
        %1444 = vmatprep.subr.bf16.mxu0 0
        %1445 = vmatpush1.bf16.msra.mxu0 %v1388
        %1446 = vmatprep.subr.bf16.mxu0 0
        %1447 = vmatpush1.bf16.msra.mxu0 %v1389
        %1448 = vmatprep.subr.bf16.mxu0 0
        %1449 = vmatpush1.bf16.msra.mxu0 %v1390
        %1450 = vmatprep.subr.bf16.mxu0 0
        %1451 = vmatpush1.bf16.msra.mxu0 %v1391
        %1452 = vmatprep.subr.bf16.mxu0 0
        %1453 = vmatpush1.bf16.msra.mxu0 %v1392
        %1454 = vmatprep.subr.bf16.mxu0 0
        %1455 = vmatpush1.bf16.msra.mxu0 %v1393
        %1456 = vmatprep.subr.bf16.mxu0 0
        %1457 = vmatpush1.bf16.msra.mxu0 %v1394
        %1458 = vmatprep.subr.bf16.mxu0 0
        %1459 = vmatpush1.bf16.msra.mxu0 %v1395
        %1460 = vmatprep.mubr.bf16.mxu0 %v671
        %1461 = vmatmul.mubr.bf16.gmra.mrb[0].mxu0 %v670
        %v1462 = vpop.f32.mrb[0].mxu0
        %v1463 = vadd.f32 %v1158, %v1462
        %v1464 = vpop.f32.mrb[0].mxu0
        %v1465 = vpop.f32.mrb[0].mxu0
        %v1466 = vadd.f32 %v1161, %v1465
        %v1467 = vpop.f32.mrb[0].mxu0
        %1468 = vmatprep.mubr.bf16.mxu0 %v674
        %1469 = vmatmul.mubr.bf16.gmra.mrb[0].mxu0 %v673
        %v1470 = vpop.f32.mrb[0].mxu0
        %v1471 = vadd.f32 %v1166, %v1470
        %v1472 = vpop.f32.mrb[0].mxu0
        %v1473 = vpop.f32.mrb[0].mxu0
        %v1474 = vadd.f32 %v1169, %v1473
        %v1475 = vpop.f32.mrb[0].mxu0
        %1476 = vmatprep.mubr.bf16.mxu0 %v677
        %1477 = vmatmul.mubr.bf16.gmra.mrb[0].mxu0 %v676
        %v1478 = vpop.f32.mrb[0].mxu0
        %v1479 = vadd.f32 %v1174, %v1478
        %v1480 = vpop.f32.mrb[0].mxu0
        %v1481 = vpop.f32.mrb[0].mxu0
        %v1482 = vadd.f32 %v1177, %v1481
        %v1483 = vpop.f32.mrb[0].mxu0
        %1484 = vmatprep.mubr.bf16.mxu0 %v680
        %1485 = vmatmul.mubr.bf16.gmra.mrb[0].mxu0 %v679
        %v1486 = vpop.f32.mrb[0].mxu0
        %v1487 = vadd.f32 %v1182, %v1486
        %v1488 = vpop.f32.mrb[0].mxu0
        %v1489 = vpop.f32.mrb[0].mxu0
        %v1490 = vadd.f32 %v1185, %v1489
        %v1491 = vpop.f32.mrb[0].mxu0
        %1492 = vmatprep.mubr.bf16.mxu0 %v683
        %1493 = vmatmul.mubr.bf16.gmra.mrb[0].mxu0 %v682
        %v1494 = vpop.f32.mrb[0].mxu0
        %v1495 = vadd.f32 %v1190, %v1494
        %v1496 = vpop.f32.mrb[0].mxu0
        %v1497 = vpop.f32.mrb[0].mxu0
        %v1498 = vadd.f32 %v1193, %v1497
        %v1499 = vpop.f32.mrb[0].mxu0
        %1500 = vmatprep.mubr.bf16.mxu0 %v686
        %1501 = vmatmul.mubr.bf16.gmra.mrb[0].mxu0 %v685
        %v1502 = vpop.f32.mrb[0].mxu0
        %v1503 = vadd.f32 %v1198, %v1502
        %v1504 = vpop.f32.mrb[0].mxu0
        %v1505 = vpop.f32.mrb[0].mxu0
        %v1506 = vadd.f32 %v1201, %v1505
        %v1507 = vpop.f32.mrb[0].mxu0
        %1508 = vmatprep.mubr.bf16.mxu0 %v689
        %1509 = vmatmul.mubr.bf16.gmra.mrb[0].mxu0 %v688
        %v1510 = vpop.f32.mrb[0].mxu0
        %v1511 = vadd.f32 %v1206, %v1510
        %v1512 = vpop.f32.mrb[0].mxu0
        %v1513 = vpop.f32.mrb[0].mxu0
        %v1514 = vadd.f32 %v1209, %v1513
        %v1515 = vpop.f32.mrb[0].mxu0
        %1516 = vmatprep.mubr.bf16.mxu0 %v692
        %1517 = vmatmul.mubr.bf16.gmra.mrb[0].mxu0 %v691
        %v1518 = vpop.f32.mrb[0].mxu0
        %v1519 = vadd.f32 %v1214, %v1518
        %v1520 = vpop.f32.mrb[0].mxu0
        %v1521 = vpop.f32.mrb[0].mxu0
        %v1522 = vadd.f32 %v1217, %v1521
        %v1523 = vpop.f32.mrb[0].mxu0
        %1524 = vmatprep.mubr.bf16.mxu0 %v695
        %1525 = vmatmul.mubr.bf16.gmra.mrb[0].mxu0 %v694
        %v1526 = vpop.f32.mrb[0].mxu0
        %v1527 = vadd.f32 %v1222, %v1526
        %v1528 = vpop.f32.mrb[0].mxu0
        %v1529 = vpop.f32.mrb[0].mxu0
        %v1530 = vadd.f32 %v1225, %v1529
        %v1531 = vpop.f32.mrb[0].mxu0
        %1532 = vmatprep.mubr.bf16.mxu0 %v698
        %1533 = vmatmul.mubr.bf16.gmra.mrb[0].mxu0 %v697
        %v1534 = vpop.f32.mrb[0].mxu0
        %v1535 = vadd.f32 %v1230, %v1534
        %v1536 = vpop.f32.mrb[0].mxu0
        %v1537 = vpop.f32.mrb[0].mxu0
        %v1538 = vadd.f32 %v1233, %v1537
        %v1539 = vpop.f32.mrb[0].mxu0
        %1540 = vmatprep.mubr.bf16.mxu0 %v701
        %1541 = vmatmul.mubr.bf16.gmra.mrb[0].mxu0 %v700
        %v1542 = vpop.f32.mrb[0].mxu0
        %v1543 = vadd.f32 %v1238, %v1542
        %v1544 = vpop.f32.mrb[0].mxu0
        %v1545 = vpop.f32.mrb[0].mxu0
        %v1546 = vadd.f32 %v1241, %v1545
        %v1547 = vpop.f32.mrb[0].mxu0
        %1548 = vmatprep.mubr.bf16.mxu0 %v704
        %1549 = vmatmul.mubr.bf16.gmra.mrb[0].mxu0 %v703
        %v1550 = vpop.f32.mrb[0].mxu0
        %v1551 = vadd.f32 %v1246, %v1550
        %v1552 = vpop.f32.mrb[0].mxu0
        %v1553 = vpop.f32.mrb[0].mxu0
        %v1554 = vadd.f32 %v1249, %v1553
        %v1555 = vpop.f32.mrb[0].mxu0
        %1556 = vmatprep.mubr.bf16.mxu0 %v707
        %1557 = vmatmul.mubr.bf16.gmra.mrb[0].mxu0 %v706
        %v1558 = vpop.f32.mrb[0].mxu0
        %v1559 = vadd.f32 %v1254, %v1558
        %v1560 = vpop.f32.mrb[0].mxu0
        %v1561 = vpop.f32.mrb[0].mxu0
        %v1562 = vadd.f32 %v1257, %v1561
        %v1563 = vpop.f32.mrb[0].mxu0
        %1564 = vmatprep.mubr.bf16.mxu0 %v710
        %1565 = vmatmul.mubr.bf16.gmra.mrb[0].mxu0 %v709
        %v1566 = vpop.f32.mrb[0].mxu0
        %v1567 = vadd.f32 %v1262, %v1566
        %v1568 = vpop.f32.mrb[0].mxu0
        %v1569 = vpop.f32.mrb[0].mxu0
        %v1570 = vadd.f32 %v1265, %v1569
        %v1571 = vpop.f32.mrb[0].mxu0
        %1572 = vmatprep.mubr.bf16.mxu0 %v713
        %1573 = vmatmul.mubr.bf16.gmra.mrb[0].mxu0 %v712
        %v1574 = vpop.f32.mrb[0].mxu0
        %v1575 = vadd.f32 %v1270, %v1574
        %v1576 = vpop.f32.mrb[0].mxu0
        %v1577 = vpop.f32.mrb[0].mxu0
        %v1578 = vadd.f32 %v1273, %v1577
        %v1579 = vpop.f32.mrb[0].mxu0
        %1580 = vmatprep.mubr.bf16.mxu0 %v716
        %1581 = vmatmul.mubr.bf16.gmra.mrb[0].mxu0 %v715
        %v1582 = vpop.f32.mrb[0].mxu0
        %v1583 = vadd.f32 %v1278, %v1582
        %v1584 = vpop.f32.mrb[0].mxu0
        %v1585 = vpop.f32.mrb[0].mxu0
        %v1586 = vadd.f32 %v1281, %v1585
        %v1587 = vpop.f32.mrb[0].mxu0
        %1588 = vdwg.mxu0
        %1589 = vmatprep.subr.bf16.mxu0 0
        %1590 = vmatpush1.bf16.msra.mxu0 %v1396
        %1591 = vmatprep.subr.bf16.mxu0 0
        %1592 = vmatpush1.bf16.msra.mxu0 %v1397
        %1593 = vmatprep.subr.bf16.mxu0 0
        %1594 = vmatpush1.bf16.msra.mxu0 %v1398
        %1595 = vmatprep.subr.bf16.mxu0 0
        %1596 = vmatpush1.bf16.msra.mxu0 %v1399
        %1597 = vmatprep.subr.bf16.mxu0 0
        %1598 = vmatpush1.bf16.msra.mxu0 %v1400
        %1599 = vmatprep.subr.bf16.mxu0 0
        %1600 = vmatpush1.bf16.msra.mxu0 %v1401
        %1601 = vmatprep.subr.bf16.mxu0 0
        %1602 = vmatpush1.bf16.msra.mxu0 %v1402
        %1603 = vmatprep.subr.bf16.mxu0 0
        %1604 = vmatpush1.bf16.msra.mxu0 %v1403
        %1605 = vmatprep.subr.bf16.mxu0 0
        %1606 = vmatpush1.bf16.msra.mxu0 0
        %1607 = vmatprep.subr.bf16.mxu0 0
        %1608 = vmatpush1.bf16.msra.mxu0 0
        %1609 = vmatprep.subr.bf16.mxu0 0
        %1610 = vmatpush1.bf16.msra.mxu0 0
        %1611 = vmatprep.subr.bf16.mxu0 0
        %1612 = vmatpush1.bf16.msra.mxu0 0
        %1613 = vmatprep.subr.bf16.mxu0 0
        %1614 = vmatpush1.bf16.msra.mxu0 0
        %1615 = vmatprep.subr.bf16.mxu0 0
        %1616 = vmatpush1.bf16.msra.mxu0 0
        %1617 = vmatprep.subr.bf16.mxu0 0
        %1618 = vmatpush1.bf16.msra.mxu0 0
        %1619 = vmatprep.subr.bf16.mxu0 0
        %1620 = vmatpush1.bf16.msra.mxu0 0
        %1621 = vmatprep.mubr.bf16.mxu0 0
        %1622 = vmatmul.mubr.bf16.gmra.mrb[0].mxu0 %v672
        %v1623 = vpop.f32.mrb[0].mxu0
        %v1624 = vadd.f32 %v1463, %v1623
        %v1625 = vpop.f32.mrb[0].mxu0
        %v1626 = vpop.f32.mrb[0].mxu0
        %v1627 = vadd.f32 %v1466, %v1626
        %v1628 = vpop.f32.mrb[0].mxu0
        %1629 = vmatprep.mubr.bf16.mxu0 0
        %1630 = vmatmul.mubr.bf16.gmra.mrb[0].mxu0 %v675
        %v1631 = vpop.f32.mrb[0].mxu0
        %v1632 = vadd.f32 %v1471, %v1631
        %v1633 = vpop.f32.mrb[0].mxu0
        %v1634 = vpop.f32.mrb[0].mxu0
        %v1635 = vadd.f32 %v1474, %v1634
        %v1636 = vpop.f32.mrb[0].mxu0
        %1637 = vmatprep.mubr.bf16.mxu0 0
        %1638 = vmatmul.mubr.bf16.gmra.mrb[0].mxu0 %v678
        %v1639 = vpop.f32.mrb[0].mxu0
        %v1640 = vadd.f32 %v1479, %v1639
        %v1641 = vpop.f32.mrb[0].mxu0
        %v1642 = vpop.f32.mrb[0].mxu0
        %v1643 = vadd.f32 %v1482, %v1642
        %v1644 = vpop.f32.mrb[0].mxu0
        %1645 = vmatprep.mubr.bf16.mxu0 0
        %1646 = vmatmul.mubr.bf16.gmra.mrb[0].mxu0 %v681
        %v1647 = vpop.f32.mrb[0].mxu0
        %v1648 = vadd.f32 %v1487, %v1647
        %v1649 = vpop.f32.mrb[0].mxu0
        %v1650 = vpop.f32.mrb[0].mxu0
        %v1651 = vadd.f32 %v1490, %v1650
        %v1652 = vpop.f32.mrb[0].mxu0
        %1653 = vmatprep.mubr.bf16.mxu0 0
        %1654 = vmatmul.mubr.bf16.gmra.mrb[0].mxu0 %v684
        %v1655 = vpop.f32.mrb[0].mxu0
        %v1656 = vadd.f32 %v1495, %v1655
        %v1657 = vpop.f32.mrb[0].mxu0
        %v1658 = vpop.f32.mrb[0].mxu0
        %v1659 = vadd.f32 %v1498, %v1658
        %v1660 = vpop.f32.mrb[0].mxu0
        %1661 = vmatprep.mubr.bf16.mxu0 0
        %1662 = vmatmul.mubr.bf16.gmra.mrb[0].mxu0 %v687
        %v1663 = vpop.f32.mrb[0].mxu0
        %v1664 = vadd.f32 %v1503, %v1663
        %v1665 = vpop.f32.mrb[0].mxu0
        %v1666 = vpop.f32.mrb[0].mxu0
        %v1667 = vadd.f32 %v1506, %v1666
        %v1668 = vpop.f32.mrb[0].mxu0
        %1669 = vmatprep.mubr.bf16.mxu0 0
        %1670 = vmatmul.mubr.bf16.gmra.mrb[0].mxu0 %v690
        %v1671 = vpop.f32.mrb[0].mxu0
        %v1672 = vadd.f32 %v1511, %v1671
        %v1673 = vpop.f32.mrb[0].mxu0
        %v1674 = vpop.f32.mrb[0].mxu0
        %v1675 = vadd.f32 %v1514, %v1674
        %v1676 = vpop.f32.mrb[0].mxu0
        %1677 = vmatprep.mubr.bf16.mxu0 0
        %1678 = vmatmul.mubr.bf16.gmra.mrb[0].mxu0 %v693
        %v1679 = vpop.f32.mrb[0].mxu0
        %v1680 = vadd.f32 %v1519, %v1679
        %v1681 = vpop.f32.mrb[0].mxu0
        %v1682 = vpop.f32.mrb[0].mxu0
        %v1683 = vadd.f32 %v1522, %v1682
        %v1684 = vpop.f32.mrb[0].mxu0
        %1685 = vmatprep.mubr.bf16.mxu0 0
        %1686 = vmatmul.mubr.bf16.gmra.mrb[0].mxu0 %v696
        %v1687 = vpop.f32.mrb[0].mxu0
        %v1688 = vadd.f32 %v1527, %v1687
        %v1689 = vpop.f32.mrb[0].mxu0
        %v1690 = vpop.f32.mrb[0].mxu0
        %v1691 = vadd.f32 %v1530, %v1690
        %v1692 = vpop.f32.mrb[0].mxu0
        %1693 = vmatprep.mubr.bf16.mxu0 0
        %1694 = vmatmul.mubr.bf16.gmra.mrb[0].mxu0 %v699
        %v1695 = vpop.f32.mrb[0].mxu0
        %v1696 = vadd.f32 %v1535, %v1695
        %v1697 = vpop.f32.mrb[0].mxu0
        %v1698 = vpop.f32.mrb[0].mxu0
        %v1699 = vadd.f32 %v1538, %v1698
        %v1700 = vpop.f32.mrb[0].mxu0
        %1701 = vmatprep.mubr.bf16.mxu0 0
        %1702 = vmatmul.mubr.bf16.gmra.mrb[0].mxu0 %v702
        %v1703 = vpop.f32.mrb[0].mxu0
        %v1704 = vadd.f32 %v1543, %v1703
        %v1705 = vpop.f32.mrb[0].mxu0
        %v1706 = vpop.f32.mrb[0].mxu0
        %v1707 = vadd.f32 %v1546, %v1706
        %v1708 = vpop.f32.mrb[0].mxu0
        %1709 = vmatprep.mubr.bf16.mxu0 0
        %1710 = vmatmul.mubr.bf16.gmra.mrb[0].mxu0 %v705
        %v1711 = vpop.f32.mrb[0].mxu0
        %v1712 = vadd.f32 %v1551, %v1711
        %v1713 = vpop.f32.mrb[0].mxu0
        %v1714 = vpop.f32.mrb[0].mxu0
        %v1715 = vadd.f32 %v1554, %v1714
        %v1716 = vpop.f32.mrb[0].mxu0
        %1717 = vmatprep.mubr.bf16.mxu0 0
        %1718 = vmatmul.mubr.bf16.gmra.mrb[0].mxu0 %v708
        %v1719 = vpop.f32.mrb[0].mxu0
        %v1720 = vadd.f32 %v1559, %v1719
        %v1721 = vpop.f32.mrb[0].mxu0
        %v1722 = vpop.f32.mrb[0].mxu0
        %v1723 = vadd.f32 %v1562, %v1722
        %v1724 = vpop.f32.mrb[0].mxu0
        %1725 = vmatprep.mubr.bf16.mxu0 0
        %1726 = vmatmul.mubr.bf16.gmra.mrb[0].mxu0 %v711
        %v1727 = vpop.f32.mrb[0].mxu0
        %v1728 = vadd.f32 %v1567, %v1727
        %v1729 = vpop.f32.mrb[0].mxu0
        %v1730 = vpop.f32.mrb[0].mxu0
        %v1731 = vadd.f32 %v1570, %v1730
        %v1732 = vpop.f32.mrb[0].mxu0
        %1733 = vmatprep.mubr.bf16.mxu0 0
        %1734 = vmatmul.mubr.bf16.gmra.mrb[0].mxu0 %v714
        %v1735 = vpop.f32.mrb[0].mxu0
        %v1736 = vadd.f32 %v1575, %v1735
        %v1737 = vpop.f32.mrb[0].mxu0
        %v1738 = vpop.f32.mrb[0].mxu0
        %v1739 = vadd.f32 %v1578, %v1738
        %v1740 = vpop.f32.mrb[0].mxu0
        %1741 = vmatprep.mubr.bf16.mxu0 0
        %1742 = vmatmul.mubr.bf16.gmra.mrb[0].mxu0 %v717
        %v1743 = vpop.f32.mrb[0].mxu0
        %v1744 = vadd.f32 %v1583, %v1743
        %v1745 = vpop.f32.mrb[0].mxu0
        %v1746 = vpop.f32.mrb[0].mxu0
        %v1747 = vadd.f32 %v1586, %v1746
        %v1748 = vpop.f32.mrb[0].mxu0
        %1749 = vdwg.mxu0
        %v1750 = vld [vmem:[#allocation2 + $0x30] sm:$0xff]
        %v1751 = vld [vmem:[#allocation2 + $0x38] sm:$0xff]
        %v1752 = vld [vmem:[#allocation2 + $0x40] sm:$0xff]
        %v1753 = vld [vmem:[#allocation2 + $0x48] sm:$0xff]
        %v1754 = vld [vmem:[#allocation2 + $0x50] sm:$0xff]
        %v1755 = vld [vmem:[#allocation2 + $0x58] sm:$0xff]
        %v1756 = vld [vmem:[#allocation2 + $0x60] sm:$0xff]
        %v1757 = vld [vmem:[#allocation2 + $0x68] sm:$0xff]
        %v1758 = vld [vmem:[#allocation2 + $0x70] sm:$0xff]
        %v1759 = vld [vmem:[#allocation2 + $0x78] sm:$0xff]
        %v1760 = vld [vmem:[#allocation2 + $0x80] sm:$0xff]
        %v1761 = vld [vmem:[#allocation2 + $0x88] sm:$0xff]
        %v1762 = vld [vmem:[#allocation2 + $0x90] sm:$0xff]
        %v1763 = vld [vmem:[#allocation2 + $0x98] sm:$0xff]
        %v1764 = vld [vmem:[#allocation2 + $0xa0] sm:$0xff]
        %v1765 = vld [vmem:[#allocation2 + $0xa8] sm:$0xff]
        %v1766 = vld [vmem:[#allocation2 + $0xb0] sm:$0xff]
        %v1767 = vld [vmem:[#allocation2 + $0xb8] sm:$0xff]
        %v1768 = vld [vmem:[#allocation2 + $0xc0] sm:$0xff]
        %v1769 = vld [vmem:[#allocation2 + $0xc8] sm:$0xff]
        %v1770 = vld [vmem:[#allocation2 + $0xd0] sm:$0xff]
        %v1771 = vld [vmem:[#allocation2 + $0xd8] sm:$0xff]
        %v1772 = vld [vmem:[#allocation2 + $0xe0] sm:$0xff]
        %v1773 = vld [vmem:[#allocation2 + $0xe8] sm:$0xff]
        %v1774 = vld [vmem:[#allocation2 + $0xf0] sm:$0xff]
        %v1775 = vld [vmem:[#allocation2 + $0xf8] sm:$0xff]
        %v1776 = vld [vmem:[#allocation2 + $0x100] sm:$0xff]
        %v1777 = vld [vmem:[#allocation2 + $0x108] sm:$0xff]
        %v1778 = vld [vmem:[#allocation2 + $0x110] sm:$0xff]
        %v1779 = vld [vmem:[#allocation2 + $0x118] sm:$0xff]
        %v1780 = vld [vmem:[#allocation2 + $0x120] sm:$0xff]
        %v1781 = vld [vmem:[#allocation2 + $0x128] sm:$0xff]
        %v1782 = vld [vmem:[#allocation2 + $0x130] sm:$0xff]
        %v1783 = vld [vmem:[#allocation2 + $0x138] sm:$0xff]
        %v1784 = vld [vmem:[#allocation2 + $0x140] sm:$0xff]
        %v1785 = vld [vmem:[#allocation2 + $0x148] sm:$0xff]
        %v1786 = vld [vmem:[#allocation2 + $0x150] sm:$0xff]
        %v1787 = vld [vmem:[#allocation2 + $0x158] sm:$0xff]
        %v1788 = vld [vmem:[#allocation2 + $0x160] sm:$0xff]
        %v1789 = vld [vmem:[#allocation2 + $0x168] sm:$0xff]
        %v1790 = vld [vmem:[#allocation2 + $0x170] sm:$0xff]
        %v1791 = vld [vmem:[#allocation2 + $0x178] sm:$0xff]
        %v1792 = vld [vmem:[#allocation2 + $0x180] sm:$0xff]
        %v1793 = vld [vmem:[#allocation2 + $0x188] sm:$0xff]
        %v1794 = vld [vmem:[#allocation2 + $0x190] sm:$0xff]
        %v1795 = vld [vmem:[#allocation2 + $0x198] sm:$0xff]
        %v1796 = vld [vmem:[#allocation2 + $0x1a0] sm:$0xff]
        %v1797 = vld [vmem:[#allocation2 + $0x1a8] sm:$0xff]
        %s1798 = scalar_lea.vmem [#allocation8], 384
        %v1799 = vld [vmem:[%s1798] sm:$0xf]
        %v1800 = vld [vmem:[%s1798 + $0x4] sm:$0xf]
        %v1801 = vld [vmem:[%s1798 + $0x8] sm:$0xf]
        %v1802 = vld [vmem:[%s1798 + $0xc] sm:$0xf]
        %v1803 = vld [vmem:[%s1798 + $0x10] sm:$0xf]
        %v1804 = vld [vmem:[%s1798 + $0x14] sm:$0xf]
        %v1805 = vld [vmem:[%s1798 + $0x18] sm:$0xf]
        %v1806 = vld [vmem:[%s1798 + $0x1c] sm:$0xf]
        %v1807 = vld [vmem:[%s1798 + $0x20] sm:$0xf]
        %v1808 = vld [vmem:[%s1798 + $0x24] sm:$0xf]
        %v1809 = vld [vmem:[%s1798 + $0x28] sm:$0xf]
        %v1810 = vld [vmem:[%s1798 + $0x2c] sm:$0xf]
        %v1811 = vld [vmem:[%s1798 + $0x30] sm:$0xf]
        %v1812 = vld [vmem:[%s1798 + $0x34] sm:$0xf]
        %v1813 = vld [vmem:[%s1798 + $0x38] sm:$0xf]
        %v1814 = vld [vmem:[%s1798 + $0x3c] sm:$0xf]
        %v1815 = vld [vmem:[%s1798 + $0x40] sm:$0xf]
        %v1816 = vld [vmem:[%s1798 + $0x44] sm:$0xf]
        %v1817 = vld [vmem:[%s1798 + $0x48] sm:$0xf]
        %v1818 = vld [vmem:[%s1798 + $0x4c] sm:$0xf]
        %v1819 = vld [vmem:[%s1798 + $0x50] sm:$0xf]
        %v1820 = vld [vmem:[%s1798 + $0x54] sm:$0xf]
        %v1821 = vld [vmem:[%s1798 + $0x58] sm:$0xf]
        %v1822 = vld [vmem:[%s1798 + $0x5c] sm:$0xf]
        %v1823 = vld [vmem:[%s1798 + $0x60] sm:$0xf]
        %v1824 = vld [vmem:[%s1798 + $0x64] sm:$0xf]
        %v1825 = vld [vmem:[%s1798 + $0x68] sm:$0xf]
        %v1826 = vld [vmem:[%s1798 + $0x6c] sm:$0xf]
        %v1827 = vld [vmem:[%s1798 + $0x70] sm:$0xf]
        %v1828 = vld [vmem:[%s1798 + $0x74] sm:$0xf]
        %v1829 = vld [vmem:[%s1798 + $0x78] sm:$0xf]
        %v1830 = vld [vmem:[%s1798 + $0x7c] sm:$0xf]
        %v1831 = vld [vmem:[%s1798 + $0x80] sm:$0xf]
        %v1832 = vld [vmem:[%s1798 + $0x84] sm:$0xf]
        %v1833 = vld [vmem:[%s1798 + $0x88] sm:$0xf]
        %v1834 = vld [vmem:[%s1798 + $0x8c] sm:$0xf]
        %v1835 = vld [vmem:[%s1798 + $0x90] sm:$0xf]
        %v1836 = vld [vmem:[%s1798 + $0x94] sm:$0xf]
        %v1837 = vld [vmem:[%s1798 + $0x98] sm:$0xf]
        %v1838 = vld [vmem:[%s1798 + $0x9c] sm:$0xf]
        %v1839 = vld [vmem:[%s1798 + $0xa0] sm:$0xf]
        %v1840 = vld [vmem:[%s1798 + $0xa4] sm:$0xf]
        %v1841 = vld [vmem:[%s1798 + $0xa8] sm:$0xf]
        %v1842 = vld [vmem:[%s1798 + $0xac] sm:$0xf]
        %v1843 = vld [vmem:[%s1798 + $0xb0] sm:$0xf]
        %v1844 = vld [vmem:[%s1798 + $0xb4] sm:$0xf]
        %v1845 = vld [vmem:[%s1798 + $0xb8] sm:$0xf]
        %v1846 = vld [vmem:[%s1798 + $0xbc] sm:$0xf]
        %v1895 = vunpack.c.l.b16 %v1799
        %v1896 = vunpack.c.l.b16 %v1800
        %v1897 = vunpack.c.l.b16 %v1801
        %v1898 = vunpack.c.l.b16 %v1802
        %v1899 = vunpack.c.l.b16 %v1803
        %v1900 = vunpack.c.l.b16 %v1804
        %v1901 = vunpack.c.l.b16 %v1805
        %v1902 = vunpack.c.l.b16 %v1806
        %v1903 = vunpack.c.l.b16 %v1807
        %v1904 = vunpack.c.l.b16 %v1808
        %v1905 = vunpack.c.l.b16 %v1809
        %v1906 = vunpack.c.l.b16 %v1810
        %v1907 = vunpack.c.l.b16 %v1811
        %v1908 = vunpack.c.l.b16 %v1812
        %v1909 = vunpack.c.l.b16 %v1813
        %v1910 = vunpack.c.l.b16 %v1814
        %v1911 = vunpack.c.l.b16 %v1815
        %v1912 = vunpack.c.l.b16 %v1816
        %v1913 = vunpack.c.l.b16 %v1817
        %v1914 = vunpack.c.l.b16 %v1818
        %v1915 = vunpack.c.l.b16 %v1819
        %v1916 = vunpack.c.l.b16 %v1820
        %v1917 = vunpack.c.l.b16 %v1821
        %v1918 = vunpack.c.l.b16 %v1822
        %v1919 = vunpack.c.l.b16 %v1823
        %v1920 = vunpack.c.l.b16 %v1824
        %v1921 = vunpack.c.l.b16 %v1825
        %v1922 = vunpack.c.l.b16 %v1826
        %v1923 = vunpack.c.l.b16 %v1827
        %v1924 = vunpack.c.l.b16 %v1828
        %v1925 = vunpack.c.l.b16 %v1829
        %v1926 = vunpack.c.l.b16 %v1830
        %v1927 = vunpack.c.l.b16 %v1831
        %v1928 = vunpack.c.l.b16 %v1832
        %v1929 = vunpack.c.l.b16 %v1833
        %v1930 = vunpack.c.l.b16 %v1834
        %v1931 = vunpack.c.l.b16 %v1835
        %v1932 = vunpack.c.l.b16 %v1836
        %v1933 = vunpack.c.l.b16 %v1837
        %v1934 = vunpack.c.l.b16 %v1838
        %v1935 = vunpack.c.l.b16 %v1839
        %v1936 = vunpack.c.l.b16 %v1840
        %v1937 = vunpack.c.l.b16 %v1841
        %v1938 = vunpack.c.l.b16 %v1842
        %v1939 = vunpack.c.l.b16 %v1843
        %v1940 = vunpack.c.l.b16 %v1844
        %v1941 = vunpack.c.l.b16 %v1845
        %v1942 = vunpack.c.l.b16 %v1846
        %v1943 = vpack.c.b16 %v1896, %v1895
        %v1944 = vpack.c.b16 %v1898, %v1897
        %v1945 = vpack.c.b16 %v1900, %v1899
        %v1946 = vpack.c.b16 %v1902, %v1901
        %v1947 = vpack.c.b16 %v1904, %v1903
        %v1948 = vpack.c.b16 %v1906, %v1905
        %v1949 = vpack.c.b16 %v1908, %v1907
        %v1950 = vpack.c.b16 %v1910, %v1909
        %v1951 = vpack.c.b16 %v1912, %v1911
        %v1952 = vpack.c.b16 %v1914, %v1913
        %v1953 = vpack.c.b16 %v1916, %v1915
        %v1954 = vpack.c.b16 %v1918, %v1917
        %v1955 = vpack.c.b16 %v1920, %v1919
        %v1956 = vpack.c.b16 %v1922, %v1921
        %v1957 = vpack.c.b16 %v1924, %v1923
        %v1958 = vpack.c.b16 %v1926, %v1925
        %v1959 = vpack.c.b16 %v1928, %v1927
        %v1960 = vpack.c.b16 %v1930, %v1929
        %v1961 = vpack.c.b16 %v1932, %v1931
        %v1962 = vpack.c.b16 %v1934, %v1933
        %v1963 = vpack.c.b16 %v1936, %v1935
        %v1964 = vpack.c.b16 %v1938, %v1937
        %v1965 = vpack.c.b16 %v1940, %v1939
        %v1966 = vpack.c.b16 %v1942, %v1941
        %1991 = vmatprep.subr.bf16.mxu0 0
        %1992 = vmatpush1.bf16.msra.mxu0 %v1943
        %1993 = vmatprep.subr.bf16.mxu0 0
        %1994 = vmatpush1.bf16.msra.mxu0 %v1944
        %1995 = vmatprep.subr.bf16.mxu0 0
        %1996 = vmatpush1.bf16.msra.mxu0 %v1945
        %1997 = vmatprep.subr.bf16.mxu0 0
        %1998 = vmatpush1.bf16.msra.mxu0 %v1946
        %1999 = vmatprep.subr.bf16.mxu0 0
        %2000 = vmatpush1.bf16.msra.mxu0 %v1947
        %2001 = vmatprep.subr.bf16.mxu0 0
        %2002 = vmatpush1.bf16.msra.mxu0 %v1948
        %2003 = vmatprep.subr.bf16.mxu0 0
        %2004 = vmatpush1.bf16.msra.mxu0 %v1949
        %2005 = vmatprep.subr.bf16.mxu0 0
        %2006 = vmatpush1.bf16.msra.mxu0 %v1950
        %2007 = vmatprep.subr.bf16.mxu0 0
        %2008 = vmatpush1.bf16.msra.mxu0 %v1951
        %2009 = vmatprep.subr.bf16.mxu0 0
        %2010 = vmatpush1.bf16.msra.mxu0 %v1952
        %2011 = vmatprep.subr.bf16.mxu0 0
        %2012 = vmatpush1.bf16.msra.mxu0 %v1953
        %2013 = vmatprep.subr.bf16.mxu0 0
        %2014 = vmatpush1.bf16.msra.mxu0 %v1954
        %2015 = vmatprep.subr.bf16.mxu0 0
        %2016 = vmatpush1.bf16.msra.mxu0 %v1955
        %2017 = vmatprep.subr.bf16.mxu0 0
        %2018 = vmatpush1.bf16.msra.mxu0 %v1956
        %2019 = vmatprep.subr.bf16.mxu0 0
        %2020 = vmatpush1.bf16.msra.mxu0 %v1957
        %2021 = vmatprep.subr.bf16.mxu0 0
        %2022 = vmatpush1.bf16.msra.mxu0 %v1958
        %2023 = vmatprep.mubr.bf16.mxu0 %v1751
        %2024 = vmatmul.mubr.bf16.gmra.mrb[0].mxu0 %v1750
        %v2025 = vpop.f32.mrb[0].mxu0
        %v2026 = vadd.f32 0.0, %v2025
        %v2027 = vpop.f32.mrb[0].mxu0
        %v2028 = vpop.f32.mrb[0].mxu0
        %v2029 = vadd.f32 0.0, %v2028
        %v2030 = vpop.f32.mrb[0].mxu0
        %2031 = vmatprep.mubr.bf16.mxu0 %v1754
        %2032 = vmatmul.mubr.bf16.gmra.mrb[0].mxu0 %v1753
        %v2033 = vpop.f32.mrb[0].mxu0
        %v2034 = vadd.f32 0.0, %v2033
        %v2035 = vpop.f32.mrb[0].mxu0
        %v2036 = vpop.f32.mrb[0].mxu0
        %v2037 = vadd.f32 0.0, %v2036
        %v2038 = vpop.f32.mrb[0].mxu0
        %2039 = vmatprep.mubr.bf16.mxu0 %v1757
        %2040 = vmatmul.mubr.bf16.gmra.mrb[0].mxu0 %v1756
        %v2041 = vpop.f32.mrb[0].mxu0
        %v2042 = vadd.f32 0.0, %v2041
        %v2043 = vpop.f32.mrb[0].mxu0
        %v2044 = vpop.f32.mrb[0].mxu0
        %v2045 = vadd.f32 0.0, %v2044
        %v2046 = vpop.f32.mrb[0].mxu0
        %2047 = vmatprep.mubr.bf16.mxu0 %v1760
        %2048 = vmatmul.mubr.bf16.gmra.mrb[0].mxu0 %v1759
        %v2049 = vpop.f32.mrb[0].mxu0
        %v2050 = vadd.f32 0.0, %v2049
        %v2051 = vpop.f32.mrb[0].mxu0
        %v2052 = vpop.f32.mrb[0].mxu0
        %v2053 = vadd.f32 0.0, %v2052
        %v2054 = vpop.f32.mrb[0].mxu0
        %2055 = vmatprep.mubr.bf16.mxu0 %v1763
        %2056 = vmatmul.mubr.bf16.gmra.mrb[0].mxu0 %v1762
        %v2057 = vpop.f32.mrb[0].mxu0
        %v2058 = vadd.f32 0.0, %v2057
        %v2059 = vpop.f32.mrb[0].mxu0
        %v2060 = vpop.f32.mrb[0].mxu0
        %v2061 = vadd.f32 0.0, %v2060
        %v2062 = vpop.f32.mrb[0].mxu0
        %2063 = vmatprep.mubr.bf16.mxu0 %v1766
        %2064 = vmatmul.mubr.bf16.gmra.mrb[0].mxu0 %v1765
        %v2065 = vpop.f32.mrb[0].mxu0
        %v2066 = vadd.f32 0.0, %v2065
        %v2067 = vpop.f32.mrb[0].mxu0
        %v2068 = vpop.f32.mrb[0].mxu0
        %v2069 = vadd.f32 0.0, %v2068
        %v2070 = vpop.f32.mrb[0].mxu0
        %2071 = vmatprep.mubr.bf16.mxu0 %v1769
        %2072 = vmatmul.mubr.bf16.gmra.mrb[0].mxu0 %v1768
        %v2073 = vpop.f32.mrb[0].mxu0
        %v2074 = vadd.f32 0.0, %v2073
        %v2075 = vpop.f32.mrb[0].mxu0
        %v2076 = vpop.f32.mrb[0].mxu0
        %v2077 = vadd.f32 0.0, %v2076
        %v2078 = vpop.f32.mrb[0].mxu0
        %2079 = vmatprep.mubr.bf16.mxu0 %v1772
        %2080 = vmatmul.mubr.bf16.gmra.mrb[0].mxu0 %v1771
        %v2081 = vpop.f32.mrb[0].mxu0
        %v2082 = vadd.f32 0.0, %v2081
        %v2083 = vpop.f32.mrb[0].mxu0
        %v2084 = vpop.f32.mrb[0].mxu0
        %v2085 = vadd.f32 0.0, %v2084
        %v2086 = vpop.f32.mrb[0].mxu0
        %2087 = vmatprep.mubr.bf16.mxu0 %v1775
        %2088 = vmatmul.mubr.bf16.gmra.mrb[0].mxu0 %v1774
        %v2089 = vpop.f32.mrb[0].mxu0
        %v2090 = vadd.f32 0.0, %v2089
        %v2091 = vpop.f32.mrb[0].mxu0
        %v2092 = vpop.f32.mrb[0].mxu0
        %v2093 = vadd.f32 0.0, %v2092
        %v2094 = vpop.f32.mrb[0].mxu0
        %2095 = vmatprep.mubr.bf16.mxu0 %v1778
        %2096 = vmatmul.mubr.bf16.gmra.mrb[0].mxu0 %v1777
        %v2097 = vpop.f32.mrb[0].mxu0
        %v2098 = vadd.f32 0.0, %v2097
        %v2099 = vpop.f32.mrb[0].mxu0
        %v2100 = vpop.f32.mrb[0].mxu0
        %v2101 = vadd.f32 0.0, %v2100
        %v2102 = vpop.f32.mrb[0].mxu0
        %2103 = vmatprep.mubr.bf16.mxu0 %v1781
        %2104 = vmatmul.mubr.bf16.gmra.mrb[0].mxu0 %v1780
        %v2105 = vpop.f32.mrb[0].mxu0
        %v2106 = vadd.f32 0.0, %v2105
        %v2107 = vpop.f32.mrb[0].mxu0
        %v2108 = vpop.f32.mrb[0].mxu0
        %v2109 = vadd.f32 0.0, %v2108
        %v2110 = vpop.f32.mrb[0].mxu0
        %2111 = vmatprep.mubr.bf16.mxu0 %v1784
        %2112 = vmatmul.mubr.bf16.gmra.mrb[0].mxu0 %v1783
        %v2113 = vpop.f32.mrb[0].mxu0
        %v2114 = vadd.f32 0.0, %v2113
        %v2115 = vpop.f32.mrb[0].mxu0
        %v2116 = vpop.f32.mrb[0].mxu0
        %v2117 = vadd.f32 0.0, %v2116
        %v2118 = vpop.f32.mrb[0].mxu0
        %2119 = vmatprep.mubr.bf16.mxu0 %v1787
        %2120 = vmatmul.mubr.bf16.gmra.mrb[0].mxu0 %v1786
        %v2121 = vpop.f32.mrb[0].mxu0
        %v2122 = vadd.f32 0.0, %v2121
        %v2123 = vpop.f32.mrb[0].mxu0
        %v2124 = vpop.f32.mrb[0].mxu0
        %v2125 = vadd.f32 0.0, %v2124
        %v2126 = vpop.f32.mrb[0].mxu0
        %2127 = vmatprep.mubr.bf16.mxu0 %v1790
        %2128 = vmatmul.mubr.bf16.gmra.mrb[0].mxu0 %v1789
        %v2129 = vpop.f32.mrb[0].mxu0
        %v2130 = vadd.f32 0.0, %v2129
        %v2131 = vpop.f32.mrb[0].mxu0
        %v2132 = vpop.f32.mrb[0].mxu0
        %v2133 = vadd.f32 0.0, %v2132
        %v2134 = vpop.f32.mrb[0].mxu0
        %2135 = vmatprep.mubr.bf16.mxu0 %v1793
        %2136 = vmatmul.mubr.bf16.gmra.mrb[0].mxu0 %v1792
        %v2137 = vpop.f32.mrb[0].mxu0
        %v2138 = vadd.f32 0.0, %v2137
        %v2139 = vpop.f32.mrb[0].mxu0
        %v2140 = vpop.f32.mrb[0].mxu0
        %v2141 = vadd.f32 0.0, %v2140
        %v2142 = vpop.f32.mrb[0].mxu0
        %2143 = vmatprep.mubr.bf16.mxu0 %v1796
        %2144 = vmatmul.mubr.bf16.gmra.mrb[0].mxu0 %v1795
        %v2145 = vpop.f32.mrb[0].mxu0
        %v2146 = vadd.f32 0.0, %v2145
        %v2147 = vpop.f32.mrb[0].mxu0
        %v2148 = vpop.f32.mrb[0].mxu0
        %v2149 = vadd.f32 0.0, %v2148
        %v2150 = vpop.f32.mrb[0].mxu0
        %2151 = vdwg.mxu0
        %2152 = vmatprep.subr.bf16.mxu0 0
        %2153 = vmatpush1.bf16.msra.mxu0 %v1959
        %2154 = vmatprep.subr.bf16.mxu0 0
        %2155 = vmatpush1.bf16.msra.mxu0 %v1960
        %2156 = vmatprep.subr.bf16.mxu0 0
        %2157 = vmatpush1.bf16.msra.mxu0 %v1961
        %2158 = vmatprep.subr.bf16.mxu0 0
        %2159 = vmatpush1.bf16.msra.mxu0 %v1962
        %2160 = vmatprep.subr.bf16.mxu0 0
        %2161 = vmatpush1.bf16.msra.mxu0 %v1963
        %2162 = vmatprep.subr.bf16.mxu0 0
        %2163 = vmatpush1.bf16.msra.mxu0 %v1964
        %2164 = vmatprep.subr.bf16.mxu0 0
        %2165 = vmatpush1.bf16.msra.mxu0 %v1965
        %2166 = vmatprep.subr.bf16.mxu0 0
        %2167 = vmatpush1.bf16.msra.mxu0 %v1966
        %2168 = vmatprep.subr.bf16.mxu0 0
        %2169 = vmatpush1.bf16.msra.mxu0 0
        %2170 = vmatprep.subr.bf16.mxu0 0
        %2171 = vmatpush1.bf16.msra.mxu0 0
        %2172 = vmatprep.subr.bf16.mxu0 0
        %2173 = vmatpush1.bf16.msra.mxu0 0
        %2174 = vmatprep.subr.bf16.mxu0 0
        %2175 = vmatpush1.bf16.msra.mxu0 0
        %2176 = vmatprep.subr.bf16.mxu0 0
        %2177 = vmatpush1.bf16.msra.mxu0 0
        %2178 = vmatprep.subr.bf16.mxu0 0
        %2179 = vmatpush1.bf16.msra.mxu0 0
        %2180 = vmatprep.subr.bf16.mxu0 0
        %2181 = vmatpush1.bf16.msra.mxu0 0
        %2182 = vmatprep.subr.bf16.mxu0 0
        %2183 = vmatpush1.bf16.msra.mxu0 0
        %2184 = vmatprep.mubr.bf16.mxu0 0
        %2185 = vmatmul.mubr.bf16.gmra.mrb[0].mxu0 %v1752
        %v2186 = vpop.f32.mrb[0].mxu0
        %v2187 = vadd.f32 %v2026, %v2186
        %v2188 = vpop.f32.mrb[0].mxu0
        %v2189 = vpop.f32.mrb[0].mxu0
        %v2190 = vadd.f32 %v2029, %v2189
        %v2191 = vpop.f32.mrb[0].mxu0
        %2192 = vmatprep.mubr.bf16.mxu0 0
        %2193 = vmatmul.mubr.bf16.gmra.mrb[0].mxu0 %v1755
        %v2194 = vpop.f32.mrb[0].mxu0
        %v2195 = vadd.f32 %v2034, %v2194
        %v2196 = vpop.f32.mrb[0].mxu0
        %v2197 = vpop.f32.mrb[0].mxu0
        %v2198 = vadd.f32 %v2037, %v2197
        %v2199 = vpop.f32.mrb[0].mxu0
        %2200 = vmatprep.mubr.bf16.mxu0 0
        %2201 = vmatmul.mubr.bf16.gmra.mrb[0].mxu0 %v1758
        %v2202 = vpop.f32.mrb[0].mxu0
        %v2203 = vadd.f32 %v2042, %v2202
        %v2204 = vpop.f32.mrb[0].mxu0
        %v2205 = vpop.f32.mrb[0].mxu0
        %v2206 = vadd.f32 %v2045, %v2205
        %v2207 = vpop.f32.mrb[0].mxu0
        %2208 = vmatprep.mubr.bf16.mxu0 0
        %2209 = vmatmul.mubr.bf16.gmra.mrb[0].mxu0 %v1761
        %v2210 = vpop.f32.mrb[0].mxu0
        %v2211 = vadd.f32 %v2050, %v2210
        %v2212 = vpop.f32.mrb[0].mxu0
        %v2213 = vpop.f32.mrb[0].mxu0
        %v2214 = vadd.f32 %v2053, %v2213
        %v2215 = vpop.f32.mrb[0].mxu0
        %2216 = vmatprep.mubr.bf16.mxu0 0
        %2217 = vmatmul.mubr.bf16.gmra.mrb[0].mxu0 %v1764
        %v2218 = vpop.f32.mrb[0].mxu0
        %v2219 = vadd.f32 %v2058, %v2218
        %v2220 = vpop.f32.mrb[0].mxu0
        %v2221 = vpop.f32.mrb[0].mxu0
        %v2222 = vadd.f32 %v2061, %v2221
        %v2223 = vpop.f32.mrb[0].mxu0
        %2224 = vmatprep.mubr.bf16.mxu0 0
        %2225 = vmatmul.mubr.bf16.gmra.mrb[0].mxu0 %v1767
        %v2226 = vpop.f32.mrb[0].mxu0
        %v2227 = vadd.f32 %v2066, %v2226
        %v2228 = vpop.f32.mrb[0].mxu0
        %v2229 = vpop.f32.mrb[0].mxu0
        %v2230 = vadd.f32 %v2069, %v2229
        %v2231 = vpop.f32.mrb[0].mxu0
        %2232 = vmatprep.mubr.bf16.mxu0 0
        %2233 = vmatmul.mubr.bf16.gmra.mrb[0].mxu0 %v1770
        %v2234 = vpop.f32.mrb[0].mxu0
        %v2235 = vadd.f32 %v2074, %v2234
        %v2236 = vpop.f32.mrb[0].mxu0
        %v2237 = vpop.f32.mrb[0].mxu0
        %v2238 = vadd.f32 %v2077, %v2237
        %v2239 = vpop.f32.mrb[0].mxu0
        %2240 = vmatprep.mubr.bf16.mxu0 0
        %2241 = vmatmul.mubr.bf16.gmra.mrb[0].mxu0 %v1773
        %v2242 = vpop.f32.mrb[0].mxu0
        %v2243 = vadd.f32 %v2082, %v2242
        %v2244 = vpop.f32.mrb[0].mxu0
        %v2245 = vpop.f32.mrb[0].mxu0
        %v2246 = vadd.f32 %v2085, %v2245
        %v2247 = vpop.f32.mrb[0].mxu0
        %2248 = vmatprep.mubr.bf16.mxu0 0
        %2249 = vmatmul.mubr.bf16.gmra.mrb[0].mxu0 %v1776
        %v2250 = vpop.f32.mrb[0].mxu0
        %v2251 = vadd.f32 %v2090, %v2250
        %v2252 = vpop.f32.mrb[0].mxu0
        %v2253 = vpop.f32.mrb[0].mxu0
        %v2254 = vadd.f32 %v2093, %v2253
        %v2255 = vpop.f32.mrb[0].mxu0
        %2256 = vmatprep.mubr.bf16.mxu0 0
        %2257 = vmatmul.mubr.bf16.gmra.mrb[0].mxu0 %v1779
        %v2258 = vpop.f32.mrb[0].mxu0
        %v2259 = vadd.f32 %v2098, %v2258
        %v2260 = vpop.f32.mrb[0].mxu0
        %v2261 = vpop.f32.mrb[0].mxu0
        %v2262 = vadd.f32 %v2101, %v2261
        %v2263 = vpop.f32.mrb[0].mxu0
        %2264 = vmatprep.mubr.bf16.mxu0 0
        %2265 = vmatmul.mubr.bf16.gmra.mrb[0].mxu0 %v1782
        %v2266 = vpop.f32.mrb[0].mxu0
        %v2267 = vadd.f32 %v2106, %v2266
        %v2268 = vpop.f32.mrb[0].mxu0
        %v2269 = vpop.f32.mrb[0].mxu0
        %v2270 = vadd.f32 %v2109, %v2269
        %v2271 = vpop.f32.mrb[0].mxu0
        %2272 = vmatprep.mubr.bf16.mxu0 0
        %2273 = vmatmul.mubr.bf16.gmra.mrb[0].mxu0 %v1785
        %v2274 = vpop.f32.mrb[0].mxu0
        %v2275 = vadd.f32 %v2114, %v2274
        %v2276 = vpop.f32.mrb[0].mxu0
        %v2277 = vpop.f32.mrb[0].mxu0
        %v2278 = vadd.f32 %v2117, %v2277
        %v2279 = vpop.f32.mrb[0].mxu0
        %2280 = vmatprep.mubr.bf16.mxu0 0
        %2281 = vmatmul.mubr.bf16.gmra.mrb[0].mxu0 %v1788
        %v2282 = vpop.f32.mrb[0].mxu0
        %v2283 = vadd.f32 %v2122, %v2282
        %v2284 = vpop.f32.mrb[0].mxu0
        %v2285 = vpop.f32.mrb[0].mxu0
        %v2286 = vadd.f32 %v2125, %v2285
        %v2287 = vpop.f32.mrb[0].mxu0
        %2288 = vmatprep.mubr.bf16.mxu0 0
        %2289 = vmatmul.mubr.bf16.gmra.mrb[0].mxu0 %v1791
        %v2290 = vpop.f32.mrb[0].mxu0
        %v2291 = vadd.f32 %v2130, %v2290
        %v2292 = vpop.f32.mrb[0].mxu0
        %v2293 = vpop.f32.mrb[0].mxu0
        %v2294 = vadd.f32 %v2133, %v2293
        %v2295 = vpop.f32.mrb[0].mxu0
        %2296 = vmatprep.mubr.bf16.mxu0 0
        %2297 = vmatmul.mubr.bf16.gmra.mrb[0].mxu0 %v1794
        %v2298 = vpop.f32.mrb[0].mxu0
        %v2299 = vadd.f32 %v2138, %v2298
        %v2300 = vpop.f32.mrb[0].mxu0
        %v2301 = vpop.f32.mrb[0].mxu0
        %v2302 = vadd.f32 %v2141, %v2301
        %v2303 = vpop.f32.mrb[0].mxu0
        %2304 = vmatprep.mubr.bf16.mxu0 0
        %2305 = vmatmul.mubr.bf16.gmra.mrb[0].mxu0 %v1797
        %v2306 = vpop.f32.mrb[0].mxu0
        %v2307 = vadd.f32 %v2146, %v2306
        %v2308 = vpop.f32.mrb[0].mxu0
        %v2309 = vpop.f32.mrb[0].mxu0
        %v2310 = vadd.f32 %v2149, %v2309
        %v2311 = vpop.f32.mrb[0].mxu0
        %2312 = vdwg.mxu0
        %v2313 = vadd.f32 %v1624, %v2187
        %v2314 = vadd.f32 %v1627, %v2190
        %v2315 = vadd.f32 %v1632, %v2195
        %v2316 = vadd.f32 %v1635, %v2198
        %v2317 = vadd.f32 %v1640, %v2203
        %v2318 = vadd.f32 %v1643, %v2206
        %v2319 = vadd.f32 %v1648, %v2211
        %v2320 = vadd.f32 %v1651, %v2214
        %v2321 = vadd.f32 %v1656, %v2219
        %v2322 = vadd.f32 %v1659, %v2222
        %v2323 = vadd.f32 %v1664, %v2227
        %v2324 = vadd.f32 %v1667, %v2230
        %v2325 = vadd.f32 %v1672, %v2235
        %v2326 = vadd.f32 %v1675, %v2238
        %v2327 = vadd.f32 %v1680, %v2243
        %v2328 = vadd.f32 %v1683, %v2246
        %v2329 = vadd.f32 %v1688, %v2251
        %v2330 = vadd.f32 %v1691, %v2254
        %v2331 = vadd.f32 %v1696, %v2259
        %v2332 = vadd.f32 %v1699, %v2262
        %v2333 = vadd.f32 %v1704, %v2267
        %v2334 = vadd.f32 %v1707, %v2270
        %v2335 = vadd.f32 %v1712, %v2275
        %v2336 = vadd.f32 %v1715, %v2278
        %v2337 = vadd.f32 %v1720, %v2283
        %v2338 = vadd.f32 %v1723, %v2286
        %v2339 = vadd.f32 %v1728, %v2291
        %v2340 = vadd.f32 %v1731, %v2294
        %v2341 = vadd.f32 %v1736, %v2299
        %v2342 = vadd.f32 %v1739, %v2302
        %v2343 = vadd.f32 %v1744, %v2307
        %v2344 = vadd.f32 %v1747, %v2310
        %v2346 = vlaneseq
        %v2347 = vshrl.u32 %v2346, 7
        %v2348 = vsub.s32 0, %v2347
        %v2349 = vrot.slane %v669, %v2348
        %v2351 = vadd.f32 %v2313, %v2349
        %v2352 = vadd.f32 %v2314, %v2349
        %v2353 = vadd.f32 %v2315, %v2349
        %v2354 = vadd.f32 %v2316, %v2349
        %v2355 = vadd.f32 %v2317, %v2349
        %v2356 = vadd.f32 %v2318, %v2349
        %v2357 = vadd.f32 %v2319, %v2349
        %v2358 = vadd.f32 %v2320, %v2349
        %v2359 = vadd.f32 %v2321, %v2349
        %v2360 = vadd.f32 %v2322, %v2349
        %v2361 = vadd.f32 %v2323, %v2349
        %v2362 = vadd.f32 %v2324, %v2349
        %v2363 = vadd.f32 %v2325, %v2349
        %v2364 = vadd.f32 %v2326, %v2349
        %v2365 = vadd.f32 %v2327, %v2349
        %v2366 = vadd.f32 %v2328, %v2349
        %v2367 = vadd.f32 %v2329, %v2349
        %v2368 = vadd.f32 %v2330, %v2349
        %v2369 = vadd.f32 %v2331, %v2349
        %v2370 = vadd.f32 %v2332, %v2349
        %v2371 = vadd.f32 %v2333, %v2349
        %v2372 = vadd.f32 %v2334, %v2349
        %v2373 = vadd.f32 %v2335, %v2349
        %v2374 = vadd.f32 %v2336, %v2349
        %v2375 = vadd.f32 %v2337, %v2349
        %v2376 = vadd.f32 %v2338, %v2349
        %v2377 = vadd.f32 %v2339, %v2349
        %v2378 = vadd.f32 %v2340, %v2349
        %v2379 = vadd.f32 %v2341, %v2349
        %v2380 = vadd.f32 %v2342, %v2349
        %v2381 = vadd.f32 %v2343, %v2349
        %v2382 = vadd.f32 %v2344, %v2349
        %v2383 = vmax.f32 %v2351, 0.0
        %v2384 = vmax.f32 %v2352, 0.0
        %v2385 = vmax.f32 %v2353, 0.0
        %v2386 = vmax.f32 %v2354, 0.0
        %v2387 = vmax.f32 %v2355, 0.0
        %v2388 = vmax.f32 %v2356, 0.0
        %v2389 = vmax.f32 %v2357, 0.0
        %v2390 = vmax.f32 %v2358, 0.0
        %v2391 = vmax.f32 %v2359, 0.0
        %v2392 = vmax.f32 %v2360, 0.0
        %v2393 = vmax.f32 %v2361, 0.0
        %v2394 = vmax.f32 %v2362, 0.0
        %v2395 = vmax.f32 %v2363, 0.0
        %v2396 = vmax.f32 %v2364, 0.0
        %v2397 = vmax.f32 %v2365, 0.0
        %v2398 = vmax.f32 %v2366, 0.0
        %v2399 = vmax.f32 %v2367, 0.0
        %v2400 = vmax.f32 %v2368, 0.0
        %v2401 = vmax.f32 %v2369, 0.0
        %v2402 = vmax.f32 %v2370, 0.0
        %v2403 = vmax.f32 %v2371, 0.0
        %v2404 = vmax.f32 %v2372, 0.0
        %v2405 = vmax.f32 %v2373, 0.0
        %v2406 = vmax.f32 %v2374, 0.0
        %v2407 = vmax.f32 %v2375, 0.0
        %v2408 = vmax.f32 %v2376, 0.0
        %v2409 = vmax.f32 %v2377, 0.0
        %v2410 = vmax.f32 %v2378, 0.0
        %v2411 = vmax.f32 %v2379, 0.0
        %v2412 = vmax.f32 %v2380, 0.0
        %v2413 = vmax.f32 %v2381, 0.0
        %v2414 = vmax.f32 %v2382, 0.0
        %v2415 = vpack.c.bf16 %v2384, %v2383
        %v2416 = vpack.c.bf16 %v2386, %v2385
        %v2417 = vpack.c.bf16 %v2388, %v2387
        %v2418 = vpack.c.bf16 %v2390, %v2389
        %v2419 = vpack.c.bf16 %v2392, %v2391
        %v2420 = vpack.c.bf16 %v2394, %v2393
        %v2421 = vpack.c.bf16 %v2396, %v2395
        %v2422 = vpack.c.bf16 %v2398, %v2397
        %v2423 = vpack.c.bf16 %v2400, %v2399
        %v2424 = vpack.c.bf16 %v2402, %v2401
        %v2425 = vpack.c.bf16 %v2404, %v2403
        %v2426 = vpack.c.bf16 %v2406, %v2405
        %v2427 = vpack.c.bf16 %v2408, %v2407
        %v2428 = vpack.c.bf16 %v2410, %v2409
        %v2429 = vpack.c.bf16 %v2412, %v2411
        %v2430 = vpack.c.bf16 %v2414, %v2413
        %2431 = vst [vmem:[#allocation3] sm:$0xff] %v2415
        %2432 = vst [vmem:[#allocation3 + $0x8] sm:$0xff] %v2416
        %2433 = vst [vmem:[#allocation3 + $0x10] sm:$0xff] %v2417
        %2434 = vst [vmem:[#allocation3 + $0x18] sm:$0xff] %v2418
        %2435 = vst [vmem:[#allocation3 + $0x20] sm:$0xff] %v2419
        %2436 = vst [vmem:[#allocation3 + $0x28] sm:$0xff] %v2420
        %2437 = vst [vmem:[#allocation3 + $0x30] sm:$0xff] %v2421
        %2438 = vst [vmem:[#allocation3 + $0x38] sm:$0xff] %v2422
        %2439 = vst [vmem:[#allocation3 + $0x40] sm:$0xff] %v2423
        %2440 = vst [vmem:[#allocation3 + $0x48] sm:$0xff] %v2424
        %2441 = vst [vmem:[#allocation3 + $0x50] sm:$0xff] %v2425
        %2442 = vst [vmem:[#allocation3 + $0x58] sm:$0xff] %v2426
        %2443 = vst [vmem:[#allocation3 + $0x60] sm:$0xff] %v2427
        %2444 = vst [vmem:[#allocation3 + $0x68] sm:$0xff] %v2428
        %2445 = vst [vmem:[#allocation3 + $0x70] sm:$0xff] %v2429
        %2446 = vst [vmem:[#allocation3 + $0x78] sm:$0xff] %v2430
        %v2447 = vld [vmem:[#allocation3] sm:$0xff]
        %v2448 = vld [vmem:[#allocation3 + $0x8] sm:$0xff]
        %v2449 = vld [vmem:[#allocation3 + $0x10] sm:$0xff]
        %v2450 = vld [vmem:[#allocation3 + $0x18] sm:$0xff]
        %v2451 = vld [vmem:[#allocation3 + $0x20] sm:$0xff]
        %v2452 = vld [vmem:[#allocation3 + $0x28] sm:$0xff]
        %v2453 = vld [vmem:[#allocation3 + $0x30] sm:$0xff]
        %v2454 = vld [vmem:[#allocation3 + $0x38] sm:$0xff]
        %v2455 = vld [vmem:[#allocation3 + $0x40] sm:$0xff]
        %v2456 = vld [vmem:[#allocation3 + $0x48] sm:$0xff]
        %v2457 = vld [vmem:[#allocation3 + $0x50] sm:$0xff]
        %v2458 = vld [vmem:[#allocation3 + $0x58] sm:$0xff]
        %v2459 = vld [vmem:[#allocation3 + $0x60] sm:$0xff]
        %v2460 = vld [vmem:[#allocation3 + $0x68] sm:$0xff]
        %v2461 = vld [vmem:[#allocation3 + $0x70] sm:$0xff]
        %v2462 = vld [vmem:[#allocation3 + $0x78] sm:$0xff]
        %v2464 = vshrl.u32 %v2447, 16
        %v2466 = vrot.slane %v2464, 7
        %v2467 = vshll.u32 %v2447, 16
        %v2469 = vor.u32 %v2466, %v2467
        %v2471 = vshrl.u32 %v2448, 16
        %v2473 = vrot.slane %v2471, 7
        %v2474 = vshll.u32 %v2448, 16
        %v2476 = vor.u32 %v2473, %v2474
        %v2478 = vshrl.u32 %v2449, 16
        %v2480 = vrot.slane %v2478, 7
        %v2481 = vshll.u32 %v2449, 16
        %v2483 = vor.u32 %v2480, %v2481
        %v2485 = vshrl.u32 %v2450, 16
        %v2487 = vrot.slane %v2485, 7
        %v2488 = vshll.u32 %v2450, 16
        %v2490 = vor.u32 %v2487, %v2488
        %v2492 = vshrl.u32 %v2451, 16
        %v2494 = vrot.slane %v2492, 7
        %v2495 = vshll.u32 %v2451, 16
        %v2497 = vor.u32 %v2494, %v2495
        %v2499 = vshrl.u32 %v2452, 16
        %v2501 = vrot.slane %v2499, 7
        %v2502 = vshll.u32 %v2452, 16
        %v2504 = vor.u32 %v2501, %v2502
        %v2506 = vshrl.u32 %v2453, 16
        %v2508 = vrot.slane %v2506, 7
        %v2509 = vshll.u32 %v2453, 16
        %v2511 = vor.u32 %v2508, %v2509
        %v2513 = vshrl.u32 %v2454, 16
        %v2515 = vrot.slane %v2513, 7
        %v2516 = vshll.u32 %v2454, 16
        %v2518 = vor.u32 %v2515, %v2516
        %v2520 = vshrl.u32 %v2455, 16
        %v2522 = vrot.slane %v2520, 7
        %v2523 = vshll.u32 %v2455, 16
        %v2525 = vor.u32 %v2522, %v2523
        %v2527 = vshrl.u32 %v2456, 16
        %v2529 = vrot.slane %v2527, 7
        %v2530 = vshll.u32 %v2456, 16
        %v2532 = vor.u32 %v2529, %v2530
        %v2534 = vshrl.u32 %v2457, 16
        %v2536 = vrot.slane %v2534, 7
        %v2537 = vshll.u32 %v2457, 16
        %v2539 = vor.u32 %v2536, %v2537
        %v2541 = vshrl.u32 %v2458, 16
        %v2543 = vrot.slane %v2541, 7
        %v2544 = vshll.u32 %v2458, 16
        %v2546 = vor.u32 %v2543, %v2544
        %v2548 = vshrl.u32 %v2459, 16
        %v2550 = vrot.slane %v2548, 7
        %v2551 = vshll.u32 %v2459, 16
        %v2553 = vor.u32 %v2550, %v2551
        %v2555 = vshrl.u32 %v2460, 16
        %v2557 = vrot.slane %v2555, 7
        %v2558 = vshll.u32 %v2460, 16
        %v2560 = vor.u32 %v2557, %v2558
        %v2562 = vshrl.u32 %v2461, 16
        %v2564 = vrot.slane %v2562, 7
        %v2565 = vshll.u32 %v2461, 16
        %v2567 = vor.u32 %v2564, %v2565
        %v2569 = vshrl.u32 %v2462, 16
        %v2571 = vrot.slane %v2569, 7
        %v2572 = vshll.u32 %v2462, 16
        %v2574 = vor.u32 %v2571, %v2572
        %v2591 = vsel %vm515, 0, %v2469
        %v2592 = vsel %vm515, 0, %v2476
        %v2593 = vsel %vm515, 0, %v2483
        %v2594 = vsel %vm515, 0, %v2490
        %v2595 = vsel %vm515, 0, %v2497
        %v2596 = vsel %vm515, 0, %v2504
        %v2597 = vsel %vm515, 0, %v2511
        %v2598 = vsel %vm515, 0, %v2518
        %v2599 = vsel %vm515, 0, %v2525
        %v2600 = vsel %vm515, 0, %v2532
        %v2601 = vsel %vm515, 0, %v2539
        %v2602 = vsel %vm515, 0, %v2546
        %v2603 = vsel %vm515, 0, %v2553
        %v2604 = vsel %vm515, 0, %v2560
        %v2605 = vsel %vm515, 0, %v2567
        %v2606 = vsel %vm515, 0, %v2574
        %v2607 = vrot.slane %v2467, 1
        %v2608 = vor.u32 %v2464, %v2607
        %v2609 = vrot.slane %v2474, 1
        %v2610 = vor.u32 %v2471, %v2609
        %v2611 = vrot.slane %v2481, 1
        %v2612 = vor.u32 %v2478, %v2611
        %v2613 = vrot.slane %v2488, 1
        %v2614 = vor.u32 %v2485, %v2613
        %v2615 = vrot.slane %v2495, 1
        %v2616 = vor.u32 %v2492, %v2615
        %v2617 = vrot.slane %v2502, 1
        %v2618 = vor.u32 %v2499, %v2617
        %v2619 = vrot.slane %v2509, 1
        %v2620 = vor.u32 %v2506, %v2619
        %v2621 = vrot.slane %v2516, 1
        %v2622 = vor.u32 %v2513, %v2621
        %v2623 = vrot.slane %v2523, 1
        %v2624 = vor.u32 %v2520, %v2623
        %v2625 = vrot.slane %v2530, 1
        %v2626 = vor.u32 %v2527, %v2625
        %v2627 = vrot.slane %v2537, 1
        %v2628 = vor.u32 %v2534, %v2627
        %v2629 = vrot.slane %v2544, 1
        %v2630 = vor.u32 %v2541, %v2629
        %v2631 = vrot.slane %v2551, 1
        %v2632 = vor.u32 %v2548, %v2631
        %v2633 = vrot.slane %v2558, 1
        %v2634 = vor.u32 %v2555, %v2633
        %v2635 = vrot.slane %v2565, 1
        %v2636 = vor.u32 %v2562, %v2635
        %v2637 = vrot.slane %v2572, 1
        %v2638 = vor.u32 %v2569, %v2637
        %v2655 = vsel %vm582, %v2608, 0
        %v2656 = vsel %vm582, %v2610, 0
        %v2657 = vsel %vm582, %v2612, 0
        %v2658 = vsel %vm582, %v2614, 0
        %v2659 = vsel %vm582, %v2616, 0
        %v2660 = vsel %vm582, %v2618, 0
        %v2661 = vsel %vm582, %v2620, 0
        %v2662 = vsel %vm582, %v2622, 0
        %v2663 = vsel %vm582, %v2624, 0
        %v2664 = vsel %vm582, %v2626, 0
        %v2665 = vsel %vm582, %v2628, 0
        %v2666 = vsel %vm582, %v2630, 0
        %v2667 = vsel %vm582, %v2632, 0
        %v2668 = vsel %vm582, %v2634, 0
        %v2669 = vsel %vm582, %v2636, 0
        %v2670 = vsel %vm582, %v2638, 0
        %2671 = vst [vmem:[#allocation4] sm:$0xff] 0
        %2672 = vst [vmem:[#allocation4 + $0x8] sm:$0xff] 0
        %2673 = vst [vmem:[#allocation4 + $0x10] sm:$0xff] 0
        %2674 = vst [vmem:[#allocation4 + $0x198] sm:$0xff] 0
        %2675 = vst [vmem:[#allocation4 + $0x1a0] sm:$0xff] 0
        %2676 = vst [vmem:[#allocation4 + $0x1a8] sm:$0xff] 0
        %2677 = vst [vmem:[#allocation4 + $0x18] sm:$0xff] %v2591
        %2678 = vst [vmem:[#allocation4 + $0x20] sm:$0xff] %v2447
        %2679 = vst [vmem:[#allocation4 + $0x28] sm:$0xff] %v2655
        %2680 = vst [vmem:[#allocation4 + $0x30] sm:$0xff] %v2592
        %2681 = vst [vmem:[#allocation4 + $0x38] sm:$0xff] %v2448
        %2682 = vst [vmem:[#allocation4 + $0x40] sm:$0xff] %v2656
        %2683 = vst [vmem:[#allocation4 + $0x48] sm:$0xff] %v2593
        %2684 = vst [vmem:[#allocation4 + $0x50] sm:$0xff] %v2449
        %2685 = vst [vmem:[#allocation4 + $0x58] sm:$0xff] %v2657
        %2686 = vst [vmem:[#allocation4 + $0x60] sm:$0xff] %v2594
        %2687 = vst [vmem:[#allocation4 + $0x68] sm:$0xff] %v2450
        %2688 = vst [vmem:[#allocation4 + $0x70] sm:$0xff] %v2658
        %2689 = vst [vmem:[#allocation4 + $0x78] sm:$0xff] %v2595
        %2690 = vst [vmem:[#allocation4 + $0x80] sm:$0xff] %v2451
        %2691 = vst [vmem:[#allocation4 + $0x88] sm:$0xff] %v2659
        %2692 = vst [vmem:[#allocation4 + $0x90] sm:$0xff] %v2596
        %2693 = vst [vmem:[#allocation4 + $0x98] sm:$0xff] %v2452
        %2694 = vst [vmem:[#allocation4 + $0xa0] sm:$0xff] %v2660
        %2695 = vst [vmem:[#allocation4 + $0xa8] sm:$0xff] %v2597
        %2696 = vst [vmem:[#allocation4 + $0xb0] sm:$0xff] %v2453
        %2697 = vst [vmem:[#allocation4 + $0xb8] sm:$0xff] %v2661
        %2698 = vst [vmem:[#allocation4 + $0xc0] sm:$0xff] %v2598
        %2699 = vst [vmem:[#allocation4 + $0xc8] sm:$0xff] %v2454
        %2700 = vst [vmem:[#allocation4 + $0xd0] sm:$0xff] %v2662
        %2701 = vst [vmem:[#allocation4 + $0xd8] sm:$0xff] %v2599
        %2702 = vst [vmem:[#allocation4 + $0xe0] sm:$0xff] %v2455
        %2703 = vst [vmem:[#allocation4 + $0xe8] sm:$0xff] %v2663
        %2704 = vst [vmem:[#allocation4 + $0xf0] sm:$0xff] %v2600
        %2705 = vst [vmem:[#allocation4 + $0xf8] sm:$0xff] %v2456
        %2706 = vst [vmem:[#allocation4 + $0x100] sm:$0xff] %v2664
        %2707 = vst [vmem:[#allocation4 + $0x108] sm:$0xff] %v2601
        %2708 = vst [vmem:[#allocation4 + $0x110] sm:$0xff] %v2457
        %2709 = vst [vmem:[#allocation4 + $0x118] sm:$0xff] %v2665
        %2710 = vst [vmem:[#allocation4 + $0x120] sm:$0xff] %v2602
        %2711 = vst [vmem:[#allocation4 + $0x128] sm:$0xff] %v2458
        %2712 = vst [vmem:[#allocation4 + $0x130] sm:$0xff] %v2666
        %2713 = vst [vmem:[#allocation4 + $0x138] sm:$0xff] %v2603
        %2714 = vst [vmem:[#allocation4 + $0x140] sm:$0xff] %v2459
        %2715 = vst [vmem:[#allocation4 + $0x148] sm:$0xff] %v2667
        %2716 = vst [vmem:[#allocation4 + $0x150] sm:$0xff] %v2604
        %2717 = vst [vmem:[#allocation4 + $0x158] sm:$0xff] %v2460
        %2718 = vst [vmem:[#allocation4 + $0x160] sm:$0xff] %v2668
        %2719 = vst [vmem:[#allocation4 + $0x168] sm:$0xff] %v2605
        %2720 = vst [vmem:[#allocation4 + $0x170] sm:$0xff] %v2461
        %2721 = vst [vmem:[#allocation4 + $0x178] sm:$0xff] %v2669
        %2722 = vst [vmem:[#allocation4 + $0x180] sm:$0xff] %v2606
        %2723 = vst [vmem:[#allocation4 + $0x188] sm:$0xff] %v2462
        %2724 = vst [vmem:[#allocation4 + $0x190] sm:$0xff] %v2670
        %v2725 = vld [vmem:[%s4] sm:$0x1]
        %v2726 = vld [vmem:[#allocation4] sm:$0xff]
        %v2727 = vld [vmem:[#allocation4 + $0x8] sm:$0xff]
        %v2728 = vld [vmem:[#allocation4 + $0x10] sm:$0xff]
        %v2729 = vld [vmem:[#allocation4 + $0x18] sm:$0xff]
        %v2730 = vld [vmem:[#allocation4 + $0x20] sm:$0xff]
        %v2731 = vld [vmem:[#allocation4 + $0x28] sm:$0xff]
        %v2732 = vld [vmem:[#allocation4 + $0x30] sm:$0xff]
        %v2733 = vld [vmem:[#allocation4 + $0x38] sm:$0xff]
        %v2734 = vld [vmem:[#allocation4 + $0x40] sm:$0xff]
        %v2735 = vld [vmem:[#allocation4 + $0x48] sm:$0xff]
        %v2736 = vld [vmem:[#allocation4 + $0x50] sm:$0xff]
        %v2737 = vld [vmem:[#allocation4 + $0x58] sm:$0xff]
        %v2738 = vld [vmem:[#allocation4 + $0x60] sm:$0xff]
        %v2739 = vld [vmem:[#allocation4 + $0x68] sm:$0xff]
        %v2740 = vld [vmem:[#allocation4 + $0x70] sm:$0xff]
        %v2741 = vld [vmem:[#allocation4 + $0x78] sm:$0xff]
        %v2742 = vld [vmem:[#allocation4 + $0x80] sm:$0xff]
        %v2743 = vld [vmem:[#allocation4 + $0x88] sm:$0xff]
        %v2744 = vld [vmem:[#allocation4 + $0x90] sm:$0xff]
        %v2745 = vld [vmem:[#allocation4 + $0x98] sm:$0xff]
        %v2746 = vld [vmem:[#allocation4 + $0xa0] sm:$0xff]
        %v2747 = vld [vmem:[#allocation4 + $0xa8] sm:$0xff]
        %v2748 = vld [vmem:[#allocation4 + $0xb0] sm:$0xff]
        %v2749 = vld [vmem:[#allocation4 + $0xb8] sm:$0xff]
        %v2750 = vld [vmem:[#allocation4 + $0xc0] sm:$0xff]
        %v2751 = vld [vmem:[#allocation4 + $0xc8] sm:$0xff]
        %v2752 = vld [vmem:[#allocation4 + $0xd0] sm:$0xff]
        %v2753 = vld [vmem:[#allocation4 + $0xd8] sm:$0xff]
        %v2754 = vld [vmem:[#allocation4 + $0xe0] sm:$0xff]
        %v2755 = vld [vmem:[#allocation4 + $0xe8] sm:$0xff]
        %v2756 = vld [vmem:[#allocation4 + $0xf0] sm:$0xff]
        %v2757 = vld [vmem:[#allocation4 + $0xf8] sm:$0xff]
        %v2758 = vld [vmem:[#allocation4 + $0x100] sm:$0xff]
        %v2759 = vld [vmem:[#allocation4 + $0x108] sm:$0xff]
        %v2760 = vld [vmem:[#allocation4 + $0x110] sm:$0xff]
        %v2761 = vld [vmem:[#allocation4 + $0x118] sm:$0xff]
        %v2762 = vld [vmem:[#allocation4 + $0x120] sm:$0xff]
        %v2763 = vld [vmem:[#allocation4 + $0x128] sm:$0xff]
        %v2764 = vld [vmem:[#allocation4 + $0x130] sm:$0xff]
        %v2765 = vld [vmem:[#allocation4 + $0x138] sm:$0xff]
        %v2766 = vld [vmem:[#allocation4 + $0x140] sm:$0xff]
        %v2767 = vld [vmem:[#allocation4 + $0x148] sm:$0xff]
        %v2768 = vld [vmem:[#allocation4 + $0x150] sm:$0xff]
        %v2769 = vld [vmem:[#allocation4 + $0x158] sm:$0xff]
        %v2770 = vld [vmem:[#allocation4 + $0x160] sm:$0xff]
        %v2771 = vld [vmem:[#allocation4 + $0x168] sm:$0xff]
        %v2772 = vld [vmem:[#allocation4 + $0x170] sm:$0xff]
        %v2773 = vld [vmem:[#allocation4 + $0x178] sm:$0xff]
        %v2774 = vld [vmem:[#allocation10] sm:$0xf]
        %v2775 = vld [vmem:[#allocation10 + $0x4] sm:$0xf]
        %v2776 = vld [vmem:[#allocation10 + $0x8] sm:$0xf]
        %v2777 = vld [vmem:[#allocation10 + $0xc] sm:$0xf]
        %v2778 = vld [vmem:[#allocation10 + $0x10] sm:$0xf]
        %v2779 = vld [vmem:[#allocation10 + $0x14] sm:$0xf]
        %v2780 = vld [vmem:[#allocation10 + $0x18] sm:$0xf]
        %v2781 = vld [vmem:[#allocation10 + $0x1c] sm:$0xf]
        %v2782 = vld [vmem:[#allocation10 + $0x20] sm:$0xf]
        %v2783 = vld [vmem:[#allocation10 + $0x24] sm:$0xf]
        %v2784 = vld [vmem:[#allocation10 + $0x28] sm:$0xf]
        %v2785 = vld [vmem:[#allocation10 + $0x2c] sm:$0xf]
        %v2786 = vld [vmem:[#allocation10 + $0x30] sm:$0xf]
        %v2787 = vld [vmem:[#allocation10 + $0x34] sm:$0xf]
        %v2788 = vld [vmem:[#allocation10 + $0x38] sm:$0xf]
        %v2789 = vld [vmem:[#allocation10 + $0x3c] sm:$0xf]
        %v2790 = vld [vmem:[#allocation10 + $0x40] sm:$0xf]
        %v2791 = vld [vmem:[#allocation10 + $0x44] sm:$0xf]
        %v2792 = vld [vmem:[#allocation10 + $0x48] sm:$0xf]
        %v2793 = vld [vmem:[#allocation10 + $0x4c] sm:$0xf]
        %v2794 = vld [vmem:[#allocation10 + $0x50] sm:$0xf]
        %v2795 = vld [vmem:[#allocation10 + $0x54] sm:$0xf]
        %v2796 = vld [vmem:[#allocation10 + $0x58] sm:$0xf]
        %v2797 = vld [vmem:[#allocation10 + $0x5c] sm:$0xf]
        %v2798 = vld [vmem:[#allocation10 + $0x60] sm:$0xf]
        %v2799 = vld [vmem:[#allocation10 + $0x64] sm:$0xf]
        %v2800 = vld [vmem:[#allocation10 + $0x68] sm:$0xf]
        %v2801 = vld [vmem:[#allocation10 + $0x6c] sm:$0xf]
        %v2802 = vld [vmem:[#allocation10 + $0x70] sm:$0xf]
        %v2803 = vld [vmem:[#allocation10 + $0x74] sm:$0xf]
        %v2804 = vld [vmem:[#allocation10 + $0x78] sm:$0xf]
        %v2805 = vld [vmem:[#allocation10 + $0x7c] sm:$0xf]
        %v2806 = vld [vmem:[#allocation10 + $0x80] sm:$0xf]
        %v2807 = vld [vmem:[#allocation10 + $0x84] sm:$0xf]
        %v2808 = vld [vmem:[#allocation10 + $0x88] sm:$0xf]
        %v2809 = vld [vmem:[#allocation10 + $0x8c] sm:$0xf]
        %v2810 = vld [vmem:[#allocation10 + $0x90] sm:$0xf]
        %v2811 = vld [vmem:[#allocation10 + $0x94] sm:$0xf]
        %v2812 = vld [vmem:[#allocation10 + $0x98] sm:$0xf]
        %v2813 = vld [vmem:[#allocation10 + $0x9c] sm:$0xf]
        %v2814 = vld [vmem:[#allocation10 + $0xa0] sm:$0xf]
        %v2815 = vld [vmem:[#allocation10 + $0xa4] sm:$0xf]
        %v2816 = vld [vmem:[#allocation10 + $0xa8] sm:$0xf]
        %v2817 = vld [vmem:[#allocation10 + $0xac] sm:$0xf]
        %v2818 = vld [vmem:[#allocation10 + $0xb0] sm:$0xf]
        %v2819 = vld [vmem:[#allocation10 + $0xb4] sm:$0xf]
        %v2820 = vld [vmem:[#allocation10 + $0xb8] sm:$0xf]
        %v2821 = vld [vmem:[#allocation10 + $0xbc] sm:$0xf]
        %v2822 = vld [vmem:[#allocation4 + $0x180] sm:$0xff]
        %v2823 = vld [vmem:[#allocation4 + $0x188] sm:$0xff]
        %v2824 = vld [vmem:[#allocation4 + $0x190] sm:$0xff]
        %s2825 = scalar_lea.vmem [#allocation10], 192
        %v2826 = vld [vmem:[%s2825] sm:$0xf]
        %v2827 = vld [vmem:[%s2825 + $0x4] sm:$0xf]
        %v2828 = vld [vmem:[%s2825 + $0x8] sm:$0xf]
        %v2829 = vld [vmem:[%s2825 + $0xc] sm:$0xf]
        %v2830 = vld [vmem:[%s2825 + $0x10] sm:$0xf]
        %v2831 = vld [vmem:[%s2825 + $0x14] sm:$0xf]
        %v2832 = vld [vmem:[%s2825 + $0x18] sm:$0xf]
        %v2833 = vld [vmem:[%s2825 + $0x1c] sm:$0xf]
        %v2834 = vld [vmem:[%s2825 + $0x20] sm:$0xf]
        %v2835 = vld [vmem:[%s2825 + $0x24] sm:$0xf]
        %v2836 = vld [vmem:[%s2825 + $0x28] sm:$0xf]
        %v2837 = vld [vmem:[%s2825 + $0x2c] sm:$0xf]
        %v2838 = vld [vmem:[%s2825 + $0x30] sm:$0xf]
        %v2839 = vld [vmem:[%s2825 + $0x34] sm:$0xf]
        %v2840 = vld [vmem:[%s2825 + $0x38] sm:$0xf]
        %v2841 = vld [vmem:[%s2825 + $0x3c] sm:$0xf]
        %v2842 = vld [vmem:[%s2825 + $0x40] sm:$0xf]
        %v2843 = vld [vmem:[%s2825 + $0x44] sm:$0xf]
        %v2844 = vld [vmem:[%s2825 + $0x48] sm:$0xf]
        %v2845 = vld [vmem:[%s2825 + $0x4c] sm:$0xf]
        %v2846 = vld [vmem:[%s2825 + $0x50] sm:$0xf]
        %v2847 = vld [vmem:[%s2825 + $0x54] sm:$0xf]
        %v2848 = vld [vmem:[%s2825 + $0x58] sm:$0xf]
        %v2849 = vld [vmem:[%s2825 + $0x5c] sm:$0xf]
        %v2850 = vld [vmem:[%s2825 + $0x60] sm:$0xf]
        %v2851 = vld [vmem:[%s2825 + $0x64] sm:$0xf]
        %v2852 = vld [vmem:[%s2825 + $0x68] sm:$0xf]
        %v2853 = vld [vmem:[%s2825 + $0x6c] sm:$0xf]
        %v2854 = vld [vmem:[%s2825 + $0x70] sm:$0xf]
        %v2855 = vld [vmem:[%s2825 + $0x74] sm:$0xf]
        %v2856 = vld [vmem:[%s2825 + $0x78] sm:$0xf]
        %v2857 = vld [vmem:[%s2825 + $0x7c] sm:$0xf]
        %v2858 = vld [vmem:[%s2825 + $0x80] sm:$0xf]
        %v2859 = vld [vmem:[%s2825 + $0x84] sm:$0xf]
        %v2860 = vld [vmem:[%s2825 + $0x88] sm:$0xf]
        %v2861 = vld [vmem:[%s2825 + $0x8c] sm:$0xf]
        %v2862 = vld [vmem:[%s2825 + $0x90] sm:$0xf]
        %v2863 = vld [vmem:[%s2825 + $0x94] sm:$0xf]
        %v2864 = vld [vmem:[%s2825 + $0x98] sm:$0xf]
        %v2865 = vld [vmem:[%s2825 + $0x9c] sm:$0xf]
        %v2866 = vld [vmem:[%s2825 + $0xa0] sm:$0xf]
        %v2867 = vld [vmem:[%s2825 + $0xa4] sm:$0xf]
        %v2868 = vld [vmem:[%s2825 + $0xa8] sm:$0xf]
        %v2869 = vld [vmem:[%s2825 + $0xac] sm:$0xf]
        %v2870 = vld [vmem:[%s2825 + $0xb0] sm:$0xf]
        %v2871 = vld [vmem:[%s2825 + $0xb4] sm:$0xf]
        %v2872 = vld [vmem:[%s2825 + $0xb8] sm:$0xf]
        %v2873 = vld [vmem:[%s2825 + $0xbc] sm:$0xf]
        %v2922 = vunpack.c.l.b16 %v2826
        %v2923 = vunpack.c.l.b16 %v2827
        %v2924 = vunpack.c.l.b16 %v2828
        %v2925 = vunpack.c.l.b16 %v2829
        %v2926 = vunpack.c.l.b16 %v2830
        %v2927 = vunpack.c.l.b16 %v2831
        %v2928 = vunpack.c.l.b16 %v2832
        %v2929 = vunpack.c.l.b16 %v2833
        %v2930 = vunpack.c.l.b16 %v2834
        %v2931 = vunpack.c.l.b16 %v2835
        %v2932 = vunpack.c.l.b16 %v2836
        %v2933 = vunpack.c.l.b16 %v2837
        %v2934 = vunpack.c.l.b16 %v2838
        %v2935 = vunpack.c.l.b16 %v2839
        %v2936 = vunpack.c.l.b16 %v2840
        %v2937 = vunpack.c.l.b16 %v2841
        %v2938 = vunpack.c.l.b16 %v2842
        %v2939 = vunpack.c.l.b16 %v2843
        %v2940 = vunpack.c.l.b16 %v2844
        %v2941 = vunpack.c.l.b16 %v2845
        %v2942 = vunpack.c.l.b16 %v2846
        %v2943 = vunpack.c.l.b16 %v2847
        %v2944 = vunpack.c.l.b16 %v2848
        %v2945 = vunpack.c.l.b16 %v2849
        %v2946 = vunpack.c.l.b16 %v2850
        %v2947 = vunpack.c.l.b16 %v2851
        %v2948 = vunpack.c.l.b16 %v2852
        %v2949 = vunpack.c.l.b16 %v2853
        %v2950 = vunpack.c.l.b16 %v2854
        %v2951 = vunpack.c.l.b16 %v2855
        %v2952 = vunpack.c.l.b16 %v2856
        %v2953 = vunpack.c.l.b16 %v2857
        %v2954 = vunpack.c.l.b16 %v2858
        %v2955 = vunpack.c.l.b16 %v2859
        %v2956 = vunpack.c.l.b16 %v2860
        %v2957 = vunpack.c.l.b16 %v2861
        %v2958 = vunpack.c.l.b16 %v2862
        %v2959 = vunpack.c.l.b16 %v2863
        %v2960 = vunpack.c.l.b16 %v2864
        %v2961 = vunpack.c.l.b16 %v2865
        %v2962 = vunpack.c.l.b16 %v2866
        %v2963 = vunpack.c.l.b16 %v2867
        %v2964 = vunpack.c.l.b16 %v2868
        %v2965 = vunpack.c.l.b16 %v2869
        %v2966 = vunpack.c.l.b16 %v2870
        %v2967 = vunpack.c.l.b16 %v2871
        %v2968 = vunpack.c.l.b16 %v2872
        %v2969 = vunpack.c.l.b16 %v2873
        %v2970 = vpack.c.b16 %v2923, %v2922
        %v2971 = vpack.c.b16 %v2925, %v2924
        %v2972 = vpack.c.b16 %v2927, %v2926
        %v2973 = vpack.c.b16 %v2929, %v2928
        %v2974 = vpack.c.b16 %v2931, %v2930
        %v2975 = vpack.c.b16 %v2933, %v2932
        %v2976 = vpack.c.b16 %v2935, %v2934
        %v2977 = vpack.c.b16 %v2937, %v2936
        %v2978 = vpack.c.b16 %v2939, %v2938
        %v2979 = vpack.c.b16 %v2941, %v2940
        %v2980 = vpack.c.b16 %v2943, %v2942
        %v2981 = vpack.c.b16 %v2945, %v2944
        %v2982 = vpack.c.b16 %v2947, %v2946
        %v2983 = vpack.c.b16 %v2949, %v2948
        %v2984 = vpack.c.b16 %v2951, %v2950
        %v2985 = vpack.c.b16 %v2953, %v2952
        %v2986 = vpack.c.b16 %v2955, %v2954
        %v2987 = vpack.c.b16 %v2957, %v2956
        %v2988 = vpack.c.b16 %v2959, %v2958
        %v2989 = vpack.c.b16 %v2961, %v2960
        %v2990 = vpack.c.b16 %v2963, %v2962
        %v2991 = vpack.c.b16 %v2965, %v2964
        %v2992 = vpack.c.b16 %v2967, %v2966
        %v2993 = vpack.c.b16 %v2969, %v2968
        %3018 = vmatprep.subr.bf16.mxu0 0
        %3019 = vmatpush1.bf16.msra.mxu0 %v2970
        %3020 = vmatprep.subr.bf16.mxu0 0
        %3021 = vmatpush1.bf16.msra.mxu0 %v2971
        %3022 = vmatprep.subr.bf16.mxu0 0
        %3023 = vmatpush1.bf16.msra.mxu0 %v2972
        %3024 = vmatprep.subr.bf16.mxu0 0
        %3025 = vmatpush1.bf16.msra.mxu0 %v2973
        %3026 = vmatprep.subr.bf16.mxu0 0
        %3027 = vmatpush1.bf16.msra.mxu0 %v2974
        %3028 = vmatprep.subr.bf16.mxu0 0
        %3029 = vmatpush1.bf16.msra.mxu0 %v2975
        %3030 = vmatprep.subr.bf16.mxu0 0
        %3031 = vmatpush1.bf16.msra.mxu0 %v2976
        %3032 = vmatprep.subr.bf16.mxu0 0
        %3033 = vmatpush1.bf16.msra.mxu0 %v2977
        %3034 = vmatprep.subr.bf16.mxu0 0
        %3035 = vmatpush1.bf16.msra.mxu0 %v2978
        %3036 = vmatprep.subr.bf16.mxu0 0
        %3037 = vmatpush1.bf16.msra.mxu0 %v2979
        %3038 = vmatprep.subr.bf16.mxu0 0
        %3039 = vmatpush1.bf16.msra.mxu0 %v2980
        %3040 = vmatprep.subr.bf16.mxu0 0
        %3041 = vmatpush1.bf16.msra.mxu0 %v2981
        %3042 = vmatprep.subr.bf16.mxu0 0
        %3043 = vmatpush1.bf16.msra.mxu0 %v2982
        %3044 = vmatprep.subr.bf16.mxu0 0
        %3045 = vmatpush1.bf16.msra.mxu0 %v2983
        %3046 = vmatprep.subr.bf16.mxu0 0
        %3047 = vmatpush1.bf16.msra.mxu0 %v2984
        %3048 = vmatprep.subr.bf16.mxu0 0
        %3049 = vmatpush1.bf16.msra.mxu0 %v2985
        %3050 = vmatprep.mubr.bf16.mxu0 %v2730
        %3051 = vmatmul.mubr.bf16.gmra.mrb[0].mxu0 %v2729
        %v3052 = vpop.f32.mrb[0].mxu0
        %v3053 = vadd.f32 0.0, %v3052
        %v3054 = vpop.f32.mrb[0].mxu0
        %v3055 = vpop.f32.mrb[0].mxu0
        %v3056 = vadd.f32 0.0, %v3055
        %v3057 = vpop.f32.mrb[0].mxu0
        %3058 = vmatprep.mubr.bf16.mxu0 %v2733
        %3059 = vmatmul.mubr.bf16.gmra.mrb[0].mxu0 %v2732
        %v3060 = vpop.f32.mrb[0].mxu0
        %v3061 = vadd.f32 0.0, %v3060
        %v3062 = vpop.f32.mrb[0].mxu0
        %v3063 = vpop.f32.mrb[0].mxu0
        %v3064 = vadd.f32 0.0, %v3063
        %v3065 = vpop.f32.mrb[0].mxu0
        %3066 = vmatprep.mubr.bf16.mxu0 %v2736
        %3067 = vmatmul.mubr.bf16.gmra.mrb[0].mxu0 %v2735
        %v3068 = vpop.f32.mrb[0].mxu0
        %v3069 = vadd.f32 0.0, %v3068
        %v3070 = vpop.f32.mrb[0].mxu0
        %v3071 = vpop.f32.mrb[0].mxu0
        %v3072 = vadd.f32 0.0, %v3071
        %v3073 = vpop.f32.mrb[0].mxu0
        %3074 = vmatprep.mubr.bf16.mxu0 %v2739
        %3075 = vmatmul.mubr.bf16.gmra.mrb[0].mxu0 %v2738
        %v3076 = vpop.f32.mrb[0].mxu0
        %v3077 = vadd.f32 0.0, %v3076
        %v3078 = vpop.f32.mrb[0].mxu0
        %v3079 = vpop.f32.mrb[0].mxu0
        %v3080 = vadd.f32 0.0, %v3079
        %v3081 = vpop.f32.mrb[0].mxu0
        %3082 = vmatprep.mubr.bf16.mxu0 %v2742
        %3083 = vmatmul.mubr.bf16.gmra.mrb[0].mxu0 %v2741
        %v3084 = vpop.f32.mrb[0].mxu0
        %v3085 = vadd.f32 0.0, %v3084
        %v3086 = vpop.f32.mrb[0].mxu0
        %v3087 = vpop.f32.mrb[0].mxu0
        %v3088 = vadd.f32 0.0, %v3087
        %v3089 = vpop.f32.mrb[0].mxu0
        %3090 = vmatprep.mubr.bf16.mxu0 %v2745
        %3091 = vmatmul.mubr.bf16.gmra.mrb[0].mxu0 %v2744
        %v3092 = vpop.f32.mrb[0].mxu0
        %v3093 = vadd.f32 0.0, %v3092
        %v3094 = vpop.f32.mrb[0].mxu0
        %v3095 = vpop.f32.mrb[0].mxu0
        %v3096 = vadd.f32 0.0, %v3095
        %v3097 = vpop.f32.mrb[0].mxu0
        %3098 = vmatprep.mubr.bf16.mxu0 %v2748
        %3099 = vmatmul.mubr.bf16.gmra.mrb[0].mxu0 %v2747
        %v3100 = vpop.f32.mrb[0].mxu0
        %v3101 = vadd.f32 0.0, %v3100
        %v3102 = vpop.f32.mrb[0].mxu0
        %v3103 = vpop.f32.mrb[0].mxu0
        %v3104 = vadd.f32 0.0, %v3103
        %v3105 = vpop.f32.mrb[0].mxu0
        %3106 = vmatprep.mubr.bf16.mxu0 %v2751
        %3107 = vmatmul.mubr.bf16.gmra.mrb[0].mxu0 %v2750
        %v3108 = vpop.f32.mrb[0].mxu0
        %v3109 = vadd.f32 0.0, %v3108
        %v3110 = vpop.f32.mrb[0].mxu0
        %v3111 = vpop.f32.mrb[0].mxu0
        %v3112 = vadd.f32 0.0, %v3111
        %v3113 = vpop.f32.mrb[0].mxu0
        %3114 = vmatprep.mubr.bf16.mxu0 %v2754
        %3115 = vmatmul.mubr.bf16.gmra.mrb[0].mxu0 %v2753
        %v3116 = vpop.f32.mrb[0].mxu0
        %v3117 = vadd.f32 0.0, %v3116
        %v3118 = vpop.f32.mrb[0].mxu0
        %v3119 = vpop.f32.mrb[0].mxu0
        %v3120 = vadd.f32 0.0, %v3119
        %v3121 = vpop.f32.mrb[0].mxu0
        %3122 = vmatprep.mubr.bf16.mxu0 %v2757
        %3123 = vmatmul.mubr.bf16.gmra.mrb[0].mxu0 %v2756
        %v3124 = vpop.f32.mrb[0].mxu0
        %v3125 = vadd.f32 0.0, %v3124
        %v3126 = vpop.f32.mrb[0].mxu0
        %v3127 = vpop.f32.mrb[0].mxu0
        %v3128 = vadd.f32 0.0, %v3127
        %v3129 = vpop.f32.mrb[0].mxu0
        %3130 = vmatprep.mubr.bf16.mxu0 %v2760
        %3131 = vmatmul.mubr.bf16.gmra.mrb[0].mxu0 %v2759
        %v3132 = vpop.f32.mrb[0].mxu0
        %v3133 = vadd.f32 0.0, %v3132
        %v3134 = vpop.f32.mrb[0].mxu0
        %v3135 = vpop.f32.mrb[0].mxu0
        %v3136 = vadd.f32 0.0, %v3135
        %v3137 = vpop.f32.mrb[0].mxu0
        %3138 = vmatprep.mubr.bf16.mxu0 %v2763
        %3139 = vmatmul.mubr.bf16.gmra.mrb[0].mxu0 %v2762
        %v3140 = vpop.f32.mrb[0].mxu0
        %v3141 = vadd.f32 0.0, %v3140
        %v3142 = vpop.f32.mrb[0].mxu0
        %v3143 = vpop.f32.mrb[0].mxu0
        %v3144 = vadd.f32 0.0, %v3143
        %v3145 = vpop.f32.mrb[0].mxu0
        %3146 = vmatprep.mubr.bf16.mxu0 %v2766
        %3147 = vmatmul.mubr.bf16.gmra.mrb[0].mxu0 %v2765
        %v3148 = vpop.f32.mrb[0].mxu0
        %v3149 = vadd.f32 0.0, %v3148
        %v3150 = vpop.f32.mrb[0].mxu0
        %v3151 = vpop.f32.mrb[0].mxu0
        %v3152 = vadd.f32 0.0, %v3151
        %v3153 = vpop.f32.mrb[0].mxu0
        %3154 = vmatprep.mubr.bf16.mxu0 %v2769
        %3155 = vmatmul.mubr.bf16.gmra.mrb[0].mxu0 %v2768
        %v3156 = vpop.f32.mrb[0].mxu0
        %v3157 = vadd.f32 0.0, %v3156
        %v3158 = vpop.f32.mrb[0].mxu0
        %v3159 = vpop.f32.mrb[0].mxu0
        %v3160 = vadd.f32 0.0, %v3159
        %v3161 = vpop.f32.mrb[0].mxu0
        %3162 = vmatprep.mubr.bf16.mxu0 %v2772
        %3163 = vmatmul.mubr.bf16.gmra.mrb[0].mxu0 %v2771
        %v3164 = vpop.f32.mrb[0].mxu0
        %v3165 = vadd.f32 0.0, %v3164
        %v3166 = vpop.f32.mrb[0].mxu0
        %v3167 = vpop.f32.mrb[0].mxu0
        %v3168 = vadd.f32 0.0, %v3167
        %v3169 = vpop.f32.mrb[0].mxu0
        %3170 = vmatprep.mubr.bf16.mxu0 %v2823
        %3171 = vmatmul.mubr.bf16.gmra.mrb[0].mxu0 %v2822
        %v3172 = vpop.f32.mrb[0].mxu0
        %v3173 = vadd.f32 0.0, %v3172
        %v3174 = vpop.f32.mrb[0].mxu0
        %v3175 = vpop.f32.mrb[0].mxu0
        %v3176 = vadd.f32 0.0, %v3175
        %v3177 = vpop.f32.mrb[0].mxu0
        %3178 = vdwg.mxu0
        %3179 = vmatprep.subr.bf16.mxu0 0
        %3180 = vmatpush1.bf16.msra.mxu0 %v2986
        %3181 = vmatprep.subr.bf16.mxu0 0
        %3182 = vmatpush1.bf16.msra.mxu0 %v2987
        %3183 = vmatprep.subr.bf16.mxu0 0
        %3184 = vmatpush1.bf16.msra.mxu0 %v2988
        %3185 = vmatprep.subr.bf16.mxu0 0
        %3186 = vmatpush1.bf16.msra.mxu0 %v2989
        %3187 = vmatprep.subr.bf16.mxu0 0
        %3188 = vmatpush1.bf16.msra.mxu0 %v2990
        %3189 = vmatprep.subr.bf16.mxu0 0
        %3190 = vmatpush1.bf16.msra.mxu0 %v2991
        %3191 = vmatprep.subr.bf16.mxu0 0
        %3192 = vmatpush1.bf16.msra.mxu0 %v2992
        %3193 = vmatprep.subr.bf16.mxu0 0
        %3194 = vmatpush1.bf16.msra.mxu0 %v2993
        %3195 = vmatprep.subr.bf16.mxu0 0
        %3196 = vmatpush1.bf16.msra.mxu0 0
        %3197 = vmatprep.subr.bf16.mxu0 0
        %3198 = vmatpush1.bf16.msra.mxu0 0
        %3199 = vmatprep.subr.bf16.mxu0 0
        %3200 = vmatpush1.bf16.msra.mxu0 0
        %3201 = vmatprep.subr.bf16.mxu0 0
        %3202 = vmatpush1.bf16.msra.mxu0 0
        %3203 = vmatprep.subr.bf16.mxu0 0
        %3204 = vmatpush1.bf16.msra.mxu0 0
        %3205 = vmatprep.subr.bf16.mxu0 0
        %3206 = vmatpush1.bf16.msra.mxu0 0
        %3207 = vmatprep.subr.bf16.mxu0 0
        %3208 = vmatpush1.bf16.msra.mxu0 0
        %3209 = vmatprep.subr.bf16.mxu0 0
        %3210 = vmatpush1.bf16.msra.mxu0 0
        %3211 = vmatprep.mubr.bf16.mxu0 0
        %3212 = vmatmul.mubr.bf16.gmra.mrb[0].mxu0 %v2731
        %v3213 = vpop.f32.mrb[0].mxu0
        %v3214 = vadd.f32 %v3053, %v3213
        %v3215 = vpop.f32.mrb[0].mxu0
        %v3216 = vpop.f32.mrb[0].mxu0
        %v3217 = vadd.f32 %v3056, %v3216
        %v3218 = vpop.f32.mrb[0].mxu0
        %3219 = vmatprep.mubr.bf16.mxu0 0
        %3220 = vmatmul.mubr.bf16.gmra.mrb[0].mxu0 %v2734
        %v3221 = vpop.f32.mrb[0].mxu0
        %v3222 = vadd.f32 %v3061, %v3221
        %v3223 = vpop.f32.mrb[0].mxu0
        %v3224 = vpop.f32.mrb[0].mxu0
        %v3225 = vadd.f32 %v3064, %v3224
        %v3226 = vpop.f32.mrb[0].mxu0
        %3227 = vmatprep.mubr.bf16.mxu0 0
        %3228 = vmatmul.mubr.bf16.gmra.mrb[0].mxu0 %v2737
        %v3229 = vpop.f32.mrb[0].mxu0
        %v3230 = vadd.f32 %v3069, %v3229
        %v3231 = vpop.f32.mrb[0].mxu0
        %v3232 = vpop.f32.mrb[0].mxu0
        %v3233 = vadd.f32 %v3072, %v3232
        %v3234 = vpop.f32.mrb[0].mxu0
        %3235 = vmatprep.mubr.bf16.mxu0 0
        %3236 = vmatmul.mubr.bf16.gmra.mrb[0].mxu0 %v2740
        %v3237 = vpop.f32.mrb[0].mxu0
        %v3238 = vadd.f32 %v3077, %v3237
        %v3239 = vpop.f32.mrb[0].mxu0
        %v3240 = vpop.f32.mrb[0].mxu0
        %v3241 = vadd.f32 %v3080, %v3240
        %v3242 = vpop.f32.mrb[0].mxu0
        %3243 = vmatprep.mubr.bf16.mxu0 0
        %3244 = vmatmul.mubr.bf16.gmra.mrb[0].mxu0 %v2743
        %v3245 = vpop.f32.mrb[0].mxu0
        %v3246 = vadd.f32 %v3085, %v3245
        %v3247 = vpop.f32.mrb[0].mxu0
        %v3248 = vpop.f32.mrb[0].mxu0
        %v3249 = vadd.f32 %v3088, %v3248
        %v3250 = vpop.f32.mrb[0].mxu0
        %3251 = vmatprep.mubr.bf16.mxu0 0
        %3252 = vmatmul.mubr.bf16.gmra.mrb[0].mxu0 %v2746
        %v3253 = vpop.f32.mrb[0].mxu0
        %v3254 = vadd.f32 %v3093, %v3253
        %v3255 = vpop.f32.mrb[0].mxu0
        %v3256 = vpop.f32.mrb[0].mxu0
        %v3257 = vadd.f32 %v3096, %v3256
        %v3258 = vpop.f32.mrb[0].mxu0
        %3259 = vmatprep.mubr.bf16.mxu0 0
        %3260 = vmatmul.mubr.bf16.gmra.mrb[0].mxu0 %v2749
        %v3261 = vpop.f32.mrb[0].mxu0
        %v3262 = vadd.f32 %v3101, %v3261
        %v3263 = vpop.f32.mrb[0].mxu0
        %v3264 = vpop.f32.mrb[0].mxu0
        %v3265 = vadd.f32 %v3104, %v3264
        %v3266 = vpop.f32.mrb[0].mxu0
        %3267 = vmatprep.mubr.bf16.mxu0 0
        %3268 = vmatmul.mubr.bf16.gmra.mrb[0].mxu0 %v2752
        %v3269 = vpop.f32.mrb[0].mxu0
        %v3270 = vadd.f32 %v3109, %v3269
        %v3271 = vpop.f32.mrb[0].mxu0
        %v3272 = vpop.f32.mrb[0].mxu0
        %v3273 = vadd.f32 %v3112, %v3272
        %v3274 = vpop.f32.mrb[0].mxu0
        %3275 = vmatprep.mubr.bf16.mxu0 0
        %3276 = vmatmul.mubr.bf16.gmra.mrb[0].mxu0 %v2755
        %v3277 = vpop.f32.mrb[0].mxu0
        %v3278 = vadd.f32 %v3117, %v3277
        %v3279 = vpop.f32.mrb[0].mxu0
        %v3280 = vpop.f32.mrb[0].mxu0
        %v3281 = vadd.f32 %v3120, %v3280
        %v3282 = vpop.f32.mrb[0].mxu0
        %3283 = vmatprep.mubr.bf16.mxu0 0
        %3284 = vmatmul.mubr.bf16.gmra.mrb[0].mxu0 %v2758
        %v3285 = vpop.f32.mrb[0].mxu0
        %v3286 = vadd.f32 %v3125, %v3285
        %v3287 = vpop.f32.mrb[0].mxu0
        %v3288 = vpop.f32.mrb[0].mxu0
        %v3289 = vadd.f32 %v3128, %v3288
        %v3290 = vpop.f32.mrb[0].mxu0
        %3291 = vmatprep.mubr.bf16.mxu0 0
        %3292 = vmatmul.mubr.bf16.gmra.mrb[0].mxu0 %v2761
        %v3293 = vpop.f32.mrb[0].mxu0
        %v3294 = vadd.f32 %v3133, %v3293
        %v3295 = vpop.f32.mrb[0].mxu0
        %v3296 = vpop.f32.mrb[0].mxu0
        %v3297 = vadd.f32 %v3136, %v3296
        %v3298 = vpop.f32.mrb[0].mxu0
        %3299 = vmatprep.mubr.bf16.mxu0 0
        %3300 = vmatmul.mubr.bf16.gmra.mrb[0].mxu0 %v2764
        %v3301 = vpop.f32.mrb[0].mxu0
        %v3302 = vadd.f32 %v3141, %v3301
        %v3303 = vpop.f32.mrb[0].mxu0
        %v3304 = vpop.f32.mrb[0].mxu0
        %v3305 = vadd.f32 %v3144, %v3304
        %v3306 = vpop.f32.mrb[0].mxu0
        %3307 = vmatprep.mubr.bf16.mxu0 0
        %3308 = vmatmul.mubr.bf16.gmra.mrb[0].mxu0 %v2767
        %v3309 = vpop.f32.mrb[0].mxu0
        %v3310 = vadd.f32 %v3149, %v3309
        %v3311 = vpop.f32.mrb[0].mxu0
        %v3312 = vpop.f32.mrb[0].mxu0
        %v3313 = vadd.f32 %v3152, %v3312
        %v3314 = vpop.f32.mrb[0].mxu0
        %3315 = vmatprep.mubr.bf16.mxu0 0
        %3316 = vmatmul.mubr.bf16.gmra.mrb[0].mxu0 %v2770
        %v3317 = vpop.f32.mrb[0].mxu0
        %v3318 = vadd.f32 %v3157, %v3317
        %v3319 = vpop.f32.mrb[0].mxu0
        %v3320 = vpop.f32.mrb[0].mxu0
        %v3321 = vadd.f32 %v3160, %v3320
        %v3322 = vpop.f32.mrb[0].mxu0
        %3323 = vmatprep.mubr.bf16.mxu0 0
        %3324 = vmatmul.mubr.bf16.gmra.mrb[0].mxu0 %v2773
        %v3325 = vpop.f32.mrb[0].mxu0
        %v3326 = vadd.f32 %v3165, %v3325
        %v3327 = vpop.f32.mrb[0].mxu0
        %v3328 = vpop.f32.mrb[0].mxu0
        %v3329 = vadd.f32 %v3168, %v3328
        %v3330 = vpop.f32.mrb[0].mxu0
        %3331 = vmatprep.mubr.bf16.mxu0 0
        %3332 = vmatmul.mubr.bf16.gmra.mrb[0].mxu0 %v2824
        %v3333 = vpop.f32.mrb[0].mxu0
        %v3334 = vadd.f32 %v3173, %v3333
        %v3335 = vpop.f32.mrb[0].mxu0
        %v3336 = vpop.f32.mrb[0].mxu0
        %v3337 = vadd.f32 %v3176, %v3336
        %v3338 = vpop.f32.mrb[0].mxu0
        %3339 = vdwg.mxu0
        %v3388 = vunpack.c.l.b16 %v2774
        %v3389 = vunpack.c.l.b16 %v2775
        %v3390 = vunpack.c.l.b16 %v2776
        %v3391 = vunpack.c.l.b16 %v2777
        %v3392 = vunpack.c.l.b16 %v2778
        %v3393 = vunpack.c.l.b16 %v2779
        %v3394 = vunpack.c.l.b16 %v2780
        %v3395 = vunpack.c.l.b16 %v2781
        %v3396 = vunpack.c.l.b16 %v2782
        %v3397 = vunpack.c.l.b16 %v2783
        %v3398 = vunpack.c.l.b16 %v2784
        %v3399 = vunpack.c.l.b16 %v2785
        %v3400 = vunpack.c.l.b16 %v2786
        %v3401 = vunpack.c.l.b16 %v2787
        %v3402 = vunpack.c.l.b16 %v2788
        %v3403 = vunpack.c.l.b16 %v2789
        %v3404 = vunpack.c.l.b16 %v2790
        %v3405 = vunpack.c.l.b16 %v2791
        %v3406 = vunpack.c.l.b16 %v2792
        %v3407 = vunpack.c.l.b16 %v2793
        %v3408 = vunpack.c.l.b16 %v2794
        %v3409 = vunpack.c.l.b16 %v2795
        %v3410 = vunpack.c.l.b16 %v2796
        %v3411 = vunpack.c.l.b16 %v2797
        %v3412 = vunpack.c.l.b16 %v2798
        %v3413 = vunpack.c.l.b16 %v2799
        %v3414 = vunpack.c.l.b16 %v2800
        %v3415 = vunpack.c.l.b16 %v2801
        %v3416 = vunpack.c.l.b16 %v2802
        %v3417 = vunpack.c.l.b16 %v2803
        %v3418 = vunpack.c.l.b16 %v2804
        %v3419 = vunpack.c.l.b16 %v2805
        %v3420 = vunpack.c.l.b16 %v2806
        %v3421 = vunpack.c.l.b16 %v2807
        %v3422 = vunpack.c.l.b16 %v2808
        %v3423 = vunpack.c.l.b16 %v2809
        %v3424 = vunpack.c.l.b16 %v2810
        %v3425 = vunpack.c.l.b16 %v2811
        %v3426 = vunpack.c.l.b16 %v2812
        %v3427 = vunpack.c.l.b16 %v2813
        %v3428 = vunpack.c.l.b16 %v2814
        %v3429 = vunpack.c.l.b16 %v2815
        %v3430 = vunpack.c.l.b16 %v2816
        %v3431 = vunpack.c.l.b16 %v2817
        %v3432 = vunpack.c.l.b16 %v2818
        %v3433 = vunpack.c.l.b16 %v2819
        %v3434 = vunpack.c.l.b16 %v2820
        %v3435 = vunpack.c.l.b16 %v2821
        %v3436 = vpack.c.b16 %v3389, %v3388
        %v3437 = vpack.c.b16 %v3391, %v3390
        %v3438 = vpack.c.b16 %v3393, %v3392
        %v3439 = vpack.c.b16 %v3395, %v3394
        %v3440 = vpack.c.b16 %v3397, %v3396
        %v3441 = vpack.c.b16 %v3399, %v3398
        %v3442 = vpack.c.b16 %v3401, %v3400
        %v3443 = vpack.c.b16 %v3403, %v3402
        %v3444 = vpack.c.b16 %v3405, %v3404
        %v3445 = vpack.c.b16 %v3407, %v3406
        %v3446 = vpack.c.b16 %v3409, %v3408
        %v3447 = vpack.c.b16 %v3411, %v3410
        %v3448 = vpack.c.b16 %v3413, %v3412
        %v3449 = vpack.c.b16 %v3415, %v3414
        %v3450 = vpack.c.b16 %v3417, %v3416
        %v3451 = vpack.c.b16 %v3419, %v3418
        %v3452 = vpack.c.b16 %v3421, %v3420
        %v3453 = vpack.c.b16 %v3423, %v3422
        %v3454 = vpack.c.b16 %v3425, %v3424
        %v3455 = vpack.c.b16 %v3427, %v3426
        %v3456 = vpack.c.b16 %v3429, %v3428
        %v3457 = vpack.c.b16 %v3431, %v3430
        %v3458 = vpack.c.b16 %v3433, %v3432
        %v3459 = vpack.c.b16 %v3435, %v3434
        %3484 = vmatprep.subr.bf16.mxu0 0
        %3485 = vmatpush1.bf16.msra.mxu0 %v3436
        %3486 = vmatprep.subr.bf16.mxu0 0
        %3487 = vmatpush1.bf16.msra.mxu0 %v3437
        %3488 = vmatprep.subr.bf16.mxu0 0
        %3489 = vmatpush1.bf16.msra.mxu0 %v3438
        %3490 = vmatprep.subr.bf16.mxu0 0
        %3491 = vmatpush1.bf16.msra.mxu0 %v3439
        %3492 = vmatprep.subr.bf16.mxu0 0
        %3493 = vmatpush1.bf16.msra.mxu0 %v3440
        %3494 = vmatprep.subr.bf16.mxu0 0
        %3495 = vmatpush1.bf16.msra.mxu0 %v3441
        %3496 = vmatprep.subr.bf16.mxu0 0
        %3497 = vmatpush1.bf16.msra.mxu0 %v3442
        %3498 = vmatprep.subr.bf16.mxu0 0
        %3499 = vmatpush1.bf16.msra.mxu0 %v3443
        %3500 = vmatprep.subr.bf16.mxu0 0
        %3501 = vmatpush1.bf16.msra.mxu0 %v3444
        %3502 = vmatprep.subr.bf16.mxu0 0
        %3503 = vmatpush1.bf16.msra.mxu0 %v3445
        %3504 = vmatprep.subr.bf16.mxu0 0
        %3505 = vmatpush1.bf16.msra.mxu0 %v3446
        %3506 = vmatprep.subr.bf16.mxu0 0
        %3507 = vmatpush1.bf16.msra.mxu0 %v3447
        %3508 = vmatprep.subr.bf16.mxu0 0
        %3509 = vmatpush1.bf16.msra.mxu0 %v3448
        %3510 = vmatprep.subr.bf16.mxu0 0
        %3511 = vmatpush1.bf16.msra.mxu0 %v3449
        %3512 = vmatprep.subr.bf16.mxu0 0
        %3513 = vmatpush1.bf16.msra.mxu0 %v3450
        %3514 = vmatprep.subr.bf16.mxu0 0
        %3515 = vmatpush1.bf16.msra.mxu0 %v3451
        %3516 = vmatprep.mubr.bf16.mxu0 %v2727
        %3517 = vmatmul.mubr.bf16.gmra.mrb[0].mxu0 %v2726
        %v3518 = vpop.f32.mrb[0].mxu0
        %v3519 = vadd.f32 %v3214, %v3518
        %v3520 = vpop.f32.mrb[0].mxu0
        %v3521 = vpop.f32.mrb[0].mxu0
        %v3522 = vadd.f32 %v3217, %v3521
        %v3523 = vpop.f32.mrb[0].mxu0
        %3524 = vmatprep.mubr.bf16.mxu0 %v2730
        %3525 = vmatmul.mubr.bf16.gmra.mrb[0].mxu0 %v2729
        %v3526 = vpop.f32.mrb[0].mxu0
        %v3527 = vadd.f32 %v3222, %v3526
        %v3528 = vpop.f32.mrb[0].mxu0
        %v3529 = vpop.f32.mrb[0].mxu0
        %v3530 = vadd.f32 %v3225, %v3529
        %v3531 = vpop.f32.mrb[0].mxu0
        %3532 = vmatprep.mubr.bf16.mxu0 %v2733
        %3533 = vmatmul.mubr.bf16.gmra.mrb[0].mxu0 %v2732
        %v3534 = vpop.f32.mrb[0].mxu0
        %v3535 = vadd.f32 %v3230, %v3534
        %v3536 = vpop.f32.mrb[0].mxu0
        %v3537 = vpop.f32.mrb[0].mxu0
        %v3538 = vadd.f32 %v3233, %v3537
        %v3539 = vpop.f32.mrb[0].mxu0
        %3540 = vmatprep.mubr.bf16.mxu0 %v2736
        %3541 = vmatmul.mubr.bf16.gmra.mrb[0].mxu0 %v2735
        %v3542 = vpop.f32.mrb[0].mxu0
        %v3543 = vadd.f32 %v3238, %v3542
        %v3544 = vpop.f32.mrb[0].mxu0
        %v3545 = vpop.f32.mrb[0].mxu0
        %v3546 = vadd.f32 %v3241, %v3545
        %v3547 = vpop.f32.mrb[0].mxu0
        %3548 = vmatprep.mubr.bf16.mxu0 %v2739
        %3549 = vmatmul.mubr.bf16.gmra.mrb[0].mxu0 %v2738
        %v3550 = vpop.f32.mrb[0].mxu0
        %v3551 = vadd.f32 %v3246, %v3550
        %v3552 = vpop.f32.mrb[0].mxu0
        %v3553 = vpop.f32.mrb[0].mxu0
        %v3554 = vadd.f32 %v3249, %v3553
        %v3555 = vpop.f32.mrb[0].mxu0
        %3556 = vmatprep.mubr.bf16.mxu0 %v2742
        %3557 = vmatmul.mubr.bf16.gmra.mrb[0].mxu0 %v2741
        %v3558 = vpop.f32.mrb[0].mxu0
        %v3559 = vadd.f32 %v3254, %v3558
        %v3560 = vpop.f32.mrb[0].mxu0
        %v3561 = vpop.f32.mrb[0].mxu0
        %v3562 = vadd.f32 %v3257, %v3561
        %v3563 = vpop.f32.mrb[0].mxu0
        %3564 = vmatprep.mubr.bf16.mxu0 %v2745
        %3565 = vmatmul.mubr.bf16.gmra.mrb[0].mxu0 %v2744
        %v3566 = vpop.f32.mrb[0].mxu0
        %v3567 = vadd.f32 %v3262, %v3566
        %v3568 = vpop.f32.mrb[0].mxu0
        %v3569 = vpop.f32.mrb[0].mxu0
        %v3570 = vadd.f32 %v3265, %v3569
        %v3571 = vpop.f32.mrb[0].mxu0
        %3572 = vmatprep.mubr.bf16.mxu0 %v2748
        %3573 = vmatmul.mubr.bf16.gmra.mrb[0].mxu0 %v2747
        %v3574 = vpop.f32.mrb[0].mxu0
        %v3575 = vadd.f32 %v3270, %v3574
        %v3576 = vpop.f32.mrb[0].mxu0
        %v3577 = vpop.f32.mrb[0].mxu0
        %v3578 = vadd.f32 %v3273, %v3577
        %v3579 = vpop.f32.mrb[0].mxu0
        %3580 = vmatprep.mubr.bf16.mxu0 %v2751
        %3581 = vmatmul.mubr.bf16.gmra.mrb[0].mxu0 %v2750
        %v3582 = vpop.f32.mrb[0].mxu0
        %v3583 = vadd.f32 %v3278, %v3582
        %v3584 = vpop.f32.mrb[0].mxu0
        %v3585 = vpop.f32.mrb[0].mxu0
        %v3586 = vadd.f32 %v3281, %v3585
        %v3587 = vpop.f32.mrb[0].mxu0
        %3588 = vmatprep.mubr.bf16.mxu0 %v2754
        %3589 = vmatmul.mubr.bf16.gmra.mrb[0].mxu0 %v2753
        %v3590 = vpop.f32.mrb[0].mxu0
        %v3591 = vadd.f32 %v3286, %v3590
        %v3592 = vpop.f32.mrb[0].mxu0
        %v3593 = vpop.f32.mrb[0].mxu0
        %v3594 = vadd.f32 %v3289, %v3593
        %v3595 = vpop.f32.mrb[0].mxu0
        %3596 = vmatprep.mubr.bf16.mxu0 %v2757
        %3597 = vmatmul.mubr.bf16.gmra.mrb[0].mxu0 %v2756
        %v3598 = vpop.f32.mrb[0].mxu0
        %v3599 = vadd.f32 %v3294, %v3598
        %v3600 = vpop.f32.mrb[0].mxu0
        %v3601 = vpop.f32.mrb[0].mxu0
        %v3602 = vadd.f32 %v3297, %v3601
        %v3603 = vpop.f32.mrb[0].mxu0
        %3604 = vmatprep.mubr.bf16.mxu0 %v2760
        %3605 = vmatmul.mubr.bf16.gmra.mrb[0].mxu0 %v2759
        %v3606 = vpop.f32.mrb[0].mxu0
        %v3607 = vadd.f32 %v3302, %v3606
        %v3608 = vpop.f32.mrb[0].mxu0
        %v3609 = vpop.f32.mrb[0].mxu0
        %v3610 = vadd.f32 %v3305, %v3609
        %v3611 = vpop.f32.mrb[0].mxu0
        %3612 = vmatprep.mubr.bf16.mxu0 %v2763
        %3613 = vmatmul.mubr.bf16.gmra.mrb[0].mxu0 %v2762
        %v3614 = vpop.f32.mrb[0].mxu0
        %v3615 = vadd.f32 %v3310, %v3614
        %v3616 = vpop.f32.mrb[0].mxu0
        %v3617 = vpop.f32.mrb[0].mxu0
        %v3618 = vadd.f32 %v3313, %v3617
        %v3619 = vpop.f32.mrb[0].mxu0
        %3620 = vmatprep.mubr.bf16.mxu0 %v2766
        %3621 = vmatmul.mubr.bf16.gmra.mrb[0].mxu0 %v2765
        %v3622 = vpop.f32.mrb[0].mxu0
        %v3623 = vadd.f32 %v3318, %v3622
        %v3624 = vpop.f32.mrb[0].mxu0
        %v3625 = vpop.f32.mrb[0].mxu0
        %v3626 = vadd.f32 %v3321, %v3625
        %v3627 = vpop.f32.mrb[0].mxu0
        %3628 = vmatprep.mubr.bf16.mxu0 %v2769
        %3629 = vmatmul.mubr.bf16.gmra.mrb[0].mxu0 %v2768
        %v3630 = vpop.f32.mrb[0].mxu0
        %v3631 = vadd.f32 %v3326, %v3630
        %v3632 = vpop.f32.mrb[0].mxu0
        %v3633 = vpop.f32.mrb[0].mxu0
        %v3634 = vadd.f32 %v3329, %v3633
        %v3635 = vpop.f32.mrb[0].mxu0
        %3636 = vmatprep.mubr.bf16.mxu0 %v2772
        %3637 = vmatmul.mubr.bf16.gmra.mrb[0].mxu0 %v2771
        %v3638 = vpop.f32.mrb[0].mxu0
        %v3639 = vadd.f32 %v3334, %v3638
        %v3640 = vpop.f32.mrb[0].mxu0
        %v3641 = vpop.f32.mrb[0].mxu0
        %v3642 = vadd.f32 %v3337, %v3641
        %v3643 = vpop.f32.mrb[0].mxu0
        %3644 = vdwg.mxu0
        %3645 = vmatprep.subr.bf16.mxu0 0
        %3646 = vmatpush1.bf16.msra.mxu0 %v3452
        %3647 = vmatprep.subr.bf16.mxu0 0
        %3648 = vmatpush1.bf16.msra.mxu0 %v3453
        %3649 = vmatprep.subr.bf16.mxu0 0
        %3650 = vmatpush1.bf16.msra.mxu0 %v3454
        %3651 = vmatprep.subr.bf16.mxu0 0
        %3652 = vmatpush1.bf16.msra.mxu0 %v3455
        %3653 = vmatprep.subr.bf16.mxu0 0
        %3654 = vmatpush1.bf16.msra.mxu0 %v3456
        %3655 = vmatprep.subr.bf16.mxu0 0
        %3656 = vmatpush1.bf16.msra.mxu0 %v3457
        %3657 = vmatprep.subr.bf16.mxu0 0
        %3658 = vmatpush1.bf16.msra.mxu0 %v3458
        %3659 = vmatprep.subr.bf16.mxu0 0
        %3660 = vmatpush1.bf16.msra.mxu0 %v3459
        %3661 = vmatprep.subr.bf16.mxu0 0
        %3662 = vmatpush1.bf16.msra.mxu0 0
        %3663 = vmatprep.subr.bf16.mxu0 0
        %3664 = vmatpush1.bf16.msra.mxu0 0
        %3665 = vmatprep.subr.bf16.mxu0 0
        %3666 = vmatpush1.bf16.msra.mxu0 0
        %3667 = vmatprep.subr.bf16.mxu0 0
        %3668 = vmatpush1.bf16.msra.mxu0 0
        %3669 = vmatprep.subr.bf16.mxu0 0
        %3670 = vmatpush1.bf16.msra.mxu0 0
        %3671 = vmatprep.subr.bf16.mxu0 0
        %3672 = vmatpush1.bf16.msra.mxu0 0
        %3673 = vmatprep.subr.bf16.mxu0 0
        %3674 = vmatpush1.bf16.msra.mxu0 0
        %3675 = vmatprep.subr.bf16.mxu0 0
        %3676 = vmatpush1.bf16.msra.mxu0 0
        %3677 = vmatprep.mubr.bf16.mxu0 0
        %3678 = vmatmul.mubr.bf16.gmra.mrb[0].mxu0 %v2728
        %v3679 = vpop.f32.mrb[0].mxu0
        %v3680 = vadd.f32 %v3519, %v3679
        %v3681 = vpop.f32.mrb[0].mxu0
        %v3682 = vpop.f32.mrb[0].mxu0
        %v3683 = vadd.f32 %v3522, %v3682
        %v3684 = vpop.f32.mrb[0].mxu0
        %3685 = vmatprep.mubr.bf16.mxu0 0
        %3686 = vmatmul.mubr.bf16.gmra.mrb[0].mxu0 %v2731
        %v3687 = vpop.f32.mrb[0].mxu0
        %v3688 = vadd.f32 %v3527, %v3687
        %v3689 = vpop.f32.mrb[0].mxu0
        %v3690 = vpop.f32.mrb[0].mxu0
        %v3691 = vadd.f32 %v3530, %v3690
        %v3692 = vpop.f32.mrb[0].mxu0
        %3693 = vmatprep.mubr.bf16.mxu0 0
        %3694 = vmatmul.mubr.bf16.gmra.mrb[0].mxu0 %v2734
        %v3695 = vpop.f32.mrb[0].mxu0
        %v3696 = vadd.f32 %v3535, %v3695
        %v3697 = vpop.f32.mrb[0].mxu0
        %v3698 = vpop.f32.mrb[0].mxu0
        %v3699 = vadd.f32 %v3538, %v3698
        %v3700 = vpop.f32.mrb[0].mxu0
        %3701 = vmatprep.mubr.bf16.mxu0 0
        %3702 = vmatmul.mubr.bf16.gmra.mrb[0].mxu0 %v2737
        %v3703 = vpop.f32.mrb[0].mxu0
        %v3704 = vadd.f32 %v3543, %v3703
        %v3705 = vpop.f32.mrb[0].mxu0
        %v3706 = vpop.f32.mrb[0].mxu0
        %v3707 = vadd.f32 %v3546, %v3706
        %v3708 = vpop.f32.mrb[0].mxu0
        %3709 = vmatprep.mubr.bf16.mxu0 0
        %3710 = vmatmul.mubr.bf16.gmra.mrb[0].mxu0 %v2740
        %v3711 = vpop.f32.mrb[0].mxu0
        %v3712 = vadd.f32 %v3551, %v3711
        %v3713 = vpop.f32.mrb[0].mxu0
        %v3714 = vpop.f32.mrb[0].mxu0
        %v3715 = vadd.f32 %v3554, %v3714
        %v3716 = vpop.f32.mrb[0].mxu0
        %3717 = vmatprep.mubr.bf16.mxu0 0
        %3718 = vmatmul.mubr.bf16.gmra.mrb[0].mxu0 %v2743
        %v3719 = vpop.f32.mrb[0].mxu0
        %v3720 = vadd.f32 %v3559, %v3719
        %v3721 = vpop.f32.mrb[0].mxu0
        %v3722 = vpop.f32.mrb[0].mxu0
        %v3723 = vadd.f32 %v3562, %v3722
        %v3724 = vpop.f32.mrb[0].mxu0
        %3725 = vmatprep.mubr.bf16.mxu0 0
        %3726 = vmatmul.mubr.bf16.gmra.mrb[0].mxu0 %v2746
        %v3727 = vpop.f32.mrb[0].mxu0
        %v3728 = vadd.f32 %v3567, %v3727
        %v3729 = vpop.f32.mrb[0].mxu0
        %v3730 = vpop.f32.mrb[0].mxu0
        %v3731 = vadd.f32 %v3570, %v3730
        %v3732 = vpop.f32.mrb[0].mxu0
        %3733 = vmatprep.mubr.bf16.mxu0 0
        %3734 = vmatmul.mubr.bf16.gmra.mrb[0].mxu0 %v2749
        %v3735 = vpop.f32.mrb[0].mxu0
        %v3736 = vadd.f32 %v3575, %v3735
        %v3737 = vpop.f32.mrb[0].mxu0
        %v3738 = vpop.f32.mrb[0].mxu0
        %v3739 = vadd.f32 %v3578, %v3738
        %v3740 = vpop.f32.mrb[0].mxu0
        %3741 = vmatprep.mubr.bf16.mxu0 0
        %3742 = vmatmul.mubr.bf16.gmra.mrb[0].mxu0 %v2752
        %v3743 = vpop.f32.mrb[0].mxu0
        %v3744 = vadd.f32 %v3583, %v3743
        %v3745 = vpop.f32.mrb[0].mxu0
        %v3746 = vpop.f32.mrb[0].mxu0
        %v3747 = vadd.f32 %v3586, %v3746
        %v3748 = vpop.f32.mrb[0].mxu0
        %3749 = vmatprep.mubr.bf16.mxu0 0
        %3750 = vmatmul.mubr.bf16.gmra.mrb[0].mxu0 %v2755
        %v3751 = vpop.f32.mrb[0].mxu0
        %v3752 = vadd.f32 %v3591, %v3751
        %v3753 = vpop.f32.mrb[0].mxu0
        %v3754 = vpop.f32.mrb[0].mxu0
        %v3755 = vadd.f32 %v3594, %v3754
        %v3756 = vpop.f32.mrb[0].mxu0
        %3757 = vmatprep.mubr.bf16.mxu0 0
        %3758 = vmatmul.mubr.bf16.gmra.mrb[0].mxu0 %v2758
        %v3759 = vpop.f32.mrb[0].mxu0
        %v3760 = vadd.f32 %v3599, %v3759
        %v3761 = vpop.f32.mrb[0].mxu0
        %v3762 = vpop.f32.mrb[0].mxu0
        %v3763 = vadd.f32 %v3602, %v3762
        %v3764 = vpop.f32.mrb[0].mxu0
        %3765 = vmatprep.mubr.bf16.mxu0 0
        %3766 = vmatmul.mubr.bf16.gmra.mrb[0].mxu0 %v2761
        %v3767 = vpop.f32.mrb[0].mxu0
        %v3768 = vadd.f32 %v3607, %v3767
        %v3769 = vpop.f32.mrb[0].mxu0
        %v3770 = vpop.f32.mrb[0].mxu0
        %v3771 = vadd.f32 %v3610, %v3770
        %v3772 = vpop.f32.mrb[0].mxu0
        %3773 = vmatprep.mubr.bf16.mxu0 0
        %3774 = vmatmul.mubr.bf16.gmra.mrb[0].mxu0 %v2764
        %v3775 = vpop.f32.mrb[0].mxu0
        %v3776 = vadd.f32 %v3615, %v3775
        %v3777 = vpop.f32.mrb[0].mxu0
        %v3778 = vpop.f32.mrb[0].mxu0
        %v3779 = vadd.f32 %v3618, %v3778
        %v3780 = vpop.f32.mrb[0].mxu0
        %3781 = vmatprep.mubr.bf16.mxu0 0
        %3782 = vmatmul.mubr.bf16.gmra.mrb[0].mxu0 %v2767
        %v3783 = vpop.f32.mrb[0].mxu0
        %v3784 = vadd.f32 %v3623, %v3783
        %v3785 = vpop.f32.mrb[0].mxu0
        %v3786 = vpop.f32.mrb[0].mxu0
        %v3787 = vadd.f32 %v3626, %v3786
        %v3788 = vpop.f32.mrb[0].mxu0
        %3789 = vmatprep.mubr.bf16.mxu0 0
        %3790 = vmatmul.mubr.bf16.gmra.mrb[0].mxu0 %v2770
        %v3791 = vpop.f32.mrb[0].mxu0
        %v3792 = vadd.f32 %v3631, %v3791
        %v3793 = vpop.f32.mrb[0].mxu0
        %v3794 = vpop.f32.mrb[0].mxu0
        %v3795 = vadd.f32 %v3634, %v3794
        %v3796 = vpop.f32.mrb[0].mxu0
        %3797 = vmatprep.mubr.bf16.mxu0 0
        %3798 = vmatmul.mubr.bf16.gmra.mrb[0].mxu0 %v2773
        %v3799 = vpop.f32.mrb[0].mxu0
        %v3800 = vadd.f32 %v3639, %v3799
        %v3801 = vpop.f32.mrb[0].mxu0
        %v3802 = vpop.f32.mrb[0].mxu0
        %v3803 = vadd.f32 %v3642, %v3802
        %v3804 = vpop.f32.mrb[0].mxu0
        %3805 = vdwg.mxu0
        %v3806 = vld [vmem:[#allocation4 + $0x30] sm:$0xff]
        %v3807 = vld [vmem:[#allocation4 + $0x38] sm:$0xff]
        %v3808 = vld [vmem:[#allocation4 + $0x40] sm:$0xff]
        %v3809 = vld [vmem:[#allocation4 + $0x48] sm:$0xff]
        %v3810 = vld [vmem:[#allocation4 + $0x50] sm:$0xff]
        %v3811 = vld [vmem:[#allocation4 + $0x58] sm:$0xff]
        %v3812 = vld [vmem:[#allocation4 + $0x60] sm:$0xff]
        %v3813 = vld [vmem:[#allocation4 + $0x68] sm:$0xff]
        %v3814 = vld [vmem:[#allocation4 + $0x70] sm:$0xff]
        %v3815 = vld [vmem:[#allocation4 + $0x78] sm:$0xff]
        %v3816 = vld [vmem:[#allocation4 + $0x80] sm:$0xff]
        %v3817 = vld [vmem:[#allocation4 + $0x88] sm:$0xff]
        %v3818 = vld [vmem:[#allocation4 + $0x90] sm:$0xff]
        %v3819 = vld [vmem:[#allocation4 + $0x98] sm:$0xff]
        %v3820 = vld [vmem:[#allocation4 + $0xa0] sm:$0xff]
        %v3821 = vld [vmem:[#allocation4 + $0xa8] sm:$0xff]
        %v3822 = vld [vmem:[#allocation4 + $0xb0] sm:$0xff]
        %v3823 = vld [vmem:[#allocation4 + $0xb8] sm:$0xff]
        %v3824 = vld [vmem:[#allocation4 + $0xc0] sm:$0xff]
        %v3825 = vld [vmem:[#allocation4 + $0xc8] sm:$0xff]
        %v3826 = vld [vmem:[#allocation4 + $0xd0] sm:$0xff]
        %v3827 = vld [vmem:[#allocation4 + $0xd8] sm:$0xff]
        %v3828 = vld [vmem:[#allocation4 + $0xe0] sm:$0xff]
        %v3829 = vld [vmem:[#allocation4 + $0xe8] sm:$0xff]
        %v3830 = vld [vmem:[#allocation4 + $0xf0] sm:$0xff]
        %v3831 = vld [vmem:[#allocation4 + $0xf8] sm:$0xff]
        %v3832 = vld [vmem:[#allocation4 + $0x100] sm:$0xff]
        %v3833 = vld [vmem:[#allocation4 + $0x108] sm:$0xff]
        %v3834 = vld [vmem:[#allocation4 + $0x110] sm:$0xff]
        %v3835 = vld [vmem:[#allocation4 + $0x118] sm:$0xff]
        %v3836 = vld [vmem:[#allocation4 + $0x120] sm:$0xff]
        %v3837 = vld [vmem:[#allocation4 + $0x128] sm:$0xff]
        %v3838 = vld [vmem:[#allocation4 + $0x130] sm:$0xff]
        %v3839 = vld [vmem:[#allocation4 + $0x138] sm:$0xff]
        %v3840 = vld [vmem:[#allocation4 + $0x140] sm:$0xff]
        %v3841 = vld [vmem:[#allocation4 + $0x148] sm:$0xff]
        %v3842 = vld [vmem:[#allocation4 + $0x150] sm:$0xff]
        %v3843 = vld [vmem:[#allocation4 + $0x158] sm:$0xff]
        %v3844 = vld [vmem:[#allocation4 + $0x160] sm:$0xff]
        %v3845 = vld [vmem:[#allocation4 + $0x168] sm:$0xff]
        %v3846 = vld [vmem:[#allocation4 + $0x170] sm:$0xff]
        %v3847 = vld [vmem:[#allocation4 + $0x178] sm:$0xff]
        %v3848 = vld [vmem:[#allocation4 + $0x180] sm:$0xff]
        %v3849 = vld [vmem:[#allocation4 + $0x188] sm:$0xff]
        %v3850 = vld [vmem:[#allocation4 + $0x190] sm:$0xff]
        %v3851 = vld [vmem:[#allocation4 + $0x198] sm:$0xff]
        %v3852 = vld [vmem:[#allocation4 + $0x1a0] sm:$0xff]
        %v3853 = vld [vmem:[#allocation4 + $0x1a8] sm:$0xff]
        %s3854 = scalar_lea.vmem [#allocation10], 384
        %v3855 = vld [vmem:[%s3854] sm:$0xf]
        %v3856 = vld [vmem:[%s3854 + $0x4] sm:$0xf]
        %v3857 = vld [vmem:[%s3854 + $0x8] sm:$0xf]
        %v3858 = vld [vmem:[%s3854 + $0xc] sm:$0xf]
        %v3859 = vld [vmem:[%s3854 + $0x10] sm:$0xf]
        %v3860 = vld [vmem:[%s3854 + $0x14] sm:$0xf]
        %v3861 = vld [vmem:[%s3854 + $0x18] sm:$0xf]
        %v3862 = vld [vmem:[%s3854 + $0x1c] sm:$0xf]
        %v3863 = vld [vmem:[%s3854 + $0x20] sm:$0xf]
        %v3864 = vld [vmem:[%s3854 + $0x24] sm:$0xf]
        %v3865 = vld [vmem:[%s3854 + $0x28] sm:$0xf]
        %v3866 = vld [vmem:[%s3854 + $0x2c] sm:$0xf]
        %v3867 = vld [vmem:[%s3854 + $0x30] sm:$0xf]
        %v3868 = vld [vmem:[%s3854 + $0x34] sm:$0xf]
        %v3869 = vld [vmem:[%s3854 + $0x38] sm:$0xf]
        %v3870 = vld [vmem:[%s3854 + $0x3c] sm:$0xf]
        %v3871 = vld [vmem:[%s3854 + $0x40] sm:$0xf]
        %v3872 = vld [vmem:[%s3854 + $0x44] sm:$0xf]
        %v3873 = vld [vmem:[%s3854 + $0x48] sm:$0xf]
        %v3874 = vld [vmem:[%s3854 + $0x4c] sm:$0xf]
        %v3875 = vld [vmem:[%s3854 + $0x50] sm:$0xf]
        %v3876 = vld [vmem:[%s3854 + $0x54] sm:$0xf]
        %v3877 = vld [vmem:[%s3854 + $0x58] sm:$0xf]
        %v3878 = vld [vmem:[%s3854 + $0x5c] sm:$0xf]
        %v3879 = vld [vmem:[%s3854 + $0x60] sm:$0xf]
        %v3880 = vld [vmem:[%s3854 + $0x64] sm:$0xf]
        %v3881 = vld [vmem:[%s3854 + $0x68] sm:$0xf]
        %v3882 = vld [vmem:[%s3854 + $0x6c] sm:$0xf]
        %v3883 = vld [vmem:[%s3854 + $0x70] sm:$0xf]
        %v3884 = vld [vmem:[%s3854 + $0x74] sm:$0xf]
        %v3885 = vld [vmem:[%s3854 + $0x78] sm:$0xf]
        %v3886 = vld [vmem:[%s3854 + $0x7c] sm:$0xf]
        %v3887 = vld [vmem:[%s3854 + $0x80] sm:$0xf]
        %v3888 = vld [vmem:[%s3854 + $0x84] sm:$0xf]
        %v3889 = vld [vmem:[%s3854 + $0x88] sm:$0xf]
        %v3890 = vld [vmem:[%s3854 + $0x8c] sm:$0xf]
        %v3891 = vld [vmem:[%s3854 + $0x90] sm:$0xf]
        %v3892 = vld [vmem:[%s3854 + $0x94] sm:$0xf]
        %v3893 = vld [vmem:[%s3854 + $0x98] sm:$0xf]
        %v3894 = vld [vmem:[%s3854 + $0x9c] sm:$0xf]
        %v3895 = vld [vmem:[%s3854 + $0xa0] sm:$0xf]
        %v3896 = vld [vmem:[%s3854 + $0xa4] sm:$0xf]
        %v3897 = vld [vmem:[%s3854 + $0xa8] sm:$0xf]
        %v3898 = vld [vmem:[%s3854 + $0xac] sm:$0xf]
        %v3899 = vld [vmem:[%s3854 + $0xb0] sm:$0xf]
        %v3900 = vld [vmem:[%s3854 + $0xb4] sm:$0xf]
        %v3901 = vld [vmem:[%s3854 + $0xb8] sm:$0xf]
        %v3902 = vld [vmem:[%s3854 + $0xbc] sm:$0xf]
        %v3951 = vunpack.c.l.b16 %v3855
        %v3952 = vunpack.c.l.b16 %v3856
        %v3953 = vunpack.c.l.b16 %v3857
        %v3954 = vunpack.c.l.b16 %v3858
        %v3955 = vunpack.c.l.b16 %v3859
        %v3956 = vunpack.c.l.b16 %v3860
        %v3957 = vunpack.c.l.b16 %v3861
        %v3958 = vunpack.c.l.b16 %v3862
        %v3959 = vunpack.c.l.b16 %v3863
        %v3960 = vunpack.c.l.b16 %v3864
        %v3961 = vunpack.c.l.b16 %v3865
        %v3962 = vunpack.c.l.b16 %v3866
        %v3963 = vunpack.c.l.b16 %v3867
        %v3964 = vunpack.c.l.b16 %v3868
        %v3965 = vunpack.c.l.b16 %v3869
        %v3966 = vunpack.c.l.b16 %v3870
        %v3967 = vunpack.c.l.b16 %v3871
        %v3968 = vunpack.c.l.b16 %v3872
        %v3969 = vunpack.c.l.b16 %v3873
        %v3970 = vunpack.c.l.b16 %v3874
        %v3971 = vunpack.c.l.b16 %v3875
        %v3972 = vunpack.c.l.b16 %v3876
        %v3973 = vunpack.c.l.b16 %v3877
        %v3974 = vunpack.c.l.b16 %v3878
        %v3975 = vunpack.c.l.b16 %v3879
        %v3976 = vunpack.c.l.b16 %v3880
        %v3977 = vunpack.c.l.b16 %v3881
        %v3978 = vunpack.c.l.b16 %v3882
        %v3979 = vunpack.c.l.b16 %v3883
        %v3980 = vunpack.c.l.b16 %v3884
        %v3981 = vunpack.c.l.b16 %v3885
        %v3982 = vunpack.c.l.b16 %v3886
        %v3983 = vunpack.c.l.b16 %v3887
        %v3984 = vunpack.c.l.b16 %v3888
        %v3985 = vunpack.c.l.b16 %v3889
        %v3986 = vunpack.c.l.b16 %v3890
        %v3987 = vunpack.c.l.b16 %v3891
        %v3988 = vunpack.c.l.b16 %v3892
        %v3989 = vunpack.c.l.b16 %v3893
        %v3990 = vunpack.c.l.b16 %v3894
        %v3991 = vunpack.c.l.b16 %v3895
        %v3992 = vunpack.c.l.b16 %v3896
        %v3993 = vunpack.c.l.b16 %v3897
        %v3994 = vunpack.c.l.b16 %v3898
        %v3995 = vunpack.c.l.b16 %v3899
        %v3996 = vunpack.c.l.b16 %v3900
        %v3997 = vunpack.c.l.b16 %v3901
        %v3998 = vunpack.c.l.b16 %v3902
        %v3999 = vpack.c.b16 %v3952, %v3951
        %v4000 = vpack.c.b16 %v3954, %v3953
        %v4001 = vpack.c.b16 %v3956, %v3955
        %v4002 = vpack.c.b16 %v3958, %v3957
        %v4003 = vpack.c.b16 %v3960, %v3959
        %v4004 = vpack.c.b16 %v3962, %v3961
        %v4005 = vpack.c.b16 %v3964, %v3963
        %v4006 = vpack.c.b16 %v3966, %v3965
        %v4007 = vpack.c.b16 %v3968, %v3967
        %v4008 = vpack.c.b16 %v3970, %v3969
        %v4009 = vpack.c.b16 %v3972, %v3971
        %v4010 = vpack.c.b16 %v3974, %v3973
        %v4011 = vpack.c.b16 %v3976, %v3975
        %v4012 = vpack.c.b16 %v3978, %v3977
        %v4013 = vpack.c.b16 %v3980, %v3979
        %v4014 = vpack.c.b16 %v3982, %v3981
        %v4015 = vpack.c.b16 %v3984, %v3983
        %v4016 = vpack.c.b16 %v3986, %v3985
        %v4017 = vpack.c.b16 %v3988, %v3987
        %v4018 = vpack.c.b16 %v3990, %v3989
        %v4019 = vpack.c.b16 %v3992, %v3991
        %v4020 = vpack.c.b16 %v3994, %v3993
        %v4021 = vpack.c.b16 %v3996, %v3995
        %v4022 = vpack.c.b16 %v3998, %v3997
        %4047 = vmatprep.subr.bf16.mxu0 0
        %4048 = vmatpush1.bf16.msra.mxu0 %v3999
        %4049 = vmatprep.subr.bf16.mxu0 0
        %4050 = vmatpush1.bf16.msra.mxu0 %v4000
        %4051 = vmatprep.subr.bf16.mxu0 0
        %4052 = vmatpush1.bf16.msra.mxu0 %v4001
        %4053 = vmatprep.subr.bf16.mxu0 0
        %4054 = vmatpush1.bf16.msra.mxu0 %v4002
        %4055 = vmatprep.subr.bf16.mxu0 0
        %4056 = vmatpush1.bf16.msra.mxu0 %v4003
        %4057 = vmatprep.subr.bf16.mxu0 0
        %4058 = vmatpush1.bf16.msra.mxu0 %v4004
        %4059 = vmatprep.subr.bf16.mxu0 0
        %4060 = vmatpush1.bf16.msra.mxu0 %v4005
        %4061 = vmatprep.subr.bf16.mxu0 0
        %4062 = vmatpush1.bf16.msra.mxu0 %v4006
        %4063 = vmatprep.subr.bf16.mxu0 0
        %4064 = vmatpush1.bf16.msra.mxu0 %v4007
        %4065 = vmatprep.subr.bf16.mxu0 0
        %4066 = vmatpush1.bf16.msra.mxu0 %v4008
        %4067 = vmatprep.subr.bf16.mxu0 0
        %4068 = vmatpush1.bf16.msra.mxu0 %v4009
        %4069 = vmatprep.subr.bf16.mxu0 0
        %4070 = vmatpush1.bf16.msra.mxu0 %v4010
        %4071 = vmatprep.subr.bf16.mxu0 0
        %4072 = vmatpush1.bf16.msra.mxu0 %v4011
        %4073 = vmatprep.subr.bf16.mxu0 0
        %4074 = vmatpush1.bf16.msra.mxu0 %v4012
        %4075 = vmatprep.subr.bf16.mxu0 0
        %4076 = vmatpush1.bf16.msra.mxu0 %v4013
        %4077 = vmatprep.subr.bf16.mxu0 0
        %4078 = vmatpush1.bf16.msra.mxu0 %v4014
        %4079 = vmatprep.mubr.bf16.mxu0 %v3807
        %4080 = vmatmul.mubr.bf16.gmra.mrb[0].mxu0 %v3806
        %v4081 = vpop.f32.mrb[0].mxu0
        %v4082 = vadd.f32 0.0, %v4081
        %v4083 = vpop.f32.mrb[0].mxu0
        %v4084 = vpop.f32.mrb[0].mxu0
        %v4085 = vadd.f32 0.0, %v4084
        %v4086 = vpop.f32.mrb[0].mxu0
        %4087 = vmatprep.mubr.bf16.mxu0 %v3810
        %4088 = vmatmul.mubr.bf16.gmra.mrb[0].mxu0 %v3809
        %v4089 = vpop.f32.mrb[0].mxu0
        %v4090 = vadd.f32 0.0, %v4089
        %v4091 = vpop.f32.mrb[0].mxu0
        %v4092 = vpop.f32.mrb[0].mxu0
        %v4093 = vadd.f32 0.0, %v4092
        %v4094 = vpop.f32.mrb[0].mxu0
        %4095 = vmatprep.mubr.bf16.mxu0 %v3813
        %4096 = vmatmul.mubr.bf16.gmra.mrb[0].mxu0 %v3812
        %v4097 = vpop.f32.mrb[0].mxu0
        %v4098 = vadd.f32 0.0, %v4097
        %v4099 = vpop.f32.mrb[0].mxu0
        %v4100 = vpop.f32.mrb[0].mxu0
        %v4101 = vadd.f32 0.0, %v4100
        %v4102 = vpop.f32.mrb[0].mxu0
        %4103 = vmatprep.mubr.bf16.mxu0 %v3816
        %4104 = vmatmul.mubr.bf16.gmra.mrb[0].mxu0 %v3815
        %v4105 = vpop.f32.mrb[0].mxu0
        %v4106 = vadd.f32 0.0, %v4105
        %v4107 = vpop.f32.mrb[0].mxu0
        %v4108 = vpop.f32.mrb[0].mxu0
        %v4109 = vadd.f32 0.0, %v4108
        %v4110 = vpop.f32.mrb[0].mxu0
        %4111 = vmatprep.mubr.bf16.mxu0 %v3819
        %4112 = vmatmul.mubr.bf16.gmra.mrb[0].mxu0 %v3818
        %v4113 = vpop.f32.mrb[0].mxu0
        %v4114 = vadd.f32 0.0, %v4113
        %v4115 = vpop.f32.mrb[0].mxu0
        %v4116 = vpop.f32.mrb[0].mxu0
        %v4117 = vadd.f32 0.0, %v4116
        %v4118 = vpop.f32.mrb[0].mxu0
        %4119 = vmatprep.mubr.bf16.mxu0 %v3822
        %4120 = vmatmul.mubr.bf16.gmra.mrb[0].mxu0 %v3821
        %v4121 = vpop.f32.mrb[0].mxu0
        %v4122 = vadd.f32 0.0, %v4121
        %v4123 = vpop.f32.mrb[0].mxu0
        %v4124 = vpop.f32.mrb[0].mxu0
        %v4125 = vadd.f32 0.0, %v4124
        %v4126 = vpop.f32.mrb[0].mxu0
        %4127 = vmatprep.mubr.bf16.mxu0 %v3825
        %4128 = vmatmul.mubr.bf16.gmra.mrb[0].mxu0 %v3824
        %v4129 = vpop.f32.mrb[0].mxu0
        %v4130 = vadd.f32 0.0, %v4129
        %v4131 = vpop.f32.mrb[0].mxu0
        %v4132 = vpop.f32.mrb[0].mxu0
        %v4133 = vadd.f32 0.0, %v4132
        %v4134 = vpop.f32.mrb[0].mxu0
        %4135 = vmatprep.mubr.bf16.mxu0 %v3828
        %4136 = vmatmul.mubr.bf16.gmra.mrb[0].mxu0 %v3827
        %v4137 = vpop.f32.mrb[0].mxu0
        %v4138 = vadd.f32 0.0, %v4137
        %v4139 = vpop.f32.mrb[0].mxu0
        %v4140 = vpop.f32.mrb[0].mxu0
        %v4141 = vadd.f32 0.0, %v4140
        %v4142 = vpop.f32.mrb[0].mxu0
        %4143 = vmatprep.mubr.bf16.mxu0 %v3831
        %4144 = vmatmul.mubr.bf16.gmra.mrb[0].mxu0 %v3830
        %v4145 = vpop.f32.mrb[0].mxu0
        %v4146 = vadd.f32 0.0, %v4145
        %v4147 = vpop.f32.mrb[0].mxu0
        %v4148 = vpop.f32.mrb[0].mxu0
        %v4149 = vadd.f32 0.0, %v4148
        %v4150 = vpop.f32.mrb[0].mxu0
        %4151 = vmatprep.mubr.bf16.mxu0 %v3834
        %4152 = vmatmul.mubr.bf16.gmra.mrb[0].mxu0 %v3833
        %v4153 = vpop.f32.mrb[0].mxu0
        %v4154 = vadd.f32 0.0, %v4153
        %v4155 = vpop.f32.mrb[0].mxu0
        %v4156 = vpop.f32.mrb[0].mxu0
        %v4157 = vadd.f32 0.0, %v4156
        %v4158 = vpop.f32.mrb[0].mxu0
        %4159 = vmatprep.mubr.bf16.mxu0 %v3837
        %4160 = vmatmul.mubr.bf16.gmra.mrb[0].mxu0 %v3836
        %v4161 = vpop.f32.mrb[0].mxu0
        %v4162 = vadd.f32 0.0, %v4161
        %v4163 = vpop.f32.mrb[0].mxu0
        %v4164 = vpop.f32.mrb[0].mxu0
        %v4165 = vadd.f32 0.0, %v4164
        %v4166 = vpop.f32.mrb[0].mxu0
        %4167 = vmatprep.mubr.bf16.mxu0 %v3840
        %4168 = vmatmul.mubr.bf16.gmra.mrb[0].mxu0 %v3839
        %v4169 = vpop.f32.mrb[0].mxu0
        %v4170 = vadd.f32 0.0, %v4169
        %v4171 = vpop.f32.mrb[0].mxu0
        %v4172 = vpop.f32.mrb[0].mxu0
        %v4173 = vadd.f32 0.0, %v4172
        %v4174 = vpop.f32.mrb[0].mxu0
        %4175 = vmatprep.mubr.bf16.mxu0 %v3843
        %4176 = vmatmul.mubr.bf16.gmra.mrb[0].mxu0 %v3842
        %v4177 = vpop.f32.mrb[0].mxu0
        %v4178 = vadd.f32 0.0, %v4177
        %v4179 = vpop.f32.mrb[0].mxu0
        %v4180 = vpop.f32.mrb[0].mxu0
        %v4181 = vadd.f32 0.0, %v4180
        %v4182 = vpop.f32.mrb[0].mxu0
        %4183 = vmatprep.mubr.bf16.mxu0 %v3846
        %4184 = vmatmul.mubr.bf16.gmra.mrb[0].mxu0 %v3845
        %v4185 = vpop.f32.mrb[0].mxu0
        %v4186 = vadd.f32 0.0, %v4185
        %v4187 = vpop.f32.mrb[0].mxu0
        %v4188 = vpop.f32.mrb[0].mxu0
        %v4189 = vadd.f32 0.0, %v4188
        %v4190 = vpop.f32.mrb[0].mxu0
        %4191 = vmatprep.mubr.bf16.mxu0 %v3849
        %4192 = vmatmul.mubr.bf16.gmra.mrb[0].mxu0 %v3848
        %v4193 = vpop.f32.mrb[0].mxu0
        %v4194 = vadd.f32 0.0, %v4193
        %v4195 = vpop.f32.mrb[0].mxu0
        %v4196 = vpop.f32.mrb[0].mxu0
        %v4197 = vadd.f32 0.0, %v4196
        %v4198 = vpop.f32.mrb[0].mxu0
        %4199 = vmatprep.mubr.bf16.mxu0 %v3852
        %4200 = vmatmul.mubr.bf16.gmra.mrb[0].mxu0 %v3851
        %v4201 = vpop.f32.mrb[0].mxu0
        %v4202 = vadd.f32 0.0, %v4201
        %v4203 = vpop.f32.mrb[0].mxu0
        %v4204 = vpop.f32.mrb[0].mxu0
        %v4205 = vadd.f32 0.0, %v4204
        %v4206 = vpop.f32.mrb[0].mxu0
        %4207 = vdwg.mxu0
        %4208 = vmatprep.subr.bf16.mxu0 0
        %4209 = vmatpush1.bf16.msra.mxu0 %v4015
        %4210 = vmatprep.subr.bf16.mxu0 0
        %4211 = vmatpush1.bf16.msra.mxu0 %v4016
        %4212 = vmatprep.subr.bf16.mxu0 0
        %4213 = vmatpush1.bf16.msra.mxu0 %v4017
        %4214 = vmatprep.subr.bf16.mxu0 0
        %4215 = vmatpush1.bf16.msra.mxu0 %v4018
        %4216 = vmatprep.subr.bf16.mxu0 0
        %4217 = vmatpush1.bf16.msra.mxu0 %v4019
        %4218 = vmatprep.subr.bf16.mxu0 0
        %4219 = vmatpush1.bf16.msra.mxu0 %v4020
        %4220 = vmatprep.subr.bf16.mxu0 0
        %4221 = vmatpush1.bf16.msra.mxu0 %v4021
        %4222 = vmatprep.subr.bf16.mxu0 0
        %4223 = vmatpush1.bf16.msra.mxu0 %v4022
        %4224 = vmatprep.subr.bf16.mxu0 0
        %4225 = vmatpush1.bf16.msra.mxu0 0
        %4226 = vmatprep.subr.bf16.mxu0 0
        %4227 = vmatpush1.bf16.msra.mxu0 0
        %4228 = vmatprep.subr.bf16.mxu0 0
        %4229 = vmatpush1.bf16.msra.mxu0 0
        %4230 = vmatprep.subr.bf16.mxu0 0
        %4231 = vmatpush1.bf16.msra.mxu0 0
        %4232 = vmatprep.subr.bf16.mxu0 0
        %4233 = vmatpush1.bf16.msra.mxu0 0
        %4234 = vmatprep.subr.bf16.mxu0 0
        %4235 = vmatpush1.bf16.msra.mxu0 0
        %4236 = vmatprep.subr.bf16.mxu0 0
        %4237 = vmatpush1.bf16.msra.mxu0 0
        %4238 = vmatprep.subr.bf16.mxu0 0
        %4239 = vmatpush1.bf16.msra.mxu0 0
        %4240 = vmatprep.mubr.bf16.mxu0 0
        %4241 = vmatmul.mubr.bf16.gmra.mrb[0].mxu0 %v3808
        %v4242 = vpop.f32.mrb[0].mxu0
        %v4243 = vadd.f32 %v4082, %v4242
        %v4244 = vpop.f32.mrb[0].mxu0
        %v4245 = vpop.f32.mrb[0].mxu0
        %v4246 = vadd.f32 %v4085, %v4245
        %v4247 = vpop.f32.mrb[0].mxu0
        %4248 = vmatprep.mubr.bf16.mxu0 0
        %4249 = vmatmul.mubr.bf16.gmra.mrb[0].mxu0 %v3811
        %v4250 = vpop.f32.mrb[0].mxu0
        %v4251 = vadd.f32 %v4090, %v4250
        %v4252 = vpop.f32.mrb[0].mxu0
        %v4253 = vpop.f32.mrb[0].mxu0
        %v4254 = vadd.f32 %v4093, %v4253
        %v4255 = vpop.f32.mrb[0].mxu0
        %4256 = vmatprep.mubr.bf16.mxu0 0
        %4257 = vmatmul.mubr.bf16.gmra.mrb[0].mxu0 %v3814
        %v4258 = vpop.f32.mrb[0].mxu0
        %v4259 = vadd.f32 %v4098, %v4258
        %v4260 = vpop.f32.mrb[0].mxu0
        %v4261 = vpop.f32.mrb[0].mxu0
        %v4262 = vadd.f32 %v4101, %v4261
        %v4263 = vpop.f32.mrb[0].mxu0
        %4264 = vmatprep.mubr.bf16.mxu0 0
        %4265 = vmatmul.mubr.bf16.gmra.mrb[0].mxu0 %v3817
        %v4266 = vpop.f32.mrb[0].mxu0
        %v4267 = vadd.f32 %v4106, %v4266
        %v4268 = vpop.f32.mrb[0].mxu0
        %v4269 = vpop.f32.mrb[0].mxu0
        %v4270 = vadd.f32 %v4109, %v4269
        %v4271 = vpop.f32.mrb[0].mxu0
        %4272 = vmatprep.mubr.bf16.mxu0 0
        %4273 = vmatmul.mubr.bf16.gmra.mrb[0].mxu0 %v3820
        %v4274 = vpop.f32.mrb[0].mxu0
        %v4275 = vadd.f32 %v4114, %v4274
        %v4276 = vpop.f32.mrb[0].mxu0
        %v4277 = vpop.f32.mrb[0].mxu0
        %v4278 = vadd.f32 %v4117, %v4277
        %v4279 = vpop.f32.mrb[0].mxu0
        %4280 = vmatprep.mubr.bf16.mxu0 0
        %4281 = vmatmul.mubr.bf16.gmra.mrb[0].mxu0 %v3823
        %v4282 = vpop.f32.mrb[0].mxu0
        %v4283 = vadd.f32 %v4122, %v4282
        %v4284 = vpop.f32.mrb[0].mxu0
        %v4285 = vpop.f32.mrb[0].mxu0
        %v4286 = vadd.f32 %v4125, %v4285
        %v4287 = vpop.f32.mrb[0].mxu0
        %4288 = vmatprep.mubr.bf16.mxu0 0
        %4289 = vmatmul.mubr.bf16.gmra.mrb[0].mxu0 %v3826
        %v4290 = vpop.f32.mrb[0].mxu0
        %v4291 = vadd.f32 %v4130, %v4290
        %v4292 = vpop.f32.mrb[0].mxu0
        %v4293 = vpop.f32.mrb[0].mxu0
        %v4294 = vadd.f32 %v4133, %v4293
        %v4295 = vpop.f32.mrb[0].mxu0
        %4296 = vmatprep.mubr.bf16.mxu0 0
        %4297 = vmatmul.mubr.bf16.gmra.mrb[0].mxu0 %v3829
        %v4298 = vpop.f32.mrb[0].mxu0
        %v4299 = vadd.f32 %v4138, %v4298
        %v4300 = vpop.f32.mrb[0].mxu0
        %v4301 = vpop.f32.mrb[0].mxu0
        %v4302 = vadd.f32 %v4141, %v4301
        %v4303 = vpop.f32.mrb[0].mxu0
        %4304 = vmatprep.mubr.bf16.mxu0 0
        %4305 = vmatmul.mubr.bf16.gmra.mrb[0].mxu0 %v3832
        %v4306 = vpop.f32.mrb[0].mxu0
        %v4307 = vadd.f32 %v4146, %v4306
        %v4308 = vpop.f32.mrb[0].mxu0
        %v4309 = vpop.f32.mrb[0].mxu0
        %v4310 = vadd.f32 %v4149, %v4309
        %v4311 = vpop.f32.mrb[0].mxu0
        %4312 = vmatprep.mubr.bf16.mxu0 0
        %4313 = vmatmul.mubr.bf16.gmra.mrb[0].mxu0 %v3835
        %v4314 = vpop.f32.mrb[0].mxu0
        %v4315 = vadd.f32 %v4154, %v4314
        %v4316 = vpop.f32.mrb[0].mxu0
        %v4317 = vpop.f32.mrb[0].mxu0
        %v4318 = vadd.f32 %v4157, %v4317
        %v4319 = vpop.f32.mrb[0].mxu0
        %4320 = vmatprep.mubr.bf16.mxu0 0
        %4321 = vmatmul.mubr.bf16.gmra.mrb[0].mxu0 %v3838
        %v4322 = vpop.f32.mrb[0].mxu0
        %v4323 = vadd.f32 %v4162, %v4322
        %v4324 = vpop.f32.mrb[0].mxu0
        %v4325 = vpop.f32.mrb[0].mxu0
        %v4326 = vadd.f32 %v4165, %v4325
        %v4327 = vpop.f32.mrb[0].mxu0
        %4328 = vmatprep.mubr.bf16.mxu0 0
        %4329 = vmatmul.mubr.bf16.gmra.mrb[0].mxu0 %v3841
        %v4330 = vpop.f32.mrb[0].mxu0
        %v4331 = vadd.f32 %v4170, %v4330
        %v4332 = vpop.f32.mrb[0].mxu0
        %v4333 = vpop.f32.mrb[0].mxu0
        %v4334 = vadd.f32 %v4173, %v4333
        %v4335 = vpop.f32.mrb[0].mxu0
        %4336 = vmatprep.mubr.bf16.mxu0 0
        %4337 = vmatmul.mubr.bf16.gmra.mrb[0].mxu0 %v3844
        %v4338 = vpop.f32.mrb[0].mxu0
        %v4339 = vadd.f32 %v4178, %v4338
        %v4340 = vpop.f32.mrb[0].mxu0
        %v4341 = vpop.f32.mrb[0].mxu0
        %v4342 = vadd.f32 %v4181, %v4341
        %v4343 = vpop.f32.mrb[0].mxu0
        %4344 = vmatprep.mubr.bf16.mxu0 0
        %4345 = vmatmul.mubr.bf16.gmra.mrb[0].mxu0 %v3847
        %v4346 = vpop.f32.mrb[0].mxu0
        %v4347 = vadd.f32 %v4186, %v4346
        %v4348 = vpop.f32.mrb[0].mxu0
        %v4349 = vpop.f32.mrb[0].mxu0
        %v4350 = vadd.f32 %v4189, %v4349
        %v4351 = vpop.f32.mrb[0].mxu0
        %4352 = vmatprep.mubr.bf16.mxu0 0
        %4353 = vmatmul.mubr.bf16.gmra.mrb[0].mxu0 %v3850
        %v4354 = vpop.f32.mrb[0].mxu0
        %v4355 = vadd.f32 %v4194, %v4354
        %v4356 = vpop.f32.mrb[0].mxu0
        %v4357 = vpop.f32.mrb[0].mxu0
        %v4358 = vadd.f32 %v4197, %v4357
        %v4359 = vpop.f32.mrb[0].mxu0
        %4360 = vmatprep.mubr.bf16.mxu0 0
        %4361 = vmatmul.mubr.bf16.gmra.mrb[0].mxu0 %v3853
        %v4362 = vpop.f32.mrb[0].mxu0
        %v4363 = vadd.f32 %v4202, %v4362
        %v4364 = vpop.f32.mrb[0].mxu0
        %v4365 = vpop.f32.mrb[0].mxu0
        %v4366 = vadd.f32 %v4205, %v4365
        %v4367 = vpop.f32.mrb[0].mxu0
        %4368 = vdwg.mxu0
        %v4369 = vadd.f32 %v3680, %v4243
        %v4370 = vadd.f32 %v3683, %v4246
        %v4371 = vadd.f32 %v3688, %v4251
        %v4372 = vadd.f32 %v3691, %v4254
        %v4373 = vadd.f32 %v3696, %v4259
        %v4374 = vadd.f32 %v3699, %v4262
        %v4375 = vadd.f32 %v3704, %v4267
        %v4376 = vadd.f32 %v3707, %v4270
        %v4377 = vadd.f32 %v3712, %v4275
        %v4378 = vadd.f32 %v3715, %v4278
        %v4379 = vadd.f32 %v3720, %v4283
        %v4380 = vadd.f32 %v3723, %v4286
        %v4381 = vadd.f32 %v3728, %v4291
        %v4382 = vadd.f32 %v3731, %v4294
        %v4383 = vadd.f32 %v3736, %v4299
        %v4384 = vadd.f32 %v3739, %v4302
        %v4385 = vadd.f32 %v3744, %v4307
        %v4386 = vadd.f32 %v3747, %v4310
        %v4387 = vadd.f32 %v3752, %v4315
        %v4388 = vadd.f32 %v3755, %v4318
        %v4389 = vadd.f32 %v3760, %v4323
        %v4390 = vadd.f32 %v3763, %v4326
        %v4391 = vadd.f32 %v3768, %v4331
        %v4392 = vadd.f32 %v3771, %v4334
        %v4393 = vadd.f32 %v3776, %v4339
        %v4394 = vadd.f32 %v3779, %v4342
        %v4395 = vadd.f32 %v3784, %v4347
        %v4396 = vadd.f32 %v3787, %v4350
        %v4397 = vadd.f32 %v3792, %v4355
        %v4398 = vadd.f32 %v3795, %v4358
        %v4399 = vadd.f32 %v3800, %v4363
        %v4400 = vadd.f32 %v3803, %v4366
        %v4402 = vlaneseq
        %v4403 = vshrl.u32 %v4402, 7
        %v4404 = vsub.s32 0, %v4403
        %v4405 = vrot.slane %v2725, %v4404
        %v4407 = vadd.f32 %v4369, %v4405
        %v4408 = vadd.f32 %v4370, %v4405
        %v4409 = vadd.f32 %v4371, %v4405
        %v4410 = vadd.f32 %v4372, %v4405
        %v4411 = vadd.f32 %v4373, %v4405
        %v4412 = vadd.f32 %v4374, %v4405
        %v4413 = vadd.f32 %v4375, %v4405
        %v4414 = vadd.f32 %v4376, %v4405
        %v4415 = vadd.f32 %v4377, %v4405
        %v4416 = vadd.f32 %v4378, %v4405
        %v4417 = vadd.f32 %v4379, %v4405
        %v4418 = vadd.f32 %v4380, %v4405
        %v4419 = vadd.f32 %v4381, %v4405
        %v4420 = vadd.f32 %v4382, %v4405
        %v4421 = vadd.f32 %v4383, %v4405
        %v4422 = vadd.f32 %v4384, %v4405
        %v4423 = vadd.f32 %v4385, %v4405
        %v4424 = vadd.f32 %v4386, %v4405
        %v4425 = vadd.f32 %v4387, %v4405
        %v4426 = vadd.f32 %v4388, %v4405
        %v4427 = vadd.f32 %v4389, %v4405
        %v4428 = vadd.f32 %v4390, %v4405
        %v4429 = vadd.f32 %v4391, %v4405
        %v4430 = vadd.f32 %v4392, %v4405
        %v4431 = vadd.f32 %v4393, %v4405
        %v4432 = vadd.f32 %v4394, %v4405
        %v4433 = vadd.f32 %v4395, %v4405
        %v4434 = vadd.f32 %v4396, %v4405
        %v4435 = vadd.f32 %v4397, %v4405
        %v4436 = vadd.f32 %v4398, %v4405
        %v4437 = vadd.f32 %v4399, %v4405
        %v4438 = vadd.f32 %v4400, %v4405
        %v4439 = vmax.f32 %v4407, 0.0
        %v4440 = vmax.f32 %v4408, 0.0
        %v4441 = vmax.f32 %v4409, 0.0
        %v4442 = vmax.f32 %v4410, 0.0
        %v4443 = vmax.f32 %v4411, 0.0
        %v4444 = vmax.f32 %v4412, 0.0
        %v4445 = vmax.f32 %v4413, 0.0
        %v4446 = vmax.f32 %v4414, 0.0
        %v4447 = vmax.f32 %v4415, 0.0
        %v4448 = vmax.f32 %v4416, 0.0
        %v4449 = vmax.f32 %v4417, 0.0
        %v4450 = vmax.f32 %v4418, 0.0
        %v4451 = vmax.f32 %v4419, 0.0
        %v4452 = vmax.f32 %v4420, 0.0
        %v4453 = vmax.f32 %v4421, 0.0
        %v4454 = vmax.f32 %v4422, 0.0
        %v4455 = vmax.f32 %v4423, 0.0
        %v4456 = vmax.f32 %v4424, 0.0
        %v4457 = vmax.f32 %v4425, 0.0
        %v4458 = vmax.f32 %v4426, 0.0
        %v4459 = vmax.f32 %v4427, 0.0
        %v4460 = vmax.f32 %v4428, 0.0
        %v4461 = vmax.f32 %v4429, 0.0
        %v4462 = vmax.f32 %v4430, 0.0
        %v4463 = vmax.f32 %v4431, 0.0
        %v4464 = vmax.f32 %v4432, 0.0
        %v4465 = vmax.f32 %v4433, 0.0
        %v4466 = vmax.f32 %v4434, 0.0
        %v4467 = vmax.f32 %v4435, 0.0
        %v4468 = vmax.f32 %v4436, 0.0
        %v4469 = vmax.f32 %v4437, 0.0
        %v4470 = vmax.f32 %v4438, 0.0
        %v4471 = vpack.c.bf16 %v4440, %v4439
        %v4472 = vpack.c.bf16 %v4442, %v4441
        %v4473 = vpack.c.bf16 %v4444, %v4443
        %v4474 = vpack.c.bf16 %v4446, %v4445
        %v4475 = vpack.c.bf16 %v4448, %v4447
        %v4476 = vpack.c.bf16 %v4450, %v4449
        %v4477 = vpack.c.bf16 %v4452, %v4451
        %v4478 = vpack.c.bf16 %v4454, %v4453
        %v4479 = vpack.c.bf16 %v4456, %v4455
        %v4480 = vpack.c.bf16 %v4458, %v4457
        %v4481 = vpack.c.bf16 %v4460, %v4459
        %v4482 = vpack.c.bf16 %v4462, %v4461
        %v4483 = vpack.c.bf16 %v4464, %v4463
        %v4484 = vpack.c.bf16 %v4466, %v4465
        %v4485 = vpack.c.bf16 %v4468, %v4467
        %v4486 = vpack.c.bf16 %v4470, %v4469
        %v4503 = vunpack.c.l.b16 %v4471
        %v4504 = vunpack.c.h.b16 %v4471
        %v4505 = vunpack.c.l.b16 %v4472
        %v4506 = vunpack.c.h.b16 %v4472
        %v4507 = vunpack.c.l.b16 %v4473
        %v4508 = vunpack.c.h.b16 %v4473
        %v4509 = vunpack.c.l.b16 %v4474
        %v4510 = vunpack.c.h.b16 %v4474
        %v4511 = vunpack.c.l.b16 %v4475
        %v4512 = vunpack.c.h.b16 %v4475
        %v4513 = vunpack.c.l.b16 %v4476
        %v4514 = vunpack.c.h.b16 %v4476
        %v4515 = vunpack.c.l.b16 %v4477
        %v4516 = vunpack.c.h.b16 %v4477
        %v4517 = vunpack.c.l.b16 %v4478
        %v4518 = vunpack.c.h.b16 %v4478
        %v4519 = vunpack.c.l.b16 %v4479
        %v4520 = vunpack.c.h.b16 %v4479
        %v4521 = vunpack.c.l.b16 %v4480
        %v4522 = vunpack.c.h.b16 %v4480
        %v4523 = vunpack.c.l.b16 %v4481
        %v4524 = vunpack.c.h.b16 %v4481
        %v4525 = vunpack.c.l.b16 %v4482
        %v4526 = vunpack.c.h.b16 %v4482
        %v4527 = vunpack.c.l.b16 %v4483
        %v4528 = vunpack.c.h.b16 %v4483
        %v4529 = vunpack.c.l.b16 %v4484
        %v4530 = vunpack.c.h.b16 %v4484
        %v4531 = vunpack.c.l.b16 %v4485
        %v4532 = vunpack.c.h.b16 %v4485
        %v4533 = vunpack.c.l.b16 %v4486
        %v4534 = vunpack.c.h.b16 %v4486
        %v4535 = vpack.c.b16 %v4503, %v4503
        %v4536 = vpack.c.b16 %v4504, %v4504
        %v4537 = vpack.c.b16 %v4505, %v4505
        %v4538 = vpack.c.b16 %v4506, %v4506
        %v4539 = vpack.c.b16 %v4507, %v4507
        %v4540 = vpack.c.b16 %v4508, %v4508
        %v4541 = vpack.c.b16 %v4509, %v4509
        %v4542 = vpack.c.b16 %v4510, %v4510
        %v4543 = vpack.c.b16 %v4511, %v4511
        %v4544 = vpack.c.b16 %v4512, %v4512
        %v4545 = vpack.c.b16 %v4513, %v4513
        %v4546 = vpack.c.b16 %v4514, %v4514
        %v4547 = vpack.c.b16 %v4515, %v4515
        %v4548 = vpack.c.b16 %v4516, %v4516
        %v4549 = vpack.c.b16 %v4517, %v4517
        %v4550 = vpack.c.b16 %v4518, %v4518
        %v4551 = vpack.c.b16 %v4519, %v4519
        %v4552 = vpack.c.b16 %v4520, %v4520
        %v4553 = vpack.c.b16 %v4521, %v4521
        %v4554 = vpack.c.b16 %v4522, %v4522
        %v4555 = vpack.c.b16 %v4523, %v4523
        %v4556 = vpack.c.b16 %v4524, %v4524
        %v4557 = vpack.c.b16 %v4525, %v4525
        %v4558 = vpack.c.b16 %v4526, %v4526
        %v4559 = vpack.c.b16 %v4527, %v4527
        %v4560 = vpack.c.b16 %v4528, %v4528
        %v4561 = vpack.c.b16 %v4529, %v4529
        %v4562 = vpack.c.b16 %v4530, %v4530
        %v4563 = vpack.c.b16 %v4531, %v4531
        %v4564 = vpack.c.b16 %v4532, %v4532
        %v4565 = vpack.c.b16 %v4533, %v4533
        %v4566 = vpack.c.b16 %v4534, %v4534
        %4599 = vst [vmem:[%s271] sm:$0xf] %v4535
        %4600 = vst [vmem:[%s271 + $0x4] sm:$0xf] %v4536
        %4601 = vst [vmem:[%s271 + $0x8] sm:$0xf] %v4537
        %4602 = vst [vmem:[%s271 + $0xc] sm:$0xf] %v4538
        %4603 = vst [vmem:[%s271 + $0x10] sm:$0xf] %v4539
        %4604 = vst [vmem:[%s271 + $0x14] sm:$0xf] %v4540
        %4605 = vst [vmem:[%s271 + $0x18] sm:$0xf] %v4541
        %4606 = vst [vmem:[%s271 + $0x1c] sm:$0xf] %v4542
        %4607 = vst [vmem:[%s271 + $0x20] sm:$0xf] %v4543
        %4608 = vst [vmem:[%s271 + $0x24] sm:$0xf] %v4544
        %4609 = vst [vmem:[%s271 + $0x28] sm:$0xf] %v4545
        %4610 = vst [vmem:[%s271 + $0x2c] sm:$0xf] %v4546
        %4611 = vst [vmem:[%s271 + $0x30] sm:$0xf] %v4547
        %4612 = vst [vmem:[%s271 + $0x34] sm:$0xf] %v4548
        %4613 = vst [vmem:[%s271 + $0x38] sm:$0xf] %v4549
        %4614 = vst [vmem:[%s271 + $0x3c] sm:$0xf] %v4550
        %4615 = vst [vmem:[%s271 + $0x40] sm:$0xf] %v4551
        %4616 = vst [vmem:[%s271 + $0x44] sm:$0xf] %v4552
        %4617 = vst [vmem:[%s271 + $0x48] sm:$0xf] %v4553
        %4618 = vst [vmem:[%s271 + $0x4c] sm:$0xf] %v4554
        %4619 = vst [vmem:[%s271 + $0x50] sm:$0xf] %v4555
        %4620 = vst [vmem:[%s271 + $0x54] sm:$0xf] %v4556
        %4621 = vst [vmem:[%s271 + $0x58] sm:$0xf] %v4557
        %4622 = vst [vmem:[%s271 + $0x5c] sm:$0xf] %v4558
        %4623 = vst [vmem:[%s271 + $0x60] sm:$0xf] %v4559
        %4624 = vst [vmem:[%s271 + $0x64] sm:$0xf] %v4560
        %4625 = vst [vmem:[%s271 + $0x68] sm:$0xf] %v4561
        %4626 = vst [vmem:[%s271 + $0x6c] sm:$0xf] %v4562
        %4627 = vst [vmem:[%s271 + $0x70] sm:$0xf] %v4563
        %4628 = vst [vmem:[%s271 + $0x74] sm:$0xf] %v4564
        %4629 = vst [vmem:[%s271 + $0x78] sm:$0xf] %v4565
        %4630 = vst [vmem:[%s271 + $0x7c] sm:$0xf] %v4566
        %s4631 = sand.u32 %s141, 1
        %s4632 = scalar_lea.sflag [#allocation7], %s4631
        %s4633 = sand.u32 %s141, 1
        %s4634 = smul.addr %s4633, 128
        %s4635 = scalar_lea.vmem [#allocation11], %s4634
        // Predicated region
        $region53: #{tpu_custom_call.1} parent=39 // pred_check
          %p4636 = pneg %p151
        $region54: #{tpu_custom_call.1} parent=39 // pred_check_branch
          %4638 = sbr.rel (%p4636) target = $region56
        $region55: #{tpu_custom_call.1} parent=39 // pred_region
          %s4640 = ssub.s32 2048, 2048
          %4641 = vsyncadd %s4632, %s4640
          %s4642 = smul.addr %s23, 32
          %s4643 = smul.addr %s4642, 64
          %s4644 = scalar_lea.hbm %s5, %s4643
          %s4645 = sshll.u32 %s4635, 4
          %s4646 = int_to_ptr.vmem [resolvable:$true] %s4645
          %4651 = dma.vmem_to_hbm [thread:$0]  %s4646, 2048, %s4644, %s4632, 64, 64, 4
        $region56: #{tpu_custom_call.1} parent=39 // pred_fallthru
          _
      $region40: #{tpu_custom_call.1} parent=5 // pred_fallthru
        _
      %p4652 = scmp.le.s32.totalorder 2, %s18
      // Predicated region
      $region57: #{tpu_custom_call.1} parent=5 // pred_check
        %p4653 = pneg %p4652
      $region58: #{tpu_custom_call.1} parent=5 // pred_check_branch
        %4655 = sbr.rel (%p4653) target = $region60
      $region59: #{tpu_custom_call.1} parent=5 // pred_region
        %s4656 = ssub.s32 %s18, 2
        // Predicated region
        $region61: #{tpu_custom_call.1} parent=59 // pred_check
          %p4657 = pneg %p157
        $region62: #{tpu_custom_call.1} parent=59 // pred_check_branch
          %4659 = sbr.rel (%p4657) target = $region64
        $region63: #{tpu_custom_call.1} parent=59 // pred_region
          %s4660 = sand.u32 %s142, 1
          %s4661 = scalar_lea.sflag [#allocation7], %s4660
          %s4662 = sand.u32 %s142, 1
          %s4663 = smul.addr %s4662, 128
          %s4664 = scalar_lea.vmem [#allocation11], %s4663
          %4665 = dma.done %s4661, 2048
        $region64: #{tpu_custom_call.1} parent=59 // pred_fallthru
          _
      $region60: #{tpu_custom_call.1} parent=5 // pred_fallthru
        _
    $region6: #{tpu_custom_call.1} parent=1 // loop_footer
      %s22 = sadd.s32 1, %s18
    $region7: #{tpu_custom_call.1} parent=1 // loop_footer_branch
      %17 = sbr.rel target = $region3
    $region8: #{tpu_custom_call.1} parent=1 // loop_exit
      _
    %4666 = vsyncpa [#allocation6], 1
    %s4667 = scalar_lea.sflag [#allocation6], 1
    %4668 = vsyncpa %s4667, 1
    %4669 = vsyncpa [#allocation9], 1
    %4670 = vsyncpa [#allocation7], 1
    %s4671 = scalar_lea.sflag [#allocation7], 1
    %4672 = vsyncpa %s4671, 1

</llo_original>
